<compile_context>
chip_gen: v7x
topology: tpu7x:2x2x1
jax: 0.10.0
libtpu: 0.0.40
codegen_flags: <defaults>
</compile_context>

<pallas_src>
import functools
import math

import jax
import jax.numpy as jnp
from jax.experimental import pallas as pl
from jax.experimental.pallas import tpu as pltpu


FEAT = 64
N_BLOCKS = 16
CIN_PAD = 8   # input channels padded 3 -> 8 (zero channels / zero weight rows)


# ----------------------------------------------------------------------------
# Fused kernel: one grid step = one ResBlock for one image.
# ----------------------------------------------------------------------------
def _fused_resblocknet_kernel(x_ref, win_ref, w1_ref, b1_ref, w2_ref, b2_ref,
                              wout_ref, o_ref, act_ref, h_ref, *, H, W, C):
    l = pl.program_id(1)
    n_layers = pl.num_programs(1)

    def im2col(xpad):
        # (H+2, W+2, Cin) -> (H*W, 9*Cin) bf16; tap order (dy, dx, cin) matches
        # the (3, 3, Cin, Cout) -> (9*Cin, Cout) weight reshape in the wrapper.
        cols = []
        for dy in range(3):
            for dx in range(3):
                cols.append(xpad[dy:dy + H, dx:dx + W, :]
                            .astype(jnp.bfloat16).reshape(H * W, -1))
        return jnp.concatenate(cols, axis=-1)

    # ---- layer 0: zero-init padded scratch + input conv (3->64, no bias) ----
    @pl.when(l == 0)
    def _input_conv():
        act_ref[...] = jnp.zeros_like(act_ref)   # borders stay zero afterwards
        h_ref[...] = jnp.zeros_like(h_ref)
        p = im2col(x_ref[0])                                     # (H*W, 9*CIN_PAD)
        y = jnp.dot(p, win_ref[...], preferred_element_type=jnp.float32)
        y = jnp.maximum(y, 0.0)                                  # relu
        act_ref[1:H + 1, 1:W + 1, :] = y.reshape(H, W, C)

    # ---- ResBlock l: out = relu(conv2(relu(conv1(x)+b1)) + b2 + x) ----------
    xin = act_ref[...]                                           # (H+2, W+2, C)
    res = xin[1:H + 1, 1:W + 1, :].reshape(H * W, C)

    h = jnp.dot(im2col(xin), w1_ref[l], preferred_element_type=jnp.float32)
    h = jnp.maximum(h + b1_ref[l], 0.0)
    h_ref[1:H + 1, 1:W + 1, :] = h.reshape(H, W, C)

    out = jnp.dot(im2col(h_ref[...]), w2_ref[l],
                  preferred_element_type=jnp.float32)
    out = jnp.maximum(out + b2_ref[l] + res, 0.0)
    act_ref[1:H + 1, 1:W + 1, :] = out.reshape(H, W, C)

    # ---- last layer: output conv (64->3, no bias, no relu) ------------------
    @pl.when(l == n_layers - 1)
    def _output_conv():
        of = jnp.dot(im2col(act_ref[...]), wout_ref[...],
                     preferred_element_type=jnp.float32)
        o_ref[0] = of.astype(o_ref.dtype)                        # (H*W, Cout)


# ----------------------------------------------------------------------------
# Wrapper: pack weights to im2col layout (bf16), run the fused kernel.
# ----------------------------------------------------------------------------
def resblocknet_forward_nhwc(x_nhwc, params):
    N, H, W, Cin = x_nhwc.shape
    C = FEAT
    L = len(params["blocks"])
    Cout = params["output_w"].shape[-1]

    # One-time input padding: spatial halo + channel pad (Cin -> CIN_PAD).
    xp = jnp.pad(x_nhwc, ((0, 0), (1, 1), (1, 1), (0, CIN_PAD - Cin)))

    # im2col-ready weights (bf16 matmul operands, f32 accumulation in-kernel).
    win = jnp.pad(params["input_w"],
                  ((0, 0), (0, 0), (0, CIN_PAD - Cin), (0, 0)))
    win = win.reshape(9 * CIN_PAD, C).astype(jnp.bfloat16)
    w1 = jnp.stack([b[0] for b in params["blocks"]]
                   ).reshape(L, 9 * C, C).astype(jnp.bfloat16)
    b1 = jnp.stack([b[1] for b in params["blocks"]]).reshape(L, 1, C)
    w2 = jnp.stack([b[2] for b in params["blocks"]]
                   ).reshape(L, 9 * C, C).astype(jnp.bfloat16)
    b2 = jnp.stack([b[3] for b in params["blocks"]]).reshape(L, 1, C)
    wout = params["output_w"].reshape(9 * C, Cout).astype(jnp.bfloat16)

    kernel = functools.partial(_fused_resblocknet_kernel, H=H, W=W, C=C)

    out_flat = pl.pallas_call(
        kernel,
        out_shape=jax.ShapeDtypeStruct((N, H * W, Cout), jnp.float32),
        grid=(N, L),
        in_specs=[
            pl.BlockSpec((1, H + 2, W + 2, CIN_PAD), lambda n, l: (n, 0, 0, 0)),
            pl.BlockSpec((9 * CIN_PAD, C), lambda n, l: (0, 0)),     # resident
            pl.BlockSpec((L, 9 * C, C), lambda n, l: (0, 0, 0)),     # resident
            pl.BlockSpec((L, 1, C), lambda n, l: (0, 0, 0)),         # resident
            pl.BlockSpec((L, 9 * C, C), lambda n, l: (0, 0, 0)),     # resident
            pl.BlockSpec((L, 1, C), lambda n, l: (0, 0, 0)),         # resident
            pl.BlockSpec((9 * C, Cout), lambda n, l: (0, 0)),        # resident
        ],
        out_specs=pl.BlockSpec((1, H * W, Cout), lambda n, l: (n, 0, 0)),
        scratch_shapes=[
            pltpu.VMEM((H + 2, W + 2, C), jnp.float32),   # running activation
            pltpu.VMEM((H + 2, W + 2, C), jnp.float32),   # block intermediate
        ],
        compiler_params=pltpu.CompilerParams(
            dimension_semantics=("parallel", "arbitrary")),
    )(xp, win, w1, b1, w2, b2, wout)

    return out_flat.reshape(N, H, W, Cout)


@jax.jit
def resblocknet_forward(x_nchw, params):
    # PyTorch-style NCHW in/out; the kernel runs in NHWC (channels on lanes).
    x_nhwc = jnp.transpose(x_nchw, (0, 2, 3, 1))
    out = resblocknet_forward_nhwc(x_nhwc, params)
    return jnp.transpose(out, (0, 3, 1, 2))


# ----------------------------------------------------------------------------
# Deterministic parameter init (xavier_uniform with relu gain, like the module)
# ----------------------------------------------------------------------------
def _xavier_uniform(key, cin, cout):
    fan_in, fan_out = cin * 9, cout * 9
    gain = math.sqrt(2.0)                       # calculate_gain('relu')
    bound = gain * math.sqrt(6.0 / (fan_in + fan_out))
    return jax.random.uniform(key, (3, 3, cin, cout), jnp.float32, -bound, bound)


def _default_bias(key, cin, cout):
    # nn.Conv2d default bias init: U(-1/sqrt(fan_in), 1/sqrt(fan_in))
    bound = 1.0 / math.sqrt(cin * 9)
    return jax.random.uniform(key, (cout,), jnp.float32, -bound, bound)


def init_params(key, channels=3, feat=FEAT, n_blocks=N_BLOCKS):
    keys = jax.random.split(key, 2 + 4 * n_blocks)
    params = {
        "input_w": _xavier_uniform(keys[0], channels, feat),
        "output_w": _xavier_uniform(keys[1], feat, channels),
        "blocks": [],
    }
    for i in range(n_blocks):
        k = keys[2 + 4 * i: 2 + 4 * (i + 1)]
        params["blocks"].append((
            _xavier_uniform(k[0], feat, feat),   # conv1 weight
            _default_bias(k[1], feat, feat),     # conv1 bias
            _xavier_uniform(k[2], feat, feat),   # conv2 weight
            _default_bias(k[3], feat, feat),     # conv2 bias
        ))
    return params


if __name__ == "__main__":
    key = jax.random.PRNGKey(0)
    kx, kp = jax.random.split(key)
    x = jax.random.normal(kx, (2, 3, 16, 16), jnp.float32)   # NCHW like torch
    params = init_params(kp, channels=3, feat=FEAT, n_blocks=N_BLOCKS)

    y = resblocknet_forward(x, params)
    jax.block_until_ready(y)
    assert y.shape == (2, 3, 16, 16)
    assert bool(jnp.all(jnp.isfinite(y)))
    print("KERNEL_OK")
</pallas_src>

<mosaic_0001>
module attributes {stable_mosaic.version = 11 : i64} {
  func.func @_fused_resblocknet_kernel(%arg0: i32, %arg1: i32, %arg2: memref<1x18x18x8xf32, #tpu.memory_space<vmem>>, %arg3: memref<72x64xbf16, #tpu.memory_space<vmem>>, %arg4: memref<16x576x64xbf16, #tpu.memory_space<vmem>>, %arg5: memref<16x1x64xf32, #tpu.memory_space<vmem>>, %arg6: memref<16x576x64xbf16, #tpu.memory_space<vmem>>, %arg7: memref<16x1x64xf32, #tpu.memory_space<vmem>>, %arg8: memref<576x3xbf16, #tpu.memory_space<vmem>>, %arg9: memref<1x256x3xf32, #tpu.memory_space<vmem>>, %arg10: memref<18x18x64xf32, #tpu.memory_space<vmem>>, %arg11: memref<18x18x64xf32, #tpu.memory_space<vmem>>) attributes {dimension_semantics = [#tpu.dimension_semantics<parallel>, #tpu.dimension_semantics<arbitrary>], iteration_bounds = array<i64: 2, 16>, scalar_prefetch = 0 : i64, scratch_operands = 2 : i64, tpu.core_type = #tpu.core_type<tc>, window_params = [{transform_indices = @transform_0, window_bounds = array<i64: 1, 18, 18, 8>}, {pipeline_mode = #tpu.pipeline_mode<synchronous>, transform_indices = @transform_1, window_bounds = array<i64: 72, 64>}, {pipeline_mode = #tpu.pipeline_mode<synchronous>, transform_indices = @transform_2, window_bounds = array<i64: 16, 576, 64>}, {pipeline_mode = #tpu.pipeline_mode<synchronous>, transform_indices = @transform_3, window_bounds = array<i64: 16, 1, 64>}, {pipeline_mode = #tpu.pipeline_mode<synchronous>, transform_indices = @transform_4, window_bounds = array<i64: 16, 576, 64>}, {pipeline_mode = #tpu.pipeline_mode<synchronous>, transform_indices = @transform_5, window_bounds = array<i64: 16, 1, 64>}, {pipeline_mode = #tpu.pipeline_mode<synchronous>, transform_indices = @transform_6, window_bounds = array<i64: 576, 3>}, {transform_indices = @transform_7, window_bounds = array<i64: 1, 256, 3>}]} {
    %c0_i32 = arith.constant 0 : i32
    %0 = arith.cmpi eq, %arg1, %c0_i32 : i32
    %1 = arith.extui %0 : i1 to i32
    %c0_i32_0 = arith.constant 0 : i32
    %2 = arith.cmpi ne, %1, %c0_i32_0 : i32
    scf.if %2 {
      %cst_23 = arith.constant 0.000000e+00 : f32
      %93 = vector.broadcast %cst_23 : f32 to vector<18x18x64xf32>
      %c0_24 = arith.constant 0 : index
      %c0_25 = arith.constant 0 : index
      %c0_26 = arith.constant 0 : index
      %94 = vector.load %arg10[%c0_24, %c0_25, %c0_26] : memref<18x18x64xf32, #tpu.memory_space<vmem>>, vector<18x18x64xf32>
      tpu.vector_store %arg10[%c0_24, %c0_25, %c0_26], %93 {strides = array<i32>} : memref<18x18x64xf32, #tpu.memory_space<vmem>>, vector<18x18x64xf32>,
      %cst_27 = arith.constant 0.000000e+00 : f32
      %95 = vector.broadcast %cst_27 : f32 to vector<18x18x64xf32>
      %c0_28 = arith.constant 0 : index
      %c0_29 = arith.constant 0 : index
      %c0_30 = arith.constant 0 : index
      %96 = vector.load %arg11[%c0_28, %c0_29, %c0_30] : memref<18x18x64xf32, #tpu.memory_space<vmem>>, vector<18x18x64xf32>
      tpu.vector_store %arg11[%c0_28, %c0_29, %c0_30], %95 {strides = array<i32>} : memref<18x18x64xf32, #tpu.memory_space<vmem>>, vector<18x18x64xf32>,
      %c0_31 = arith.constant 0 : index
      %c0_32 = arith.constant 0 : index
      %c0_33 = arith.constant 0 : index
      %c0_34 = arith.constant 0 : index
      %97 = vector.load %arg2[%c0_31, %c0_32, %c0_33, %c0_34] : memref<1x18x18x8xf32, #tpu.memory_space<vmem>>, vector<1x18x18x8xf32>
      %98 = vector.shape_cast %97 : vector<1x18x18x8xf32> to vector<18x18x8xf32>
      %99 = vector.extract_strided_slice %98 {offsets = [0, 0, 0], sizes = [16, 16, 8], strides = [1, 1, 1]} : vector<18x18x8xf32> to vector<16x16x8xf32>
      %100 = arith.truncf %99 : vector<16x16x8xf32> to vector<16x16x8xbf16>
      %101 = vector.shape_cast %100 : vector<16x16x8xbf16> to vector<256x8xbf16>
      %102 = vector.extract_strided_slice %98 {offsets = [0, 1, 0], sizes = [16, 16, 8], strides = [1, 1, 1]} : vector<18x18x8xf32> to vector<16x16x8xf32>
      %103 = arith.truncf %102 : vector<16x16x8xf32> to vector<16x16x8xbf16>
      %104 = vector.shape_cast %103 : vector<16x16x8xbf16> to vector<256x8xbf16>
      %105 = vector.extract_strided_slice %98 {offsets = [0, 2, 0], sizes = [16, 16, 8], strides = [1, 1, 1]} : vector<18x18x8xf32> to vector<16x16x8xf32>
      %106 = arith.truncf %105 : vector<16x16x8xf32> to vector<16x16x8xbf16>
      %107 = vector.shape_cast %106 : vector<16x16x8xbf16> to vector<256x8xbf16>
      %108 = vector.extract_strided_slice %98 {offsets = [1, 0, 0], sizes = [16, 16, 8], strides = [1, 1, 1]} : vector<18x18x8xf32> to vector<16x16x8xf32>
      %109 = arith.truncf %108 : vector<16x16x8xf32> to vector<16x16x8xbf16>
      %110 = vector.shape_cast %109 : vector<16x16x8xbf16> to vector<256x8xbf16>
      %111 = vector.extract_strided_slice %98 {offsets = [1, 1, 0], sizes = [16, 16, 8], strides = [1, 1, 1]} : vector<18x18x8xf32> to vector<16x16x8xf32>
      %112 = arith.truncf %111 : vector<16x16x8xf32> to vector<16x16x8xbf16>
      %113 = vector.shape_cast %112 : vector<16x16x8xbf16> to vector<256x8xbf16>
      %114 = vector.extract_strided_slice %98 {offsets = [1, 2, 0], sizes = [16, 16, 8], strides = [1, 1, 1]} : vector<18x18x8xf32> to vector<16x16x8xf32>
      %115 = arith.truncf %114 : vector<16x16x8xf32> to vector<16x16x8xbf16>
      %116 = vector.shape_cast %115 : vector<16x16x8xbf16> to vector<256x8xbf16>
      %117 = vector.extract_strided_slice %98 {offsets = [2, 0, 0], sizes = [16, 16, 8], strides = [1, 1, 1]} : vector<18x18x8xf32> to vector<16x16x8xf32>
      %118 = arith.truncf %117 : vector<16x16x8xf32> to vector<16x16x8xbf16>
      %119 = vector.shape_cast %118 : vector<16x16x8xbf16> to vector<256x8xbf16>
      %120 = vector.extract_strided_slice %98 {offsets = [2, 1, 0], sizes = [16, 16, 8], strides = [1, 1, 1]} : vector<18x18x8xf32> to vector<16x16x8xf32>
      %121 = arith.truncf %120 : vector<16x16x8xf32> to vector<16x16x8xbf16>
      %122 = vector.shape_cast %121 : vector<16x16x8xbf16> to vector<256x8xbf16>
      %123 = vector.extract_strided_slice %98 {offsets = [2, 2, 0], sizes = [16, 16, 8], strides = [1, 1, 1]} : vector<18x18x8xf32> to vector<16x16x8xf32>
      %124 = arith.truncf %123 : vector<16x16x8xf32> to vector<16x16x8xbf16>
      %125 = vector.shape_cast %124 : vector<16x16x8xbf16> to vector<256x8xbf16>
      %126 = tpu.concatenate %101, %104, %107, %110, %113, %116, %119, %122, %125 in 1 : vector<256x8xbf16>, vector<256x8xbf16>, vector<256x8xbf16>, vector<256x8xbf16>, vector<256x8xbf16>, vector<256x8xbf16>, vector<256x8xbf16>, vector<256x8xbf16>, vector<256x8xbf16> -> vector<256x72xbf16>
      %c0_35 = arith.constant 0 : index
      %c0_36 = arith.constant 0 : index
      %127 = vector.load %arg3[%c0_35, %c0_36] : memref<72x64xbf16, #tpu.memory_space<vmem>>, vector<72x64xbf16>
      %cst_37 = arith.constant dense<0.000000e+00> : vector<256x64xf32>
      %128 = tpu.matmul %126, %127, %cst_37 {dimension_numbers = #tpu.dot_dimension_numbers<[1], [0], [0], [1], [0, 0, 1, 1], [], []>} : vector<256x72xbf16>, vector<72x64xbf16>, vector<256x64xf32> -> vector<256x64xf32>
      %cst_38 = arith.constant 0.000000e+00 : f32
      %129 = vector.broadcast %cst_38 : f32 to vector<256x64xf32>
      %130 = arith.maximumf %128, %129 : vector<256x64xf32>
      %131 = vector.shape_cast %130 : vector<256x64xf32> to vector<16x16x64xf32>
      %c1_39 = arith.constant 1 : index
      %c1_40 = arith.constant 1 : index
      %c0_41 = arith.constant 0 : index
      %132 = vector.load %arg10[%c1_39, %c1_40, %c0_41] : memref<18x18x64xf32, #tpu.memory_space<vmem>>, vector<16x16x64xf32>
      tpu.vector_store %arg10[%c1_39, %c1_40, %c0_41], %131 {strides = array<i32>} : memref<18x18x64xf32, #tpu.memory_space<vmem>>, vector<16x16x64xf32>,
    } else {
    }
    %c0 = arith.constant 0 : index
    %c0_1 = arith.constant 0 : index
    %c0_2 = arith.constant 0 : index
    %3 = vector.load %arg10[%c0, %c0_1, %c0_2] : memref<18x18x64xf32, #tpu.memory_space<vmem>>, vector<18x18x64xf32>
    %4 = vector.extract_strided_slice %3 {offsets = [1, 1, 0], sizes = [16, 16, 64], strides = [1, 1, 1]} : vector<18x18x64xf32> to vector<16x16x64xf32>
    %5 = vector.shape_cast %4 : vector<16x16x64xf32> to vector<256x64xf32>
    %6 = vector.extract_strided_slice %3 {offsets = [0, 0, 0], sizes = [16, 16, 64], strides = [1, 1, 1]} : vector<18x18x64xf32> to vector<16x16x64xf32>
    %7 = arith.truncf %6 : vector<16x16x64xf32> to vector<16x16x64xbf16>
    %8 = vector.shape_cast %7 : vector<16x16x64xbf16> to vector<256x64xbf16>
    %9 = vector.extract_strided_slice %3 {offsets = [0, 1, 0], sizes = [16, 16, 64], strides = [1, 1, 1]} : vector<18x18x64xf32> to vector<16x16x64xf32>
    %10 = arith.truncf %9 : vector<16x16x64xf32> to vector<16x16x64xbf16>
    %11 = vector.shape_cast %10 : vector<16x16x64xbf16> to vector<256x64xbf16>
    %12 = vector.extract_strided_slice %3 {offsets = [0, 2, 0], sizes = [16, 16, 64], strides = [1, 1, 1]} : vector<18x18x64xf32> to vector<16x16x64xf32>
    %13 = arith.truncf %12 : vector<16x16x64xf32> to vector<16x16x64xbf16>
    %14 = vector.shape_cast %13 : vector<16x16x64xbf16> to vector<256x64xbf16>
    %15 = vector.extract_strided_slice %3 {offsets = [1, 0, 0], sizes = [16, 16, 64], strides = [1, 1, 1]} : vector<18x18x64xf32> to vector<16x16x64xf32>
    %16 = arith.truncf %15 : vector<16x16x64xf32> to vector<16x16x64xbf16>
    %17 = vector.shape_cast %16 : vector<16x16x64xbf16> to vector<256x64xbf16>
    %18 = vector.extract_strided_slice %3 {offsets = [1, 1, 0], sizes = [16, 16, 64], strides = [1, 1, 1]} : vector<18x18x64xf32> to vector<16x16x64xf32>
    %19 = arith.truncf %18 : vector<16x16x64xf32> to vector<16x16x64xbf16>
    %20 = vector.shape_cast %19 : vector<16x16x64xbf16> to vector<256x64xbf16>
    %21 = vector.extract_strided_slice %3 {offsets = [1, 2, 0], sizes = [16, 16, 64], strides = [1, 1, 1]} : vector<18x18x64xf32> to vector<16x16x64xf32>
    %22 = arith.truncf %21 : vector<16x16x64xf32> to vector<16x16x64xbf16>
    %23 = vector.shape_cast %22 : vector<16x16x64xbf16> to vector<256x64xbf16>
    %24 = vector.extract_strided_slice %3 {offsets = [2, 0, 0], sizes = [16, 16, 64], strides = [1, 1, 1]} : vector<18x18x64xf32> to vector<16x16x64xf32>
    %25 = arith.truncf %24 : vector<16x16x64xf32> to vector<16x16x64xbf16>
    %26 = vector.shape_cast %25 : vector<16x16x64xbf16> to vector<256x64xbf16>
    %27 = vector.extract_strided_slice %3 {offsets = [2, 1, 0], sizes = [16, 16, 64], strides = [1, 1, 1]} : vector<18x18x64xf32> to vector<16x16x64xf32>
    %28 = arith.truncf %27 : vector<16x16x64xf32> to vector<16x16x64xbf16>
    %29 = vector.shape_cast %28 : vector<16x16x64xbf16> to vector<256x64xbf16>
    %30 = vector.extract_strided_slice %3 {offsets = [2, 2, 0], sizes = [16, 16, 64], strides = [1, 1, 1]} : vector<18x18x64xf32> to vector<16x16x64xf32>
    %31 = arith.truncf %30 : vector<16x16x64xf32> to vector<16x16x64xbf16>
    %32 = vector.shape_cast %31 : vector<16x16x64xbf16> to vector<256x64xbf16>
    %33 = tpu.concatenate %8, %11, %14, %17, %20, %23, %26, %29, %32 in 1 : vector<256x64xbf16>, vector<256x64xbf16>, vector<256x64xbf16>, vector<256x64xbf16>, vector<256x64xbf16>, vector<256x64xbf16>, vector<256x64xbf16>, vector<256x64xbf16>, vector<256x64xbf16> -> vector<256x576xbf16>
    %34 = arith.index_cast %arg1 : i32 to index
    %c0_3 = arith.constant 0 : index
    %c0_4 = arith.constant 0 : index
    %35 = vector.load %arg4[%34, %c0_3, %c0_4] : memref<16x576x64xbf16, #tpu.memory_space<vmem>>, vector<1x576x64xbf16>
    %36 = vector.shape_cast %35 : vector<1x576x64xbf16> to vector<576x64xbf16>
    %cst = arith.constant dense<0.000000e+00> : vector<256x64xf32>
    %37 = tpu.matmul %33, %36, %cst {dimension_numbers = #tpu.dot_dimension_numbers<[1], [0], [0], [1], [0, 0, 1, 1], [], []>} : vector<256x576xbf16>, vector<576x64xbf16>, vector<256x64xf32> -> vector<256x64xf32>
    %38 = arith.index_cast %arg1 : i32 to index
    %c0_5 = arith.constant 0 : index
    %c0_6 = arith.constant 0 : index
    %39 = vector.load %arg5[%38, %c0_5, %c0_6] : memref<16x1x64xf32, #tpu.memory_space<vmem>>, vector<1x1x64xf32>
    %40 = vector.shape_cast %39 : vector<1x1x64xf32> to vector<1x64xf32>
    %41 = vector.broadcast %40 : vector<1x64xf32> to vector<256x64xf32>
    %42 = arith.addf %37, %41 : vector<256x64xf32>
    %cst_7 = arith.constant 0.000000e+00 : f32
    %43 = vector.broadcast %cst_7 : f32 to vector<256x64xf32>
    %44 = arith.maximumf %42, %43 : vector<256x64xf32>
    %45 = vector.shape_cast %44 : vector<256x64xf32> to vector<16x16x64xf32>
    %c1 = arith.constant 1 : index
    %c1_8 = arith.constant 1 : index
    %c0_9 = arith.constant 0 : index
    %46 = vector.load %arg11[%c1, %c1_8, %c0_9] : memref<18x18x64xf32, #tpu.memory_space<vmem>>, vector<16x16x64xf32>
    tpu.vector_store %arg11[%c1, %c1_8, %c0_9], %45 {strides = array<i32>} : memref<18x18x64xf32, #tpu.memory_space<vmem>>, vector<16x16x64xf32>,
    %c0_10 = arith.constant 0 : index
    %c0_11 = arith.constant 0 : index
    %c0_12 = arith.constant 0 : index
    %47 = vector.load %arg11[%c0_10, %c0_11, %c0_12] : memref<18x18x64xf32, #tpu.memory_space<vmem>>, vector<18x18x64xf32>
    %48 = vector.extract_strided_slice %47 {offsets = [0, 0, 0], sizes = [16, 16, 64], strides = [1, 1, 1]} : vector<18x18x64xf32> to vector<16x16x64xf32>
    %49 = arith.truncf %48 : vector<16x16x64xf32> to vector<16x16x64xbf16>
    %50 = vector.shape_cast %49 : vector<16x16x64xbf16> to vector<256x64xbf16>
    %51 = vector.extract_strided_slice %47 {offsets = [0, 1, 0], sizes = [16, 16, 64], strides = [1, 1, 1]} : vector<18x18x64xf32> to vector<16x16x64xf32>
    %52 = arith.truncf %51 : vector<16x16x64xf32> to vector<16x16x64xbf16>
    %53 = vector.shape_cast %52 : vector<16x16x64xbf16> to vector<256x64xbf16>
    %54 = vector.extract_strided_slice %47 {offsets = [0, 2, 0], sizes = [16, 16, 64], strides = [1, 1, 1]} : vector<18x18x64xf32> to vector<16x16x64xf32>
    %55 = arith.truncf %54 : vector<16x16x64xf32> to vector<16x16x64xbf16>
    %56 = vector.shape_cast %55 : vector<16x16x64xbf16> to vector<256x64xbf16>
    %57 = vector.extract_strided_slice %47 {offsets = [1, 0, 0], sizes = [16, 16, 64], strides = [1, 1, 1]} : vector<18x18x64xf32> to vector<16x16x64xf32>
    %58 = arith.truncf %57 : vector<16x16x64xf32> to vector<16x16x64xbf16>
    %59 = vector.shape_cast %58 : vector<16x16x64xbf16> to vector<256x64xbf16>
    %60 = vector.extract_strided_slice %47 {offsets = [1, 1, 0], sizes = [16, 16, 64], strides = [1, 1, 1]} : vector<18x18x64xf32> to vector<16x16x64xf32>
    %61 = arith.truncf %60 : vector<16x16x64xf32> to vector<16x16x64xbf16>
    %62 = vector.shape_cast %61 : vector<16x16x64xbf16> to vector<256x64xbf16>
    %63 = vector.extract_strided_slice %47 {offsets = [1, 2, 0], sizes = [16, 16, 64], strides = [1, 1, 1]} : vector<18x18x64xf32> to vector<16x16x64xf32>
    %64 = arith.truncf %63 : vector<16x16x64xf32> to vector<16x16x64xbf16>
    %65 = vector.shape_cast %64 : vector<16x16x64xbf16> to vector<256x64xbf16>
    %66 = vector.extract_strided_slice %47 {offsets = [2, 0, 0], sizes = [16, 16, 64], strides = [1, 1, 1]} : vector<18x18x64xf32> to vector<16x16x64xf32>
    %67 = arith.truncf %66 : vector<16x16x64xf32> to vector<16x16x64xbf16>
    %68 = vector.shape_cast %67 : vector<16x16x64xbf16> to vector<256x64xbf16>
    %69 = vector.extract_strided_slice %47 {offsets = [2, 1, 0], sizes = [16, 16, 64], strides = [1, 1, 1]} : vector<18x18x64xf32> to vector<16x16x64xf32>
    %70 = arith.truncf %69 : vector<16x16x64xf32> to vector<16x16x64xbf16>
    %71 = vector.shape_cast %70 : vector<16x16x64xbf16> to vector<256x64xbf16>
    %72 = vector.extract_strided_slice %47 {offsets = [2, 2, 0], sizes = [16, 16, 64], strides = [1, 1, 1]} : vector<18x18x64xf32> to vector<16x16x64xf32>
    %73 = arith.truncf %72 : vector<16x16x64xf32> to vector<16x16x64xbf16>
    %74 = vector.shape_cast %73 : vector<16x16x64xbf16> to vector<256x64xbf16>
    %75 = tpu.concatenate %50, %53, %56, %59, %62, %65, %68, %71, %74 in 1 : vector<256x64xbf16>, vector<256x64xbf16>, vector<256x64xbf16>, vector<256x64xbf16>, vector<256x64xbf16>, vector<256x64xbf16>, vector<256x64xbf16>, vector<256x64xbf16>, vector<256x64xbf16> -> vector<256x576xbf16>
    %76 = arith.index_cast %arg1 : i32 to index
    %c0_13 = arith.constant 0 : index
    %c0_14 = arith.constant 0 : index
    %77 = vector.load %arg6[%76, %c0_13, %c0_14] : memref<16x576x64xbf16, #tpu.memory_space<vmem>>, vector<1x576x64xbf16>
    %78 = vector.shape_cast %77 : vector<1x576x64xbf16> to vector<576x64xbf16>
    %cst_15 = arith.constant dense<0.000000e+00> : vector<256x64xf32>
    %79 = tpu.matmul %75, %78, %cst_15 {dimension_numbers = #tpu.dot_dimension_numbers<[1], [0], [0], [1], [0, 0, 1, 1], [], []>} : vector<256x576xbf16>, vector<576x64xbf16>, vector<256x64xf32> -> vector<256x64xf32>
    %80 = arith.index_cast %arg1 : i32 to index
    %c0_16 = arith.constant 0 : index
    %c0_17 = arith.constant 0 : index
    %81 = vector.load %arg7[%80, %c0_16, %c0_17] : memref<16x1x64xf32, #tpu.memory_space<vmem>>, vector<1x1x64xf32>
    %82 = vector.shape_cast %81 : vector<1x1x64xf32> to vector<1x64xf32>
    %83 = vector.broadcast %82 : vector<1x64xf32> to vector<256x64xf32>
    %84 = arith.addf %79, %83 : vector<256x64xf32>
    %85 = arith.addf %84, %5 : vector<256x64xf32>
    %cst_18 = arith.constant 0.000000e+00 : f32
    %86 = vector.broadcast %cst_18 : f32 to vector<256x64xf32>
    %87 = arith.maximumf %85, %86 : vector<256x64xf32>
    %88 = vector.shape_cast %87 : vector<256x64xf32> to vector<16x16x64xf32>
    %c1_19 = arith.constant 1 : index
    %c1_20 = arith.constant 1 : index
    %c0_21 = arith.constant 0 : index
    %89 = vector.load %arg10[%c1_19, %c1_20, %c0_21] : memref<18x18x64xf32, #tpu.memory_space<vmem>>, vector<16x16x64xf32>
    tpu.vector_store %arg10[%c1_19, %c1_20, %c0_21], %88 {strides = array<i32>} : memref<18x18x64xf32, #tpu.memory_space<vmem>>, vector<16x16x64xf32>,
    %c15_i32 = arith.constant 15 : i32
    %90 = arith.cmpi eq, %arg1, %c15_i32 : i32
    %91 = arith.extui %90 : i1 to i32
    %c0_i32_22 = arith.constant 0 : i32
    %92 = arith.cmpi ne, %91, %c0_i32_22 : i32
    scf.if %92 {
      %c0_23 = arith.constant 0 : index
      %c0_24 = arith.constant 0 : index
      %c0_25 = arith.constant 0 : index
      %93 = vector.load %arg10[%c0_23, %c0_24, %c0_25] : memref<18x18x64xf32, #tpu.memory_space<vmem>>, vector<18x18x64xf32>
      %94 = vector.extract_strided_slice %93 {offsets = [0, 0, 0], sizes = [16, 16, 64], strides = [1, 1, 1]} : vector<18x18x64xf32> to vector<16x16x64xf32>
      %95 = arith.truncf %94 : vector<16x16x64xf32> to vector<16x16x64xbf16>
      %96 = vector.shape_cast %95 : vector<16x16x64xbf16> to vector<256x64xbf16>
      %97 = vector.extract_strided_slice %93 {offsets = [0, 1, 0], sizes = [16, 16, 64], strides = [1, 1, 1]} : vector<18x18x64xf32> to vector<16x16x64xf32>
      %98 = arith.truncf %97 : vector<16x16x64xf32> to vector<16x16x64xbf16>
      %99 = vector.shape_cast %98 : vector<16x16x64xbf16> to vector<256x64xbf16>
      %100 = vector.extract_strided_slice %93 {offsets = [0, 2, 0], sizes = [16, 16, 64], strides = [1, 1, 1]} : vector<18x18x64xf32> to vector<16x16x64xf32>
      %101 = arith.truncf %100 : vector<16x16x64xf32> to vector<16x16x64xbf16>
      %102 = vector.shape_cast %101 : vector<16x16x64xbf16> to vector<256x64xbf16>
      %103 = vector.extract_strided_slice %93 {offsets = [1, 0, 0], sizes = [16, 16, 64], strides = [1, 1, 1]} : vector<18x18x64xf32> to vector<16x16x64xf32>
      %104 = arith.truncf %103 : vector<16x16x64xf32> to vector<16x16x64xbf16>
      %105 = vector.shape_cast %104 : vector<16x16x64xbf16> to vector<256x64xbf16>
      %106 = vector.extract_strided_slice %93 {offsets = [1, 1, 0], sizes = [16, 16, 64], strides = [1, 1, 1]} : vector<18x18x64xf32> to vector<16x16x64xf32>
      %107 = arith.truncf %106 : vector<16x16x64xf32> to vector<16x16x64xbf16>
      %108 = vector.shape_cast %107 : vector<16x16x64xbf16> to vector<256x64xbf16>
      %109 = vector.extract_strided_slice %93 {offsets = [1, 2, 0], sizes = [16, 16, 64], strides = [1, 1, 1]} : vector<18x18x64xf32> to vector<16x16x64xf32>
      %110 = arith.truncf %109 : vector<16x16x64xf32> to vector<16x16x64xbf16>
      %111 = vector.shape_cast %110 : vector<16x16x64xbf16> to vector<256x64xbf16>
      %112 = vector.extract_strided_slice %93 {offsets = [2, 0, 0], sizes = [16, 16, 64], strides = [1, 1, 1]} : vector<18x18x64xf32> to vector<16x16x64xf32>
      %113 = arith.truncf %112 : vector<16x16x64xf32> to vector<16x16x64xbf16>
      %114 = vector.shape_cast %113 : vector<16x16x64xbf16> to vector<256x64xbf16>
      %115 = vector.extract_strided_slice %93 {offsets = [2, 1, 0], sizes = [16, 16, 64], strides = [1, 1, 1]} : vector<18x18x64xf32> to vector<16x16x64xf32>
      %116 = arith.truncf %115 : vector<16x16x64xf32> to vector<16x16x64xbf16>
      %117 = vector.shape_cast %116 : vector<16x16x64xbf16> to vector<256x64xbf16>
      %118 = vector.extract_strided_slice %93 {offsets = [2, 2, 0], sizes = [16, 16, 64], strides = [1, 1, 1]} : vector<18x18x64xf32> to vector<16x16x64xf32>
      %119 = arith.truncf %118 : vector<16x16x64xf32> to vector<16x16x64xbf16>
      %120 = vector.shape_cast %119 : vector<16x16x64xbf16> to vector<256x64xbf16>
      %121 = tpu.concatenate %96, %99, %102, %105, %108, %111, %114, %117, %120 in 1 : vector<256x64xbf16>, vector<256x64xbf16>, vector<256x64xbf16>, vector<256x64xbf16>, vector<256x64xbf16>, vector<256x64xbf16>, vector<256x64xbf16>, vector<256x64xbf16>, vector<256x64xbf16> -> vector<256x576xbf16>
      %c0_26 = arith.constant 0 : index
      %c0_27 = arith.constant 0 : index
      %122 = vector.load %arg8[%c0_26, %c0_27] : memref<576x3xbf16, #tpu.memory_space<vmem>>, vector<576x3xbf16>
      %cst_28 = arith.constant dense<0.000000e+00> : vector<256x3xf32>
      %123 = tpu.matmul %121, %122, %cst_28 {dimension_numbers = #tpu.dot_dimension_numbers<[1], [0], [0], [1], [0, 0, 1, 1], [], []>} : vector<256x576xbf16>, vector<576x3xbf16>, vector<256x3xf32> -> vector<256x3xf32>
      %c0_29 = arith.constant 0 : index
      %c0_30 = arith.constant 0 : index
      %c0_31 = arith.constant 0 : index
      %124 = vector.load %arg9[%c0_29, %c0_30, %c0_31] : memref<1x256x3xf32, #tpu.memory_space<vmem>>, vector<1x256x3xf32>
      %125 = vector.shape_cast %124 : vector<1x256x3xf32> to vector<256x3xf32>
      %126 = vector.shape_cast %123 : vector<256x3xf32> to vector<1x256x3xf32>
      tpu.vector_store %arg9[%c0_29, %c0_30, %c0_31], %126 {strides = array<i32>} : memref<1x256x3xf32, #tpu.memory_space<vmem>>, vector<1x256x3xf32>,
    } else {
    }
    return
  }
  func.func @transform_0(%arg0: i32, %arg1: i32) -> (i32, i32, i32, i32) {
    %c0_i32 = arith.constant 0 : i32
    %c0_i32_0 = arith.constant 0 : i32
    %c0_i32_1 = arith.constant 0 : i32
    %c0_i32_2 = arith.constant 0 : i32
    return %arg0, %c0_i32, %c0_i32_0, %c0_i32_1 : i32, i32, i32, i32
  }
  func.func @transform_1(%arg0: i32, %arg1: i32) -> (i32, i32) {
    %c0_i32 = arith.constant 0 : i32
    %c0_i32_0 = arith.constant 0 : i32
    %c0_i32_1 = arith.constant 0 : i32
    return %c0_i32, %c0_i32_0 : i32, i32
  }
  func.func @transform_2(%arg0: i32, %arg1: i32) -> (i32, i32, i32) {
    %c0_i32 = arith.constant 0 : i32
    %c0_i32_0 = arith.constant 0 : i32
    %c0_i32_1 = arith.constant 0 : i32
    %c0_i32_2 = arith.constant 0 : i32
    return %c0_i32, %c0_i32_0, %c0_i32_1 : i32, i32, i32
  }
  func.func @transform_3(%arg0: i32, %arg1: i32) -> (i32, i32, i32) {
    %c0_i32 = arith.constant 0 : i32
    %c0_i32_0 = arith.constant 0 : i32
    %c0_i32_1 = arith.constant 0 : i32
    %c0_i32_2 = arith.constant 0 : i32
    return %c0_i32, %c0_i32_0, %c0_i32_1 : i32, i32, i32
  }
  func.func @transform_4(%arg0: i32, %arg1: i32) -> (i32, i32, i32) {
    %c0_i32 = arith.constant 0 : i32
    %c0_i32_0 = arith.constant 0 : i32
    %c0_i32_1 = arith.constant 0 : i32
    %c0_i32_2 = arith.constant 0 : i32
    return %c0_i32, %c0_i32_0, %c0_i32_1 : i32, i32, i32
  }
  func.func @transform_5(%arg0: i32, %arg1: i32) -> (i32, i32, i32) {
    %c0_i32 = arith.constant 0 : i32
    %c0_i32_0 = arith.constant 0 : i32
    %c0_i32_1 = arith.constant 0 : i32
    %c0_i32_2 = arith.constant 0 : i32
    return %c0_i32, %c0_i32_0, %c0_i32_1 : i32, i32, i32
  }
  func.func @transform_6(%arg0: i32, %arg1: i32) -> (i32, i32) {
    %c0_i32 = arith.constant 0 : i32
    %c0_i32_0 = arith.constant 0 : i32
    %c0_i32_1 = arith.constant 0 : i32
    return %c0_i32, %c0_i32_0 : i32, i32
  }
  func.func @transform_7(%arg0: i32, %arg1: i32) -> (i32, i32, i32) {
    %c0_i32 = arith.constant 0 : i32
    %c0_i32_0 = arith.constant 0 : i32
    %c0_i32_1 = arith.constant 0 : i32
    return %arg0, %c0_i32, %c0_i32_0 : i32, i32, i32
  }
}

</mosaic_0001>

<llo_original>
// kernel: resblocknet_forward.1
$region0: #{resblocknet_forward.1}
  #allocation0 [shape = 'u32[]', space=smem, size = 0x4, offset = 0x4, fixed_abs, tag = 'smem constant byte address 0x4 - core index']
  #allocation1 [shape = 'u32[144,128]{1,0:T(1,128)}', space=vmem, size = 0x12000, scoped, tag = 'internal scratch']
  #allocation2 [shape = 'f32[18,18,64]{2,1,0:T(8,128)}', space=vmem, size = 0x36000, scoped, tag = 'scratch operand']
  #allocation3 [shape = 'f32[18,18,64]{2,1,0:T(8,128)}', space=vmem, size = 0x36000, scoped, tag = 'scratch operand']
  %s0 = inlined_call_operand.vmem [shape: f32[2,18,18,8], index: 0, kind: input, shape index: {}]
  %s1 = inlined_call_operand.vmem [shape: bf16[72,64], index: 1, kind: input, shape index: {}]
  %s2 = inlined_call_operand.vmem [shape: bf16[16,576,64], index: 2, kind: input, shape index: {}]
  %s3 = inlined_call_operand.vmem [shape: f32[16,1,64], index: 3, kind: input, shape index: {}]
  %s4 = inlined_call_operand.vmem [shape: bf16[16,576,64], index: 4, kind: input, shape index: {}]
  %s5 = inlined_call_operand.vmem [shape: f32[16,1,64], index: 5, kind: input, shape index: {}]
  %s6 = inlined_call_operand.vmem [shape: bf16[576,3], index: 6, kind: input, shape index: {}]
  %s7 = inlined_call_operand.vmem [shape: f32[2,256,3], index: 7, kind: output, shape index: {}]
  %s8 = sld [smem:[#allocation0]]
  $region69: #{resblocknet_forward.1} parent=0
    _
  %s10 = ssub.s32 1, %s8
  %s11 = scalar_select 0, %s10, %s8
  loop: start=0, step=1, limit=34
  $region2: #{resblocknet_forward.1} parent=0 // loop_pre_header
    _
  $region3: #{resblocknet_forward.1} parent=0 // loop_header
    %s13 = sphi 0, %s17
    %p14 = scmp.ge.s32.totalorder %s13, 34
    %s20 = sphi 0, %s32
    %s21 = sphi 0, %s28
    %s22 = sphi 0, %s20
    %s23 = sphi 0, %s21
    %s24 = sphi 0, %s22
    %s25 = sphi 0, %s23
    %s35 = sphi 0, %s37
    %s38 = sphi 0, %s35
    %s39 = sphi 0, %s38
    %s55 = sphi 0, %s39
    %s59 = sphi 0, %s59
    %s61 = sphi 0, %s59
    %s62 = sphi 0, %s61
    %s76 = sphi 0, %s62
    %s80 = sphi 0, %s80
    %s82 = sphi 0, %s80
    %s83 = sphi 0, %s82
    %s97 = sphi 0, %s83
    %s101 = sphi 0, %s101
    %s103 = sphi 0, %s101
    %s104 = sphi 0, %s103
    %s118 = sphi 0, %s104
    %s122 = sphi 0, %s122
    %s124 = sphi 0, %s122
    %s125 = sphi 0, %s124
    %s139 = sphi 0, %s125
    %s143 = sphi 0, %s143
    %s145 = sphi 0, %s143
    %s146 = sphi 0, %s145
    %s160 = sphi 0, %s146
    %s164 = sphi 0, %s164
    %s166 = sphi 0, %s164
    %s167 = sphi 0, %s166
    %s181 = sphi 0, %s167
    %s187 = sphi 0, %s189
    %s190 = sphi 0, %s187
    %s191 = sphi 0, %s190
    %s207 = sphi 0, %s191
  $region4: #{resblocknet_forward.1} parent=0 // loop_header_branch
    %16 = sbr.rel (%p14) target = $region8
  $region5: #{resblocknet_forward.1} parent=0 // loop_body
    %s18 = ssub.s32 %s13, 1
    %s19 = ssub.s32 %s13, 2
    %s26 = sadd.s32 1, %s21
    %p27 = scmp.ge.s32.totalorder %s26, 16
    %s28 = scalar_select %p27, 0, %s26
    %s29 = sadd.s32 1, %s20
    %s30 = scalar_select %p27, %s29, %s20
    %p31 = scmp.ge.s32.totalorder %s30, 2
    %s32 = scalar_select %p31, 0, %s30
    %s33 = ssub.s32 %s20, %s32
    %p34 = scmp.eq.s32.totalorder %s33, 0
    %s36 = sadd.s32 %s35, 1
    %s37 = scalar_select %p34, %s35, %s36
    %p40 = pneg %p34
    %p41 = scmp.eq.s32.totalorder %s13, 31
    %p42 = por %p40, %p41
    %p43 = scmp.ne.s32.totalorder %s35, %s38
    %p44 = scmp.eq.s32.totalorder %s13, 0
    %p45 = por %p43, %p44
    %p46 = scmp.ne.s32.totalorder %s35, %s38
    %p47 = scmp.eq.s32.totalorder %s18, 31
    %p48 = por %p46, %p47
    %p49 = scmp.ne.s32.totalorder %s38, %s39
    %p50 = scmp.eq.s32.totalorder %s18, 0
    %p51 = por %p49, %p50
    %p52 = scmp.ne.s32.totalorder %s38, %s39
    %p53 = scmp.eq.s32.totalorder %s19, 31
    %p54 = por %p52, %p53
    %p56 = scmp.ne.s32.totalorder %s39, %s55
    %p57 = scmp.eq.s32.totalorder %s19, 0
    %p58 = por %p56, %p57
    %s60 = sadd.s32 %s59, 1
    %p63 = scmp.eq.s32.totalorder %s13, 31
    %p64 = scmp.ne.s32.totalorder %s59, %s61
    %p65 = scmp.eq.s32.totalorder %s13, 0
    %p66 = por %p64, %p65
    %p67 = scmp.ne.s32.totalorder %s59, %s61
    %p68 = scmp.eq.s32.totalorder %s18, 31
    %p69 = por %p67, %p68
    %p70 = scmp.ne.s32.totalorder %s61, %s62
    %p71 = scmp.eq.s32.totalorder %s18, 0
    %p72 = por %p70, %p71
    %p73 = scmp.ne.s32.totalorder %s61, %s62
    %p74 = scmp.eq.s32.totalorder %s19, 31
    %p75 = por %p73, %p74
    %p77 = scmp.ne.s32.totalorder %s62, %s76
    %p78 = scmp.eq.s32.totalorder %s19, 0
    %p79 = por %p77, %p78
    %s81 = sadd.s32 %s80, 1
    %p84 = scmp.eq.s32.totalorder %s13, 31
    %p85 = scmp.ne.s32.totalorder %s80, %s82
    %p86 = scmp.eq.s32.totalorder %s13, 0
    %p87 = por %p85, %p86
    %p88 = scmp.ne.s32.totalorder %s80, %s82
    %p89 = scmp.eq.s32.totalorder %s18, 31
    %p90 = por %p88, %p89
    %p91 = scmp.ne.s32.totalorder %s82, %s83
    %p92 = scmp.eq.s32.totalorder %s18, 0
    %p93 = por %p91, %p92
    %p94 = scmp.ne.s32.totalorder %s82, %s83
    %p95 = scmp.eq.s32.totalorder %s19, 31
    %p96 = por %p94, %p95
    %p98 = scmp.ne.s32.totalorder %s83, %s97
    %p99 = scmp.eq.s32.totalorder %s19, 0
    %p100 = por %p98, %p99
    %s102 = sadd.s32 %s101, 1
    %p105 = scmp.eq.s32.totalorder %s13, 31
    %p106 = scmp.ne.s32.totalorder %s101, %s103
    %p107 = scmp.eq.s32.totalorder %s13, 0
    %p108 = por %p106, %p107
    %p109 = scmp.ne.s32.totalorder %s101, %s103
    %p110 = scmp.eq.s32.totalorder %s18, 31
    %p111 = por %p109, %p110
    %p112 = scmp.ne.s32.totalorder %s103, %s104
    %p113 = scmp.eq.s32.totalorder %s18, 0
    %p114 = por %p112, %p113
    %p115 = scmp.ne.s32.totalorder %s103, %s104
    %p116 = scmp.eq.s32.totalorder %s19, 31
    %p117 = por %p115, %p116
    %p119 = scmp.ne.s32.totalorder %s104, %s118
    %p120 = scmp.eq.s32.totalorder %s19, 0
    %p121 = por %p119, %p120
    %s123 = sadd.s32 %s122, 1
    %p126 = scmp.eq.s32.totalorder %s13, 31
    %p127 = scmp.ne.s32.totalorder %s122, %s124
    %p128 = scmp.eq.s32.totalorder %s13, 0
    %p129 = por %p127, %p128
    %p130 = scmp.ne.s32.totalorder %s122, %s124
    %p131 = scmp.eq.s32.totalorder %s18, 31
    %p132 = por %p130, %p131
    %p133 = scmp.ne.s32.totalorder %s124, %s125
    %p134 = scmp.eq.s32.totalorder %s18, 0
    %p135 = por %p133, %p134
    %p136 = scmp.ne.s32.totalorder %s124, %s125
    %p137 = scmp.eq.s32.totalorder %s19, 31
    %p138 = por %p136, %p137
    %p140 = scmp.ne.s32.totalorder %s125, %s139
    %p141 = scmp.eq.s32.totalorder %s19, 0
    %p142 = por %p140, %p141
    %s144 = sadd.s32 %s143, 1
    %p147 = scmp.eq.s32.totalorder %s13, 31
    %p148 = scmp.ne.s32.totalorder %s143, %s145
    %p149 = scmp.eq.s32.totalorder %s13, 0
    %p150 = por %p148, %p149
    %p151 = scmp.ne.s32.totalorder %s143, %s145
    %p152 = scmp.eq.s32.totalorder %s18, 31
    %p153 = por %p151, %p152
    %p154 = scmp.ne.s32.totalorder %s145, %s146
    %p155 = scmp.eq.s32.totalorder %s18, 0
    %p156 = por %p154, %p155
    %p157 = scmp.ne.s32.totalorder %s145, %s146
    %p158 = scmp.eq.s32.totalorder %s19, 31
    %p159 = por %p157, %p158
    %p161 = scmp.ne.s32.totalorder %s146, %s160
    %p162 = scmp.eq.s32.totalorder %s19, 0
    %p163 = por %p161, %p162
    %s165 = sadd.s32 %s164, 1
    %p168 = scmp.eq.s32.totalorder %s13, 31
    %p169 = scmp.ne.s32.totalorder %s164, %s166
    %p170 = scmp.eq.s32.totalorder %s13, 0
    %p171 = por %p169, %p170
    %p172 = scmp.ne.s32.totalorder %s164, %s166
    %p173 = scmp.eq.s32.totalorder %s18, 31
    %p174 = por %p172, %p173
    %p175 = scmp.ne.s32.totalorder %s166, %s167
    %p176 = scmp.eq.s32.totalorder %s18, 0
    %p177 = por %p175, %p176
    %p178 = scmp.ne.s32.totalorder %s166, %s167
    %p179 = scmp.eq.s32.totalorder %s19, 31
    %p180 = por %p178, %p179
    %p182 = scmp.ne.s32.totalorder %s167, %s181
    %p183 = scmp.eq.s32.totalorder %s19, 0
    %p184 = por %p182, %p183
    %s185 = ssub.s32 %s20, %s32
    %p186 = scmp.eq.s32.totalorder %s185, 0
    %s188 = sadd.s32 %s187, 1
    %s189 = scalar_select %p186, %s187, %s188
    %p192 = pneg %p186
    %p193 = scmp.eq.s32.totalorder %s13, 31
    %p194 = por %p192, %p193
    %p195 = scmp.ne.s32.totalorder %s187, %s190
    %p196 = scmp.eq.s32.totalorder %s13, 0
    %p197 = por %p195, %p196
    %p198 = scmp.ne.s32.totalorder %s187, %s190
    %p199 = scmp.eq.s32.totalorder %s18, 31
    %p200 = por %p198, %p199
    %p201 = scmp.ne.s32.totalorder %s190, %s191
    %p202 = scmp.eq.s32.totalorder %s18, 0
    %p203 = por %p201, %p202
    %p204 = scmp.ne.s32.totalorder %s190, %s191
    %p205 = scmp.eq.s32.totalorder %s19, 31
    %p206 = por %p204, %p205
    %p208 = scmp.ne.s32.totalorder %s191, %s207
    %p209 = scmp.eq.s32.totalorder %s19, 0
    %p210 = por %p208, %p209
    %p211 = scmp.le.s32.totalorder 1, %s13
    %p212 = scmp.lt.s32.totalorder %s13, 33
    %p213 = pnand %p211, %p212
    %p214 = pneg %p213
    // Predicated region
    $region9: #{resblocknet_forward.1} parent=5 // pred_check
      _
    $region10: #{resblocknet_forward.1} parent=5 // pred_check_branch
      %216 = sbr.rel (%p213) target = $region12
    $region11: #{resblocknet_forward.1} parent=5 // pred_region
      %s217 = ssub.s32 %s13, 1
      // Predicated region
      $region13: #{resblocknet_forward.1} parent=11 // pred_check
        %p218 = pneg %p72
      $region14: #{resblocknet_forward.1} parent=11 // pred_check_branch
        %220 = sbr.rel (%p218) target = $region16
      $region15: #{resblocknet_forward.1} parent=11 // pred_region
        _
      $region16: #{resblocknet_forward.1} parent=11 // pred_fallthru
        _
      // Predicated region
      $region17: #{resblocknet_forward.1} parent=11 // pred_check
        %p221 = pneg %p93
      $region18: #{resblocknet_forward.1} parent=11 // pred_check_branch
        %223 = sbr.rel (%p221) target = $region20
      $region19: #{resblocknet_forward.1} parent=11 // pred_region
        _
      $region20: #{resblocknet_forward.1} parent=11 // pred_fallthru
        _
      // Predicated region
      $region21: #{resblocknet_forward.1} parent=11 // pred_check
        %p224 = pneg %p114
      $region22: #{resblocknet_forward.1} parent=11 // pred_check_branch
        %226 = sbr.rel (%p224) target = $region24
      $region23: #{resblocknet_forward.1} parent=11 // pred_region
        _
      $region24: #{resblocknet_forward.1} parent=11 // pred_fallthru
        _
      // Predicated region
      $region25: #{resblocknet_forward.1} parent=11 // pred_check
        %p227 = pneg %p135
      $region26: #{resblocknet_forward.1} parent=11 // pred_check_branch
        %229 = sbr.rel (%p227) target = $region28
      $region27: #{resblocknet_forward.1} parent=11 // pred_region
        _
      $region28: #{resblocknet_forward.1} parent=11 // pred_fallthru
        _
      // Predicated region
      $region29: #{resblocknet_forward.1} parent=11 // pred_check
        %p230 = pneg %p156
      $region30: #{resblocknet_forward.1} parent=11 // pred_check_branch
        %232 = sbr.rel (%p230) target = $region32
      $region31: #{resblocknet_forward.1} parent=11 // pred_region
        _
      $region32: #{resblocknet_forward.1} parent=11 // pred_fallthru
        _
      // Predicated region
      $region33: #{resblocknet_forward.1} parent=11 // pred_check
        %p233 = pneg %p177
      $region34: #{resblocknet_forward.1} parent=11 // pred_check_branch
        %235 = sbr.rel (%p233) target = $region36
      $region35: #{resblocknet_forward.1} parent=11 // pred_region
        _
      $region36: #{resblocknet_forward.1} parent=11 // pred_fallthru
        _
    $region12: #{resblocknet_forward.1} parent=5 // pred_fallthru
      _
    %p236 = scmp.lt.s32.totalorder %s13, 32
    // Predicated region
    $region37: #{resblocknet_forward.1} parent=5 // pred_check
      %p237 = pneg %p236
    $region38: #{resblocknet_forward.1} parent=5 // pred_check_branch
      %239 = sbr.rel (%p237) target = $region40
    $region39: #{resblocknet_forward.1} parent=5 // pred_region
      // Predicated region
      $region41: #{resblocknet_forward.1} parent=39 // pred_check
        %p240 = pneg %p45
      $region42: #{resblocknet_forward.1} parent=39 // pred_check_branch
        %242 = sbr.rel (%p240) target = $region44
      $region43: #{resblocknet_forward.1} parent=39 // pred_region
        %p243 = scmp.lt.s32.totalorder %s20, 1
        %s244 = scalar_select %p243, %s20, 1
        %s245 = smul.addr %s244, 54
        %s246 = smul.addr %s245, 8
        %s247 = scalar_lea.vmem %s0, %s246
      $region44: #{resblocknet_forward.1} parent=39 // pred_fallthru
        _
    $region40: #{resblocknet_forward.1} parent=5 // pred_fallthru
      _
    %p248 = scmp.le.s32.totalorder 1, %s13
    %p249 = scmp.lt.s32.totalorder %s13, 33
    %p250 = pnand %p248, %p249
    %p251 = pneg %p250
    // Predicated region
    $region45: #{resblocknet_forward.1} parent=5 // pred_check
      _
    $region46: #{resblocknet_forward.1} parent=5 // pred_check_branch
      %253 = sbr.rel (%p250) target = $region48
    $region47: #{resblocknet_forward.1} parent=5 // pred_region
      %s254 = ssub.s32 %s13, 1
      %p255 = scmp.lt.s32.totalorder %s22, 1
      %s256 = scalar_select %p255, %s22, 1
      %s257 = smul.addr %s256, 54
      %s258 = smul.addr %s257, 8
      %s259 = scalar_lea.vmem %s0, %s258
      %p260 = pneg %p51
      %p261 = pneg %p48
      %p262 = pneg %p72
      %p263 = pneg %p69
      %p264 = pneg %p93
      %p265 = pneg %p90
      %p266 = pneg %p114
      %p267 = pneg %p111
      %p268 = pneg %p135
      %p269 = pneg %p132
      %p270 = pneg %p156
      %p271 = pneg %p153
      %p272 = pneg %p177
      %p273 = pneg %p174
      %p274 = pneg %p203
      %p275 = pneg %p200
      %p276 = scmp.lt.s32.totalorder %s22, 1
      %s277 = scalar_select %p276, %s22, 1
      %s278 = smul.addr %s277, 32
      %s279 = smul.addr %s278, 8
      %s280 = scalar_lea.vmem %s7, %s279
      %p281 = scmp.lt.s32.totalorder %s22, 1
      %s282 = scalar_select %p281, %s22, 1
      %s283 = smul.addr %s282, 54
      %s284 = smul.addr %s283, 8
      %s285 = scalar_lea.vmem %s0, %s284
      %p286 = scmp.lt.s32.totalorder %s22, 1
      %s287 = scalar_select %p286, %s22, 1
      %s288 = smul.addr %s287, 32
      %s289 = smul.addr %s288, 8
      %s290 = scalar_lea.vmem %s7, %s289
      %p292 = scmp.eq.s32.totalorder %s23, 0
      // Predicated region
      $region49: #{resblocknet_forward.1} parent=47 // pred_check
        %p293 = pneg %p292
      $region50: #{resblocknet_forward.1} parent=47 // pred_check_branch
        %295 = sbr.rel (%p293) target = $region52
      $region51: #{resblocknet_forward.1} parent=47 // pred_region
        %vm296 = vcmask 523264
        %297 = vst.msk [vmem:[#allocation2] sm:$0xff] %vm296, 0.0
        %298 = vst.msk [vmem:[#allocation2 + $0x8] sm:$0xff] %vm296, 0.0
        %vm299 = vcmask 517120
        %300 = vst.msk [vmem:[#allocation2 + $0x10] sm:$0x3] %vm299, 0.0
        %301 = vst.msk [vmem:[#allocation2 + $0x18] sm:$0xff] %vm296, 0.0
        %302 = vst.msk [vmem:[#allocation2 + $0x20] sm:$0xff] %vm296, 0.0
        %303 = vst.msk [vmem:[#allocation2 + $0x28] sm:$0x3] %vm299, 0.0
        %304 = vst.msk [vmem:[#allocation2 + $0x30] sm:$0xff] %vm296, 0.0
        %305 = vst.msk [vmem:[#allocation2 + $0x38] sm:$0xff] %vm296, 0.0
        %306 = vst.msk [vmem:[#allocation2 + $0x40] sm:$0x3] %vm299, 0.0
        %307 = vst.msk [vmem:[#allocation2 + $0x48] sm:$0xff] %vm296, 0.0
        %308 = vst.msk [vmem:[#allocation2 + $0x50] sm:$0xff] %vm296, 0.0
        %309 = vst.msk [vmem:[#allocation2 + $0x58] sm:$0x3] %vm299, 0.0
        %310 = vst.msk [vmem:[#allocation2 + $0x60] sm:$0xff] %vm296, 0.0
        %311 = vst.msk [vmem:[#allocation2 + $0x68] sm:$0xff] %vm296, 0.0
        %312 = vst.msk [vmem:[#allocation2 + $0x70] sm:$0x3] %vm299, 0.0
        %313 = vst.msk [vmem:[#allocation2 + $0x78] sm:$0xff] %vm296, 0.0
        %314 = vst.msk [vmem:[#allocation2 + $0x80] sm:$0xff] %vm296, 0.0
        %315 = vst.msk [vmem:[#allocation2 + $0x88] sm:$0x3] %vm299, 0.0
        %316 = vst.msk [vmem:[#allocation2 + $0x90] sm:$0xff] %vm296, 0.0
        %317 = vst.msk [vmem:[#allocation2 + $0x98] sm:$0xff] %vm296, 0.0
        %318 = vst.msk [vmem:[#allocation2 + $0xa0] sm:$0x3] %vm299, 0.0
        %319 = vst.msk [vmem:[#allocation2 + $0xa8] sm:$0xff] %vm296, 0.0
        %320 = vst.msk [vmem:[#allocation2 + $0xb0] sm:$0xff] %vm296, 0.0
        %321 = vst.msk [vmem:[#allocation2 + $0xb8] sm:$0x3] %vm299, 0.0
        %322 = vst.msk [vmem:[#allocation2 + $0xc0] sm:$0xff] %vm296, 0.0
        %323 = vst.msk [vmem:[#allocation2 + $0xc8] sm:$0xff] %vm296, 0.0
        %324 = vst.msk [vmem:[#allocation2 + $0xd0] sm:$0x3] %vm299, 0.0
        %325 = vst.msk [vmem:[#allocation2 + $0xd8] sm:$0xff] %vm296, 0.0
        %326 = vst.msk [vmem:[#allocation2 + $0xe0] sm:$0xff] %vm296, 0.0
        %327 = vst.msk [vmem:[#allocation2 + $0xe8] sm:$0x3] %vm299, 0.0
        %328 = vst.msk [vmem:[#allocation2 + $0xf0] sm:$0xff] %vm296, 0.0
        %329 = vst.msk [vmem:[#allocation2 + $0xf8] sm:$0xff] %vm296, 0.0
        %330 = vst.msk [vmem:[#allocation2 + $0x100] sm:$0x3] %vm299, 0.0
        %331 = vst.msk [vmem:[#allocation2 + $0x108] sm:$0xff] %vm296, 0.0
        %332 = vst.msk [vmem:[#allocation2 + $0x110] sm:$0xff] %vm296, 0.0
        %333 = vst.msk [vmem:[#allocation2 + $0x118] sm:$0x3] %vm299, 0.0
        %334 = vst.msk [vmem:[#allocation2 + $0x120] sm:$0xff] %vm296, 0.0
        %335 = vst.msk [vmem:[#allocation2 + $0x128] sm:$0xff] %vm296, 0.0
        %336 = vst.msk [vmem:[#allocation2 + $0x130] sm:$0x3] %vm299, 0.0
        %337 = vst.msk [vmem:[#allocation2 + $0x138] sm:$0xff] %vm296, 0.0
        %338 = vst.msk [vmem:[#allocation2 + $0x140] sm:$0xff] %vm296, 0.0
        %339 = vst.msk [vmem:[#allocation2 + $0x148] sm:$0x3] %vm299, 0.0
        %340 = vst.msk [vmem:[#allocation2 + $0x150] sm:$0xff] %vm296, 0.0
        %341 = vst.msk [vmem:[#allocation2 + $0x158] sm:$0xff] %vm296, 0.0
        %342 = vst.msk [vmem:[#allocation2 + $0x160] sm:$0x3] %vm299, 0.0
        %343 = vst.msk [vmem:[#allocation2 + $0x168] sm:$0xff] %vm296, 0.0
        %344 = vst.msk [vmem:[#allocation2 + $0x170] sm:$0xff] %vm296, 0.0
        %345 = vst.msk [vmem:[#allocation2 + $0x178] sm:$0x3] %vm299, 0.0
        %346 = vst.msk [vmem:[#allocation2 + $0x180] sm:$0xff] %vm296, 0.0
        %347 = vst.msk [vmem:[#allocation2 + $0x188] sm:$0xff] %vm296, 0.0
        %348 = vst.msk [vmem:[#allocation2 + $0x190] sm:$0x3] %vm299, 0.0
        %349 = vst.msk [vmem:[#allocation2 + $0x198] sm:$0xff] %vm296, 0.0
        %350 = vst.msk [vmem:[#allocation2 + $0x1a0] sm:$0xff] %vm296, 0.0
        %351 = vst.msk [vmem:[#allocation2 + $0x1a8] sm:$0x3] %vm299, 0.0
        %352 = vst.msk [vmem:[#allocation3] sm:$0xff] %vm296, 0.0
        %353 = vst.msk [vmem:[#allocation3 + $0x8] sm:$0xff] %vm296, 0.0
        %354 = vst.msk [vmem:[#allocation3 + $0x10] sm:$0x3] %vm299, 0.0
        %355 = vst.msk [vmem:[#allocation3 + $0x18] sm:$0xff] %vm296, 0.0
        %356 = vst.msk [vmem:[#allocation3 + $0x20] sm:$0xff] %vm296, 0.0
        %357 = vst.msk [vmem:[#allocation3 + $0x28] sm:$0x3] %vm299, 0.0
        %358 = vst.msk [vmem:[#allocation3 + $0x30] sm:$0xff] %vm296, 0.0
        %359 = vst.msk [vmem:[#allocation3 + $0x38] sm:$0xff] %vm296, 0.0
        %360 = vst.msk [vmem:[#allocation3 + $0x40] sm:$0x3] %vm299, 0.0
        %361 = vst.msk [vmem:[#allocation3 + $0x48] sm:$0xff] %vm296, 0.0
        %362 = vst.msk [vmem:[#allocation3 + $0x50] sm:$0xff] %vm296, 0.0
        %363 = vst.msk [vmem:[#allocation3 + $0x58] sm:$0x3] %vm299, 0.0
        %364 = vst.msk [vmem:[#allocation3 + $0x60] sm:$0xff] %vm296, 0.0
        %365 = vst.msk [vmem:[#allocation3 + $0x68] sm:$0xff] %vm296, 0.0
        %366 = vst.msk [vmem:[#allocation3 + $0x70] sm:$0x3] %vm299, 0.0
        %367 = vst.msk [vmem:[#allocation3 + $0x78] sm:$0xff] %vm296, 0.0
        %368 = vst.msk [vmem:[#allocation3 + $0x80] sm:$0xff] %vm296, 0.0
        %369 = vst.msk [vmem:[#allocation3 + $0x88] sm:$0x3] %vm299, 0.0
        %370 = vst.msk [vmem:[#allocation3 + $0x90] sm:$0xff] %vm296, 0.0
        %371 = vst.msk [vmem:[#allocation3 + $0x98] sm:$0xff] %vm296, 0.0
        %372 = vst.msk [vmem:[#allocation3 + $0xa0] sm:$0x3] %vm299, 0.0
        %373 = vst.msk [vmem:[#allocation3 + $0xa8] sm:$0xff] %vm296, 0.0
        %374 = vst.msk [vmem:[#allocation3 + $0xb0] sm:$0xff] %vm296, 0.0
        %375 = vst.msk [vmem:[#allocation3 + $0xb8] sm:$0x3] %vm299, 0.0
        %376 = vst.msk [vmem:[#allocation3 + $0xc0] sm:$0xff] %vm296, 0.0
        %377 = vst.msk [vmem:[#allocation3 + $0xc8] sm:$0xff] %vm296, 0.0
        %378 = vst.msk [vmem:[#allocation3 + $0xd0] sm:$0x3] %vm299, 0.0
        %379 = vst.msk [vmem:[#allocation3 + $0xd8] sm:$0xff] %vm296, 0.0
        %380 = vst.msk [vmem:[#allocation3 + $0xe0] sm:$0xff] %vm296, 0.0
        %381 = vst.msk [vmem:[#allocation3 + $0xe8] sm:$0x3] %vm299, 0.0
        %382 = vst.msk [vmem:[#allocation3 + $0xf0] sm:$0xff] %vm296, 0.0
        %383 = vst.msk [vmem:[#allocation3 + $0xf8] sm:$0xff] %vm296, 0.0
        %384 = vst.msk [vmem:[#allocation3 + $0x100] sm:$0x3] %vm299, 0.0
        %385 = vst.msk [vmem:[#allocation3 + $0x108] sm:$0xff] %vm296, 0.0
        %386 = vst.msk [vmem:[#allocation3 + $0x110] sm:$0xff] %vm296, 0.0
        %387 = vst.msk [vmem:[#allocation3 + $0x118] sm:$0x3] %vm299, 0.0
        %388 = vst.msk [vmem:[#allocation3 + $0x120] sm:$0xff] %vm296, 0.0
        %389 = vst.msk [vmem:[#allocation3 + $0x128] sm:$0xff] %vm296, 0.0
        %390 = vst.msk [vmem:[#allocation3 + $0x130] sm:$0x3] %vm299, 0.0
        %391 = vst.msk [vmem:[#allocation3 + $0x138] sm:$0xff] %vm296, 0.0
        %392 = vst.msk [vmem:[#allocation3 + $0x140] sm:$0xff] %vm296, 0.0
        %393 = vst.msk [vmem:[#allocation3 + $0x148] sm:$0x3] %vm299, 0.0
        %394 = vst.msk [vmem:[#allocation3 + $0x150] sm:$0xff] %vm296, 0.0
        %395 = vst.msk [vmem:[#allocation3 + $0x158] sm:$0xff] %vm296, 0.0
        %396 = vst.msk [vmem:[#allocation3 + $0x160] sm:$0x3] %vm299, 0.0
        %397 = vst.msk [vmem:[#allocation3 + $0x168] sm:$0xff] %vm296, 0.0
        %398 = vst.msk [vmem:[#allocation3 + $0x170] sm:$0xff] %vm296, 0.0
        %399 = vst.msk [vmem:[#allocation3 + $0x178] sm:$0x3] %vm299, 0.0
        %400 = vst.msk [vmem:[#allocation3 + $0x180] sm:$0xff] %vm296, 0.0
        %401 = vst.msk [vmem:[#allocation3 + $0x188] sm:$0xff] %vm296, 0.0
        %402 = vst.msk [vmem:[#allocation3 + $0x190] sm:$0x3] %vm299, 0.0
        %403 = vst.msk [vmem:[#allocation3 + $0x198] sm:$0xff] %vm296, 0.0
        %404 = vst.msk [vmem:[#allocation3 + $0x1a0] sm:$0xff] %vm296, 0.0
        %405 = vst.msk [vmem:[#allocation3 + $0x1a8] sm:$0x3] %vm299, 0.0
        %v406 = vld [vmem:[%s285] sm:$0xff]
        %v407 = vld [vmem:[%s285 + $0x8] sm:$0xff]
        %v408 = vld [vmem:[%s285 + $0x10] sm:$0x3]
        %v409 = vld [vmem:[%s285 + $0x18] sm:$0xff]
        %v410 = vld [vmem:[%s285 + $0x20] sm:$0xff]
        %v411 = vld [vmem:[%s285 + $0x28] sm:$0x3]
        %v412 = vld [vmem:[%s285 + $0x30] sm:$0xff]
        %v413 = vld [vmem:[%s285 + $0x38] sm:$0xff]
        %v414 = vld [vmem:[%s285 + $0x40] sm:$0x3]
        %v415 = vld [vmem:[%s285 + $0x48] sm:$0xff]
        %v416 = vld [vmem:[%s285 + $0x50] sm:$0xff]
        %v417 = vld [vmem:[%s285 + $0x58] sm:$0x3]
        %v418 = vld [vmem:[%s285 + $0x60] sm:$0xff]
        %v419 = vld [vmem:[%s285 + $0x68] sm:$0xff]
        %v420 = vld [vmem:[%s285 + $0x70] sm:$0x3]
        %v421 = vld [vmem:[%s285 + $0x78] sm:$0xff]
        %v422 = vld [vmem:[%s285 + $0x80] sm:$0xff]
        %v423 = vld [vmem:[%s285 + $0x88] sm:$0x3]
        %v424 = vld [vmem:[%s285 + $0x90] sm:$0xff]
        %v425 = vld [vmem:[%s285 + $0x98] sm:$0xff]
        %v426 = vld [vmem:[%s285 + $0xa0] sm:$0x3]
        %v427 = vld [vmem:[%s285 + $0xa8] sm:$0xff]
        %v428 = vld [vmem:[%s285 + $0xb0] sm:$0xff]
        %v429 = vld [vmem:[%s285 + $0xb8] sm:$0x3]
        %v430 = vld [vmem:[%s285 + $0xc0] sm:$0xff]
        %v431 = vld [vmem:[%s285 + $0xc8] sm:$0xff]
        %v432 = vld [vmem:[%s285 + $0xd0] sm:$0x3]
        %v433 = vld [vmem:[%s285 + $0xd8] sm:$0xff]
        %v434 = vld [vmem:[%s285 + $0xe0] sm:$0xff]
        %v435 = vld [vmem:[%s285 + $0xe8] sm:$0x3]
        %v436 = vld [vmem:[%s285 + $0xf0] sm:$0xff]
        %v437 = vld [vmem:[%s285 + $0xf8] sm:$0xff]
        %v438 = vld [vmem:[%s285 + $0x100] sm:$0x3]
        %v439 = vld [vmem:[%s285 + $0x108] sm:$0xff]
        %v440 = vld [vmem:[%s285 + $0x110] sm:$0xff]
        %v441 = vld [vmem:[%s285 + $0x118] sm:$0x3]
        %v442 = vld [vmem:[%s285 + $0x120] sm:$0xff]
        %v443 = vld [vmem:[%s285 + $0x128] sm:$0xff]
        %v444 = vld [vmem:[%s285 + $0x130] sm:$0x3]
        %v445 = vld [vmem:[%s285 + $0x138] sm:$0xff]
        %v446 = vld [vmem:[%s285 + $0x140] sm:$0xff]
        %v447 = vld [vmem:[%s285 + $0x148] sm:$0x3]
        %v448 = vld [vmem:[%s285 + $0x150] sm:$0xff]
        %v449 = vld [vmem:[%s285 + $0x158] sm:$0xff]
        %v450 = vld [vmem:[%s285 + $0x160] sm:$0x3]
        %v451 = vld [vmem:[%s285 + $0x168] sm:$0xff]
        %v452 = vld [vmem:[%s285 + $0x170] sm:$0xff]
        %v453 = vld [vmem:[%s285 + $0x178] sm:$0x3]
        %v454 = vld [vmem:[%s285 + $0x180] sm:$0xff]
        %v455 = vld [vmem:[%s285 + $0x188] sm:$0xff]
        %v456 = vld [vmem:[%s285 + $0x190] sm:$0x3]
        %v457 = vld [vmem:[%s285 + $0x198] sm:$0xff]
        %v458 = vld [vmem:[%s285 + $0x1a0] sm:$0xff]
        %v459 = vld [vmem:[%s285 + $0x1a8] sm:$0x3]
        %v460 = vpack.c.bf16 %v407, %v406
        %v461 = vpack.c.bf16 %v410, %v409
        %v462 = vpack.c.bf16 %v413, %v412
        %v463 = vpack.c.bf16 %v416, %v415
        %v464 = vpack.c.bf16 %v419, %v418
        %v465 = vpack.c.bf16 %v422, %v421
        %v466 = vpack.c.bf16 %v425, %v424
        %v467 = vpack.c.bf16 %v428, %v427
        %v468 = vpack.c.bf16 %v431, %v430
        %v469 = vpack.c.bf16 %v434, %v433
        %v470 = vpack.c.bf16 %v437, %v436
        %v471 = vpack.c.bf16 %v440, %v439
        %v472 = vpack.c.bf16 %v443, %v442
        %v473 = vpack.c.bf16 %v446, %v445
        %v474 = vpack.c.bf16 %v449, %v448
        %v475 = vpack.c.bf16 %v452, %v451
        %v476 = vpack.c.bf16 %v408, %v408
        %v477 = vpack.c.bf16 %v411, %v411
        %v478 = vpack.c.bf16 %v414, %v414
        %v479 = vpack.c.bf16 %v417, %v417
        %v480 = vpack.c.bf16 %v420, %v420
        %v481 = vpack.c.bf16 %v423, %v423
        %v482 = vpack.c.bf16 %v426, %v426
        %v483 = vpack.c.bf16 %v429, %v429
        %v484 = vpack.c.bf16 %v432, %v432
        %v485 = vpack.c.bf16 %v435, %v435
        %v486 = vpack.c.bf16 %v438, %v438
        %v487 = vpack.c.bf16 %v441, %v441
        %v488 = vpack.c.bf16 %v444, %v444
        %v489 = vpack.c.bf16 %v447, %v447
        %v490 = vpack.c.bf16 %v450, %v450
        %v491 = vpack.c.bf16 %v453, %v453
        %vm492 = vsmask.f32 7424
        %v494 = vshrl.u32 %v460, 16
        %v496 = vshll.u32 %v460, 16
        %v498 = vrot.slane %v496, 1
        %v499 = vor.u32 %v494, %v498
        %v501 = vshll.u32 %v476, 16
        %v503 = vrot.slane %v501, 1
        %v504 = vsel %vm492, %v499, %v503
        %v506 = vshrl.u32 %v461, 16
        %v508 = vshll.u32 %v461, 16
        %v510 = vrot.slane %v508, 1
        %v511 = vor.u32 %v506, %v510
        %v513 = vshll.u32 %v477, 16
        %v515 = vrot.slane %v513, 1
        %v516 = vsel %vm492, %v511, %v515
        %v518 = vshrl.u32 %v462, 16
        %v520 = vshll.u32 %v462, 16
        %v522 = vrot.slane %v520, 1
        %v523 = vor.u32 %v518, %v522
        %v525 = vshll.u32 %v478, 16
        %v527 = vrot.slane %v525, 1
        %v528 = vsel %vm492, %v523, %v527
        %v530 = vshrl.u32 %v463, 16
        %v532 = vshll.u32 %v463, 16
        %v534 = vrot.slane %v532, 1
        %v535 = vor.u32 %v530, %v534
        %v537 = vshll.u32 %v479, 16
        %v539 = vrot.slane %v537, 1
        %v540 = vsel %vm492, %v535, %v539
        %v542 = vshrl.u32 %v464, 16
        %v544 = vshll.u32 %v464, 16
        %v546 = vrot.slane %v544, 1
        %v547 = vor.u32 %v542, %v546
        %v549 = vshll.u32 %v480, 16
        %v551 = vrot.slane %v549, 1
        %v552 = vsel %vm492, %v547, %v551
        %v554 = vshrl.u32 %v465, 16
        %v556 = vshll.u32 %v465, 16
        %v558 = vrot.slane %v556, 1
        %v559 = vor.u32 %v554, %v558
        %v561 = vshll.u32 %v481, 16
        %v563 = vrot.slane %v561, 1
        %v564 = vsel %vm492, %v559, %v563
        %v566 = vshrl.u32 %v466, 16
        %v568 = vshll.u32 %v466, 16
        %v570 = vrot.slane %v568, 1
        %v571 = vor.u32 %v566, %v570
        %v573 = vshll.u32 %v482, 16
        %v575 = vrot.slane %v573, 1
        %v576 = vsel %vm492, %v571, %v575
        %v578 = vshrl.u32 %v467, 16
        %v580 = vshll.u32 %v467, 16
        %v582 = vrot.slane %v580, 1
        %v583 = vor.u32 %v578, %v582
        %v585 = vshll.u32 %v483, 16
        %v587 = vrot.slane %v585, 1
        %v588 = vsel %vm492, %v583, %v587
        %v590 = vshrl.u32 %v468, 16
        %v592 = vshll.u32 %v468, 16
        %v594 = vrot.slane %v592, 1
        %v595 = vor.u32 %v590, %v594
        %v597 = vshll.u32 %v484, 16
        %v599 = vrot.slane %v597, 1
        %v600 = vsel %vm492, %v595, %v599
        %v602 = vshrl.u32 %v469, 16
        %v604 = vshll.u32 %v469, 16
        %v606 = vrot.slane %v604, 1
        %v607 = vor.u32 %v602, %v606
        %v609 = vshll.u32 %v485, 16
        %v611 = vrot.slane %v609, 1
        %v612 = vsel %vm492, %v607, %v611
        %v614 = vshrl.u32 %v470, 16
        %v616 = vshll.u32 %v470, 16
        %v618 = vrot.slane %v616, 1
        %v619 = vor.u32 %v614, %v618
        %v621 = vshll.u32 %v486, 16
        %v623 = vrot.slane %v621, 1
        %v624 = vsel %vm492, %v619, %v623
        %v626 = vshrl.u32 %v471, 16
        %v628 = vshll.u32 %v471, 16
        %v630 = vrot.slane %v628, 1
        %v631 = vor.u32 %v626, %v630
        %v633 = vshll.u32 %v487, 16
        %v635 = vrot.slane %v633, 1
        %v636 = vsel %vm492, %v631, %v635
        %v638 = vshrl.u32 %v472, 16
        %v640 = vshll.u32 %v472, 16
        %v642 = vrot.slane %v640, 1
        %v643 = vor.u32 %v638, %v642
        %v645 = vshll.u32 %v488, 16
        %v647 = vrot.slane %v645, 1
        %v648 = vsel %vm492, %v643, %v647
        %v650 = vshrl.u32 %v473, 16
        %v652 = vshll.u32 %v473, 16
        %v654 = vrot.slane %v652, 1
        %v655 = vor.u32 %v650, %v654
        %v657 = vshll.u32 %v489, 16
        %v659 = vrot.slane %v657, 1
        %v660 = vsel %vm492, %v655, %v659
        %v662 = vshrl.u32 %v474, 16
        %v664 = vshll.u32 %v474, 16
        %v666 = vrot.slane %v664, 1
        %v667 = vor.u32 %v662, %v666
        %v669 = vshll.u32 %v490, 16
        %v671 = vrot.slane %v669, 1
        %v672 = vsel %vm492, %v667, %v671
        %v674 = vshrl.u32 %v475, 16
        %v676 = vshll.u32 %v475, 16
        %v678 = vrot.slane %v676, 1
        %v679 = vor.u32 %v674, %v678
        %v681 = vshll.u32 %v491, 16
        %v683 = vrot.slane %v681, 1
        %v684 = vsel %vm492, %v679, %v683
        %vm717 = vcmask 1046528
        %v718 = vrot.slane %v460, 1
        %v719 = vrot.slane %v476, 1
        %v720 = vsel %vm717, %v718, %v719
        %v721 = vrot.slane %v461, 1
        %v722 = vrot.slane %v477, 1
        %v723 = vsel %vm717, %v721, %v722
        %v724 = vrot.slane %v462, 1
        %v725 = vrot.slane %v478, 1
        %v726 = vsel %vm717, %v724, %v725
        %v727 = vrot.slane %v463, 1
        %v728 = vrot.slane %v479, 1
        %v729 = vsel %vm717, %v727, %v728
        %v730 = vrot.slane %v464, 1
        %v731 = vrot.slane %v480, 1
        %v732 = vsel %vm717, %v730, %v731
        %v733 = vrot.slane %v465, 1
        %v734 = vrot.slane %v481, 1
        %v735 = vsel %vm717, %v733, %v734
        %v736 = vrot.slane %v466, 1
        %v737 = vrot.slane %v482, 1
        %v738 = vsel %vm717, %v736, %v737
        %v739 = vrot.slane %v467, 1
        %v740 = vrot.slane %v483, 1
        %v741 = vsel %vm717, %v739, %v740
        %v742 = vrot.slane %v468, 1
        %v743 = vrot.slane %v484, 1
        %v744 = vsel %vm717, %v742, %v743
        %v745 = vrot.slane %v469, 1
        %v746 = vrot.slane %v485, 1
        %v747 = vsel %vm717, %v745, %v746
        %v748 = vrot.slane %v470, 1
        %v749 = vrot.slane %v486, 1
        %v750 = vsel %vm717, %v748, %v749
        %v751 = vrot.slane %v471, 1
        %v752 = vrot.slane %v487, 1
        %v753 = vsel %vm717, %v751, %v752
        %v754 = vrot.slane %v472, 1
        %v755 = vrot.slane %v488, 1
        %v756 = vsel %vm717, %v754, %v755
        %v757 = vrot.slane %v473, 1
        %v758 = vrot.slane %v489, 1
        %v759 = vsel %vm717, %v757, %v758
        %v760 = vrot.slane %v474, 1
        %v761 = vrot.slane %v490, 1
        %v762 = vsel %vm717, %v760, %v761
        %v763 = vrot.slane %v475, 1
        %v764 = vrot.slane %v491, 1
        %v765 = vsel %vm717, %v763, %v764
        %v766 = vpack.c.bf16 %v455, %v454
        %v767 = vpack.c.bf16 %v456, %v456
        %v769 = vshrl.u32 %v766, 16
        %v771 = vshll.u32 %v766, 16
        %v773 = vrot.slane %v771, 1
        %v774 = vor.u32 %v769, %v773
        %v776 = vshll.u32 %v767, 16
        %v778 = vrot.slane %v776, 1
        %v779 = vsel %vm492, %v774, %v778
        %v782 = vrot.slane %v766, 1
        %v783 = vrot.slane %v767, 1
        %v784 = vsel %vm717, %v782, %v783
        %v785 = vpack.c.bf16 %v458, %v457
        %v786 = vpack.c.bf16 %v459, %v459
        %v788 = vshrl.u32 %v785, 16
        %v790 = vshll.u32 %v785, 16
        %v792 = vrot.slane %v790, 1
        %v793 = vor.u32 %v788, %v792
        %v795 = vshll.u32 %v786, 16
        %v797 = vrot.slane %v795, 1
        %v798 = vsel %vm492, %v793, %v797
        %v801 = vrot.slane %v785, 1
        %v802 = vrot.slane %v786, 1
        %v803 = vsel %vm717, %v801, %v802
        %804 = vrot.lane.b32.xlu0 %v504, 8
        %v805 = vpop.permute.xlu0 %804
        %806 = vrot.lane.b32.xlu0 %v516, 8
        %v807 = vpop.permute.xlu0 %806
        %808 = vrot.lane.b32.xlu0 %v528, 8
        %v809 = vpop.permute.xlu0 %808
        %810 = vrot.lane.b32.xlu0 %v540, 8
        %v811 = vpop.permute.xlu0 %810
        %812 = vrot.lane.b32.xlu0 %v552, 8
        %v813 = vpop.permute.xlu0 %812
        %814 = vrot.lane.b32.xlu0 %v564, 8
        %v815 = vpop.permute.xlu0 %814
        %816 = vrot.lane.b32.xlu0 %v576, 8
        %v817 = vpop.permute.xlu0 %816
        %818 = vrot.lane.b32.xlu0 %v588, 8
        %v819 = vpop.permute.xlu0 %818
        %820 = vrot.lane.b32.xlu0 %v600, 8
        %v821 = vpop.permute.xlu0 %820
        %822 = vrot.lane.b32.xlu0 %v612, 8
        %v823 = vpop.permute.xlu0 %822
        %824 = vrot.lane.b32.xlu0 %v624, 8
        %v825 = vpop.permute.xlu0 %824
        %826 = vrot.lane.b32.xlu0 %v636, 8
        %v827 = vpop.permute.xlu0 %826
        %828 = vrot.lane.b32.xlu0 %v648, 8
        %v829 = vpop.permute.xlu0 %828
        %830 = vrot.lane.b32.xlu0 %v660, 8
        %v831 = vpop.permute.xlu0 %830
        %832 = vrot.lane.b32.xlu0 %v672, 8
        %v833 = vpop.permute.xlu0 %832
        %834 = vrot.lane.b32.xlu0 %v684, 8
        %v835 = vpop.permute.xlu0 %834
        %836 = vrot.lane.b32.xlu0 %v720, 16
        %v837 = vpop.permute.xlu0 %836
        %838 = vrot.lane.b32.xlu0 %v723, 16
        %v839 = vpop.permute.xlu0 %838
        %840 = vrot.lane.b32.xlu0 %v726, 16
        %v841 = vpop.permute.xlu0 %840
        %842 = vrot.lane.b32.xlu0 %v729, 16
        %v843 = vpop.permute.xlu0 %842
        %844 = vrot.lane.b32.xlu0 %v732, 16
        %v845 = vpop.permute.xlu0 %844
        %846 = vrot.lane.b32.xlu0 %v735, 16
        %v847 = vpop.permute.xlu0 %846
        %848 = vrot.lane.b32.xlu0 %v738, 16
        %v849 = vpop.permute.xlu0 %848
        %850 = vrot.lane.b32.xlu0 %v741, 16
        %v851 = vpop.permute.xlu0 %850
        %852 = vrot.lane.b32.xlu0 %v744, 16
        %v853 = vpop.permute.xlu0 %852
        %854 = vrot.lane.b32.xlu0 %v747, 16
        %v855 = vpop.permute.xlu0 %854
        %856 = vrot.lane.b32.xlu0 %v750, 16
        %v857 = vpop.permute.xlu0 %856
        %858 = vrot.lane.b32.xlu0 %v753, 16
        %v859 = vpop.permute.xlu0 %858
        %860 = vrot.lane.b32.xlu0 %v756, 16
        %v861 = vpop.permute.xlu0 %860
        %862 = vrot.lane.b32.xlu0 %v759, 16
        %v863 = vpop.permute.xlu0 %862
        %864 = vrot.lane.b32.xlu0 %v762, 16
        %v865 = vpop.permute.xlu0 %864
        %866 = vrot.lane.b32.xlu0 %v765, 16
        %v867 = vpop.permute.xlu0 %866
        %868 = vrot.lane.b32.xlu0 %v461, 24
        %v869 = vpop.permute.xlu0 %868
        %870 = vrot.lane.b32.xlu0 %v462, 24
        %v871 = vpop.permute.xlu0 %870
        %872 = vrot.lane.b32.xlu0 %v463, 24
        %v873 = vpop.permute.xlu0 %872
        %874 = vrot.lane.b32.xlu0 %v464, 24
        %v875 = vpop.permute.xlu0 %874
        %876 = vrot.lane.b32.xlu0 %v465, 24
        %v877 = vpop.permute.xlu0 %876
        %878 = vrot.lane.b32.xlu0 %v466, 24
        %v879 = vpop.permute.xlu0 %878
        %880 = vrot.lane.b32.xlu0 %v467, 24
        %v881 = vpop.permute.xlu0 %880
        %882 = vrot.lane.b32.xlu0 %v468, 24
        %v883 = vpop.permute.xlu0 %882
        %884 = vrot.lane.b32.xlu0 %v469, 24
        %v885 = vpop.permute.xlu0 %884
        %886 = vrot.lane.b32.xlu0 %v470, 24
        %v887 = vpop.permute.xlu0 %886
        %888 = vrot.lane.b32.xlu0 %v471, 24
        %v889 = vpop.permute.xlu0 %888
        %890 = vrot.lane.b32.xlu0 %v472, 24
        %v891 = vpop.permute.xlu0 %890
        %892 = vrot.lane.b32.xlu0 %v473, 24
        %v893 = vpop.permute.xlu0 %892
        %894 = vrot.lane.b32.xlu0 %v474, 24
        %v895 = vpop.permute.xlu0 %894
        %896 = vrot.lane.b32.xlu0 %v475, 24
        %v897 = vpop.permute.xlu0 %896
        %898 = vrot.lane.b32.xlu0 %v766, 24
        %v899 = vpop.permute.xlu0 %898
        %900 = vrot.lane.b32.xlu0 %v516, 32
        %v901 = vpop.permute.xlu0 %900
        %902 = vrot.lane.b32.xlu0 %v528, 32
        %v903 = vpop.permute.xlu0 %902
        %904 = vrot.lane.b32.xlu0 %v540, 32
        %v905 = vpop.permute.xlu0 %904
        %906 = vrot.lane.b32.xlu0 %v552, 32
        %v907 = vpop.permute.xlu0 %906
        %908 = vrot.lane.b32.xlu0 %v564, 32
        %v909 = vpop.permute.xlu0 %908
        %910 = vrot.lane.b32.xlu0 %v576, 32
        %v911 = vpop.permute.xlu0 %910
        %912 = vrot.lane.b32.xlu0 %v588, 32
        %v913 = vpop.permute.xlu0 %912
        %914 = vrot.lane.b32.xlu0 %v600, 32
        %v915 = vpop.permute.xlu0 %914
        %916 = vrot.lane.b32.xlu0 %v612, 32
        %v917 = vpop.permute.xlu0 %916
        %918 = vrot.lane.b32.xlu0 %v624, 32
        %v919 = vpop.permute.xlu0 %918
        %920 = vrot.lane.b32.xlu0 %v636, 32
        %v921 = vpop.permute.xlu0 %920
        %922 = vrot.lane.b32.xlu0 %v648, 32
        %v923 = vpop.permute.xlu0 %922
        %924 = vrot.lane.b32.xlu0 %v660, 32
        %v925 = vpop.permute.xlu0 %924
        %926 = vrot.lane.b32.xlu0 %v672, 32
        %v927 = vpop.permute.xlu0 %926
        %928 = vrot.lane.b32.xlu0 %v684, 32
        %v929 = vpop.permute.xlu0 %928
        %930 = vrot.lane.b32.xlu0 %v779, 32
        %v931 = vpop.permute.xlu0 %930
        %932 = vrot.lane.b32.xlu0 %v723, 40
        %v933 = vpop.permute.xlu0 %932
        %934 = vrot.lane.b32.xlu0 %v726, 40
        %v935 = vpop.permute.xlu0 %934
        %936 = vrot.lane.b32.xlu0 %v729, 40
        %v937 = vpop.permute.xlu0 %936
        %938 = vrot.lane.b32.xlu0 %v732, 40
        %v939 = vpop.permute.xlu0 %938
        %940 = vrot.lane.b32.xlu0 %v735, 40
        %v941 = vpop.permute.xlu0 %940
        %942 = vrot.lane.b32.xlu0 %v738, 40
        %v943 = vpop.permute.xlu0 %942
        %944 = vrot.lane.b32.xlu0 %v741, 40
        %v945 = vpop.permute.xlu0 %944
        %946 = vrot.lane.b32.xlu0 %v744, 40
        %v947 = vpop.permute.xlu0 %946
        %948 = vrot.lane.b32.xlu0 %v747, 40
        %v949 = vpop.permute.xlu0 %948
        %950 = vrot.lane.b32.xlu0 %v750, 40
        %v951 = vpop.permute.xlu0 %950
        %952 = vrot.lane.b32.xlu0 %v753, 40
        %v953 = vpop.permute.xlu0 %952
        %954 = vrot.lane.b32.xlu0 %v756, 40
        %v955 = vpop.permute.xlu0 %954
        %956 = vrot.lane.b32.xlu0 %v759, 40
        %v957 = vpop.permute.xlu0 %956
        %958 = vrot.lane.b32.xlu0 %v762, 40
        %v959 = vpop.permute.xlu0 %958
        %960 = vrot.lane.b32.xlu0 %v765, 40
        %v961 = vpop.permute.xlu0 %960
        %962 = vrot.lane.b32.xlu0 %v784, 40
        %v963 = vpop.permute.xlu0 %962
        %964 = vrot.lane.b32.xlu0 %v462, 48
        %v965 = vpop.permute.xlu0 %964
        %966 = vrot.lane.b32.xlu0 %v463, 48
        %v967 = vpop.permute.xlu0 %966
        %968 = vrot.lane.b32.xlu0 %v464, 48
        %v969 = vpop.permute.xlu0 %968
        %970 = vrot.lane.b32.xlu0 %v465, 48
        %v971 = vpop.permute.xlu0 %970
        %972 = vrot.lane.b32.xlu0 %v466, 48
        %v973 = vpop.permute.xlu0 %972
        %974 = vrot.lane.b32.xlu0 %v467, 48
        %v975 = vpop.permute.xlu0 %974
        %976 = vrot.lane.b32.xlu0 %v468, 48
        %v977 = vpop.permute.xlu0 %976
        %978 = vrot.lane.b32.xlu0 %v469, 48
        %v979 = vpop.permute.xlu0 %978
        %980 = vrot.lane.b32.xlu0 %v470, 48
        %v981 = vpop.permute.xlu0 %980
        %982 = vrot.lane.b32.xlu0 %v471, 48
        %v983 = vpop.permute.xlu0 %982
        %984 = vrot.lane.b32.xlu0 %v472, 48
        %v985 = vpop.permute.xlu0 %984
        %986 = vrot.lane.b32.xlu0 %v473, 48
        %v987 = vpop.permute.xlu0 %986
        %988 = vrot.lane.b32.xlu0 %v474, 48
        %v989 = vpop.permute.xlu0 %988
        %990 = vrot.lane.b32.xlu0 %v475, 48
        %v991 = vpop.permute.xlu0 %990
        %992 = vrot.lane.b32.xlu0 %v766, 48
        %v993 = vpop.permute.xlu0 %992
        %994 = vrot.lane.b32.xlu0 %v785, 48
        %v995 = vpop.permute.xlu0 %994
        %996 = vrot.lane.b32.xlu0 %v528, 56
        %v997 = vpop.permute.xlu0 %996
        %998 = vrot.lane.b32.xlu0 %v540, 56
        %v999 = vpop.permute.xlu0 %998
        %1000 = vrot.lane.b32.xlu0 %v552, 56
        %v1001 = vpop.permute.xlu0 %1000
        %1002 = vrot.lane.b32.xlu0 %v564, 56
        %v1003 = vpop.permute.xlu0 %1002
        %1004 = vrot.lane.b32.xlu0 %v576, 56
        %v1005 = vpop.permute.xlu0 %1004
        %1006 = vrot.lane.b32.xlu0 %v588, 56
        %v1007 = vpop.permute.xlu0 %1006
        %1008 = vrot.lane.b32.xlu0 %v600, 56
        %v1009 = vpop.permute.xlu0 %1008
        %1010 = vrot.lane.b32.xlu0 %v612, 56
        %v1011 = vpop.permute.xlu0 %1010
        %1012 = vrot.lane.b32.xlu0 %v624, 56
        %v1013 = vpop.permute.xlu0 %1012
        %1014 = vrot.lane.b32.xlu0 %v636, 56
        %v1015 = vpop.permute.xlu0 %1014
        %1016 = vrot.lane.b32.xlu0 %v648, 56
        %v1017 = vpop.permute.xlu0 %1016
        %1018 = vrot.lane.b32.xlu0 %v660, 56
        %v1019 = vpop.permute.xlu0 %1018
        %1020 = vrot.lane.b32.xlu0 %v672, 56
        %v1021 = vpop.permute.xlu0 %1020
        %1022 = vrot.lane.b32.xlu0 %v684, 56
        %v1023 = vpop.permute.xlu0 %1022
        %1024 = vrot.lane.b32.xlu0 %v779, 56
        %v1025 = vpop.permute.xlu0 %1024
        %1026 = vrot.lane.b32.xlu0 %v798, 56
        %v1027 = vpop.permute.xlu0 %1026
        %1028 = vrot.lane.b32.xlu0 %v726, 64
        %v1029 = vpop.permute.xlu0 %1028
        %1030 = vrot.lane.b32.xlu0 %v729, 64
        %v1031 = vpop.permute.xlu0 %1030
        %1032 = vrot.lane.b32.xlu0 %v732, 64
        %v1033 = vpop.permute.xlu0 %1032
        %1034 = vrot.lane.b32.xlu0 %v735, 64
        %v1035 = vpop.permute.xlu0 %1034
        %1036 = vrot.lane.b32.xlu0 %v738, 64
        %v1037 = vpop.permute.xlu0 %1036
        %1038 = vrot.lane.b32.xlu0 %v741, 64
        %v1039 = vpop.permute.xlu0 %1038
        %1040 = vrot.lane.b32.xlu0 %v744, 64
        %v1041 = vpop.permute.xlu0 %1040
        %1042 = vrot.lane.b32.xlu0 %v747, 64
        %v1043 = vpop.permute.xlu0 %1042
        %1044 = vrot.lane.b32.xlu0 %v750, 64
        %v1045 = vpop.permute.xlu0 %1044
        %1046 = vrot.lane.b32.xlu0 %v753, 64
        %v1047 = vpop.permute.xlu0 %1046
        %1048 = vrot.lane.b32.xlu0 %v756, 64
        %v1049 = vpop.permute.xlu0 %1048
        %1050 = vrot.lane.b32.xlu0 %v759, 64
        %v1051 = vpop.permute.xlu0 %1050
        %1052 = vrot.lane.b32.xlu0 %v762, 64
        %v1053 = vpop.permute.xlu0 %1052
        %1054 = vrot.lane.b32.xlu0 %v765, 64
        %v1055 = vpop.permute.xlu0 %1054
        %1056 = vrot.lane.b32.xlu0 %v784, 64
        %v1057 = vpop.permute.xlu0 %1056
        %1058 = vrot.lane.b32.xlu0 %v803, 64
        %v1059 = vpop.permute.xlu0 %1058
        %vm1060 = vcmask 64512
        %v1062 = vsel %vm1060, %v460, %v805
        %v1064 = vsel %vm1060, %v461, %v807
        %v1066 = vsel %vm1060, %v462, %v809
        %v1068 = vsel %vm1060, %v463, %v811
        %v1070 = vsel %vm1060, %v464, %v813
        %v1072 = vsel %vm1060, %v465, %v815
        %v1074 = vsel %vm1060, %v466, %v817
        %v1076 = vsel %vm1060, %v467, %v819
        %v1078 = vsel %vm1060, %v468, %v821
        %v1080 = vsel %vm1060, %v469, %v823
        %v1082 = vsel %vm1060, %v470, %v825
        %v1084 = vsel %vm1060, %v471, %v827
        %v1086 = vsel %vm1060, %v472, %v829
        %v1088 = vsel %vm1060, %v473, %v831
        %v1090 = vsel %vm1060, %v474, %v833
        %v1092 = vsel %vm1060, %v475, %v835
        %vm1093 = vcmask 130048
        %v1095 = vsel %vm1093, %v1062, %v837
        %v1097 = vsel %vm1093, %v1064, %v839
        %v1099 = vsel %vm1093, %v1066, %v841
        %v1101 = vsel %vm1093, %v1068, %v843
        %v1103 = vsel %vm1093, %v1070, %v845
        %v1105 = vsel %vm1093, %v1072, %v847
        %v1107 = vsel %vm1093, %v1074, %v849
        %v1109 = vsel %vm1093, %v1076, %v851
        %v1111 = vsel %vm1093, %v1078, %v853
        %v1113 = vsel %vm1093, %v1080, %v855
        %v1115 = vsel %vm1093, %v1082, %v857
        %v1117 = vsel %vm1093, %v1084, %v859
        %v1119 = vsel %vm1093, %v1086, %v861
        %v1121 = vsel %vm1093, %v1088, %v863
        %v1123 = vsel %vm1093, %v1090, %v865
        %v1125 = vsel %vm1093, %v1092, %v867
        %vm1126 = vcmask 195584
        %v1128 = vsel %vm1126, %v1095, %v869
        %v1130 = vsel %vm1126, %v1097, %v871
        %v1132 = vsel %vm1126, %v1099, %v873
        %v1134 = vsel %vm1126, %v1101, %v875
        %v1136 = vsel %vm1126, %v1103, %v877
        %v1138 = vsel %vm1126, %v1105, %v879
        %v1140 = vsel %vm1126, %v1107, %v881
        %v1142 = vsel %vm1126, %v1109, %v883
        %v1144 = vsel %vm1126, %v1111, %v885
        %v1146 = vsel %vm1126, %v1113, %v887
        %v1148 = vsel %vm1126, %v1115, %v889
        %v1150 = vsel %vm1126, %v1117, %v891
        %v1152 = vsel %vm1126, %v1119, %v893
        %v1154 = vsel %vm1126, %v1121, %v895
        %v1156 = vsel %vm1126, %v1123, %v897
        %v1158 = vsel %vm1126, %v1125, %v899
        %vm1159 = vcmask 261120
        %v1161 = vsel %vm1159, %v1128, %v901
        %v1163 = vsel %vm1159, %v1130, %v903
        %v1165 = vsel %vm1159, %v1132, %v905
        %v1167 = vsel %vm1159, %v1134, %v907
        %v1169 = vsel %vm1159, %v1136, %v909
        %v1171 = vsel %vm1159, %v1138, %v911
        %v1173 = vsel %vm1159, %v1140, %v913
        %v1175 = vsel %vm1159, %v1142, %v915
        %v1177 = vsel %vm1159, %v1144, %v917
        %v1179 = vsel %vm1159, %v1146, %v919
        %v1181 = vsel %vm1159, %v1148, %v921
        %v1183 = vsel %vm1159, %v1150, %v923
        %v1185 = vsel %vm1159, %v1152, %v925
        %v1187 = vsel %vm1159, %v1154, %v927
        %v1189 = vsel %vm1159, %v1156, %v929
        %v1191 = vsel %vm1159, %v1158, %v931
        %vm1192 = vcmask 326656
        %v1194 = vsel %vm1192, %v1161, %v933
        %v1196 = vsel %vm1192, %v1163, %v935
        %v1198 = vsel %vm1192, %v1165, %v937
        %v1200 = vsel %vm1192, %v1167, %v939
        %v1202 = vsel %vm1192, %v1169, %v941
        %v1204 = vsel %vm1192, %v1171, %v943
        %v1206 = vsel %vm1192, %v1173, %v945
        %v1208 = vsel %vm1192, %v1175, %v947
        %v1210 = vsel %vm1192, %v1177, %v949
        %v1212 = vsel %vm1192, %v1179, %v951
        %v1214 = vsel %vm1192, %v1181, %v953
        %v1216 = vsel %vm1192, %v1183, %v955
        %v1218 = vsel %vm1192, %v1185, %v957
        %v1220 = vsel %vm1192, %v1187, %v959
        %v1222 = vsel %vm1192, %v1189, %v961
        %v1224 = vsel %vm1192, %v1191, %v963
        %vm1225 = vcmask 392192
        %v1227 = vsel %vm1225, %v1194, %v965
        %v1229 = vsel %vm1225, %v1196, %v967
        %v1231 = vsel %vm1225, %v1198, %v969
        %v1233 = vsel %vm1225, %v1200, %v971
        %v1235 = vsel %vm1225, %v1202, %v973
        %v1237 = vsel %vm1225, %v1204, %v975
        %v1239 = vsel %vm1225, %v1206, %v977
        %v1241 = vsel %vm1225, %v1208, %v979
        %v1243 = vsel %vm1225, %v1210, %v981
        %v1245 = vsel %vm1225, %v1212, %v983
        %v1247 = vsel %vm1225, %v1214, %v985
        %v1249 = vsel %vm1225, %v1216, %v987
        %v1251 = vsel %vm1225, %v1218, %v989
        %v1253 = vsel %vm1225, %v1220, %v991
        %v1255 = vsel %vm1225, %v1222, %v993
        %v1257 = vsel %vm1225, %v1224, %v995
        %vm1258 = vcmask 457728
        %v1260 = vsel %vm1258, %v1227, %v997
        %v1262 = vsel %vm1258, %v1229, %v999
        %v1264 = vsel %vm1258, %v1231, %v1001
        %v1266 = vsel %vm1258, %v1233, %v1003
        %v1268 = vsel %vm1258, %v1235, %v1005
        %v1270 = vsel %vm1258, %v1237, %v1007
        %v1272 = vsel %vm1258, %v1239, %v1009
        %v1274 = vsel %vm1258, %v1241, %v1011
        %v1276 = vsel %vm1258, %v1243, %v1013
        %v1278 = vsel %vm1258, %v1245, %v1015
        %v1280 = vsel %vm1258, %v1247, %v1017
        %v1282 = vsel %vm1258, %v1249, %v1019
        %v1284 = vsel %vm1258, %v1251, %v1021
        %v1286 = vsel %vm1258, %v1253, %v1023
        %v1288 = vsel %vm1258, %v1255, %v1025
        %v1290 = vsel %vm1258, %v1257, %v1027
        %v1292 = vsel %vm296, %v1260, %v1029
        %v1294 = vsel %vm296, %v1262, %v1031
        %v1296 = vsel %vm296, %v1264, %v1033
        %v1298 = vsel %vm296, %v1266, %v1035
        %v1300 = vsel %vm296, %v1268, %v1037
        %v1302 = vsel %vm296, %v1270, %v1039
        %v1304 = vsel %vm296, %v1272, %v1041
        %v1306 = vsel %vm296, %v1274, %v1043
        %v1308 = vsel %vm296, %v1276, %v1045
        %v1310 = vsel %vm296, %v1278, %v1047
        %v1312 = vsel %vm296, %v1280, %v1049
        %v1314 = vsel %vm296, %v1282, %v1051
        %v1316 = vsel %vm296, %v1284, %v1053
        %v1318 = vsel %vm296, %v1286, %v1055
        %v1320 = vsel %vm296, %v1288, %v1057
        %v1322 = vsel %vm296, %v1290, %v1059
        %v1323 = vld [vmem:[%s1] sm:$0xf]
        %v1324 = vld [vmem:[%s1 + $0x4] sm:$0xf]
        %v1325 = vld [vmem:[%s1 + $0x8] sm:$0xf]
        %v1326 = vld [vmem:[%s1 + $0xc] sm:$0xf]
        %v1327 = vld [vmem:[%s1 + $0x10] sm:$0xf]
        %v1328 = vld [vmem:[%s1 + $0x14] sm:$0xf]
        %v1329 = vld [vmem:[%s1 + $0x18] sm:$0xf]
        %v1330 = vld [vmem:[%s1 + $0x1c] sm:$0xf]
        %v1331 = vld [vmem:[%s1 + $0x20] sm:$0xf]
        %v1341 = vunpack.c.l.b16 %v1323
        %v1342 = vunpack.c.l.b16 %v1324
        %v1343 = vunpack.c.l.b16 %v1325
        %v1344 = vunpack.c.l.b16 %v1326
        %v1345 = vunpack.c.l.b16 %v1327
        %v1346 = vunpack.c.l.b16 %v1328
        %v1347 = vunpack.c.l.b16 %v1329
        %v1348 = vunpack.c.l.b16 %v1330
        %v1349 = vunpack.c.l.b16 %v1331
        %v1350 = vpack.c.b16 %v1342, %v1341
        %v1351 = vpack.c.b16 %v1344, %v1343
        %v1352 = vpack.c.b16 %v1346, %v1345
        %v1353 = vpack.c.b16 %v1348, %v1347
        %v1354 = vpack.c.b16 %v1349, %v1349
        %vm1359 = vcmask 588800
        %v1360 = vsel %vm1359, %v1292, 0
        %v1362 = vsel %vm1359, %v1294, 0
        %v1364 = vsel %vm1359, %v1296, 0
        %v1366 = vsel %vm1359, %v1298, 0
        %v1368 = vsel %vm1359, %v1300, 0
        %v1370 = vsel %vm1359, %v1302, 0
        %v1372 = vsel %vm1359, %v1304, 0
        %v1374 = vsel %vm1359, %v1306, 0
        %v1376 = vsel %vm1359, %v1308, 0
        %v1378 = vsel %vm1359, %v1310, 0
        %v1380 = vsel %vm1359, %v1312, 0
        %v1382 = vsel %vm1359, %v1314, 0
        %v1384 = vsel %vm1359, %v1316, 0
        %v1386 = vsel %vm1359, %v1318, 0
        %v1388 = vsel %vm1359, %v1320, 0
        %v1390 = vsel %vm1359, %v1322, 0
        %vm1392 = vcmask 1043456
        %v1394 = vsel %vm1392, %v1354, 0
        %1396 = vmatprep.subr.bf16.mxu0 0
        %1397 = vmatpush1.bf16.msra.mxu0 %v1350
        %1398 = vmatprep.subr.bf16.mxu0 0
        %1399 = vmatpush1.bf16.msra.mxu0 %v1351
        %1400 = vmatprep.subr.bf16.mxu0 0
        %1401 = vmatpush1.bf16.msra.mxu0 %v1352
        %1402 = vmatprep.subr.bf16.mxu0 0
        %1403 = vmatpush1.bf16.msra.mxu0 %v1353
        %1404 = vmatprep.subr.bf16.mxu0 0
        %1405 = vmatpush1.bf16.msra.mxu0 %v1394
        %1406 = vmatprep.subr.bf16.mxu0 0
        %1407 = vmatpush1.bf16.msra.mxu0 0
        %1408 = vmatprep.subr.bf16.mxu0 0
        %1409 = vmatpush1.bf16.msra.mxu0 0
        %1410 = vmatprep.subr.bf16.mxu0 0
        %1411 = vmatpush1.bf16.msra.mxu0 0
        %1412 = vmatprep.subr.bf16.mxu0 0
        %1413 = vmatpush1.bf16.msra.mxu0 0
        %1414 = vmatprep.subr.bf16.mxu0 0
        %1415 = vmatpush1.bf16.msra.mxu0 0
        %1416 = vmatprep.subr.bf16.mxu0 0
        %1417 = vmatpush1.bf16.msra.mxu0 0
        %1418 = vmatprep.subr.bf16.mxu0 0
        %1419 = vmatpush1.bf16.msra.mxu0 0
        %1420 = vmatprep.subr.bf16.mxu0 0
        %1421 = vmatpush1.bf16.msra.mxu0 0
        %1422 = vmatprep.subr.bf16.mxu0 0
        %1423 = vmatpush1.bf16.msra.mxu0 0
        %1424 = vmatprep.subr.bf16.mxu0 0
        %1425 = vmatpush1.bf16.msra.mxu0 0
        %1426 = vmatprep.subr.bf16.mxu0 0
        %1427 = vmatpush1.bf16.msra.mxu0 0
        %1428 = vmatprep.mubr.bf16.mxu0 0
        %1429 = vmatmul.mubr.bf16.gmra.mrb[0].mxu0 %v1360
        %v1430 = vpop.f32.mrb[0].mxu0
        %v1431 = vadd.f32 0.0, %v1430
        %v1432 = vpop.f32.mrb[0].mxu0
        %v1433 = vpop.f32.mrb[0].mxu0
        %v1434 = vadd.f32 0.0, %v1433
        %v1435 = vpop.f32.mrb[0].mxu0
        %1436 = vmatprep.mubr.bf16.mxu0 0
        %1437 = vmatmul.mubr.bf16.gmra.mrb[0].mxu0 %v1362
        %v1438 = vpop.f32.mrb[0].mxu0
        %v1439 = vadd.f32 0.0, %v1438
        %v1440 = vpop.f32.mrb[0].mxu0
        %v1441 = vpop.f32.mrb[0].mxu0
        %v1442 = vadd.f32 0.0, %v1441
        %v1443 = vpop.f32.mrb[0].mxu0
        %1444 = vmatprep.mubr.bf16.mxu0 0
        %1445 = vmatmul.mubr.bf16.gmra.mrb[0].mxu0 %v1364
        %v1446 = vpop.f32.mrb[0].mxu0
        %v1447 = vadd.f32 0.0, %v1446
        %v1448 = vpop.f32.mrb[0].mxu0
        %v1449 = vpop.f32.mrb[0].mxu0
        %v1450 = vadd.f32 0.0, %v1449
        %v1451 = vpop.f32.mrb[0].mxu0
        %1452 = vmatprep.mubr.bf16.mxu0 0
        %1453 = vmatmul.mubr.bf16.gmra.mrb[0].mxu0 %v1366
        %v1454 = vpop.f32.mrb[0].mxu0
        %v1455 = vadd.f32 0.0, %v1454
        %v1456 = vpop.f32.mrb[0].mxu0
        %v1457 = vpop.f32.mrb[0].mxu0
        %v1458 = vadd.f32 0.0, %v1457
        %v1459 = vpop.f32.mrb[0].mxu0
        %1460 = vmatprep.mubr.bf16.mxu0 0
        %1461 = vmatmul.mubr.bf16.gmra.mrb[0].mxu0 %v1368
        %v1462 = vpop.f32.mrb[0].mxu0
        %v1463 = vadd.f32 0.0, %v1462
        %v1464 = vpop.f32.mrb[0].mxu0
        %v1465 = vpop.f32.mrb[0].mxu0
        %v1466 = vadd.f32 0.0, %v1465
        %v1467 = vpop.f32.mrb[0].mxu0
        %1468 = vmatprep.mubr.bf16.mxu0 0
        %1469 = vmatmul.mubr.bf16.gmra.mrb[0].mxu0 %v1370
        %v1470 = vpop.f32.mrb[0].mxu0
        %v1471 = vadd.f32 0.0, %v1470
        %v1472 = vpop.f32.mrb[0].mxu0
        %v1473 = vpop.f32.mrb[0].mxu0
        %v1474 = vadd.f32 0.0, %v1473
        %v1475 = vpop.f32.mrb[0].mxu0
        %1476 = vmatprep.mubr.bf16.mxu0 0
        %1477 = vmatmul.mubr.bf16.gmra.mrb[0].mxu0 %v1372
        %v1478 = vpop.f32.mrb[0].mxu0
        %v1479 = vadd.f32 0.0, %v1478
        %v1480 = vpop.f32.mrb[0].mxu0
        %v1481 = vpop.f32.mrb[0].mxu0
        %v1482 = vadd.f32 0.0, %v1481
        %v1483 = vpop.f32.mrb[0].mxu0
        %1484 = vmatprep.mubr.bf16.mxu0 0
        %1485 = vmatmul.mubr.bf16.gmra.mrb[0].mxu0 %v1374
        %v1486 = vpop.f32.mrb[0].mxu0
        %v1487 = vadd.f32 0.0, %v1486
        %v1488 = vpop.f32.mrb[0].mxu0
        %v1489 = vpop.f32.mrb[0].mxu0
        %v1490 = vadd.f32 0.0, %v1489
        %v1491 = vpop.f32.mrb[0].mxu0
        %1492 = vmatprep.mubr.bf16.mxu0 0
        %1493 = vmatmul.mubr.bf16.gmra.mrb[0].mxu0 %v1376
        %v1494 = vpop.f32.mrb[0].mxu0
        %v1495 = vadd.f32 0.0, %v1494
        %v1496 = vpop.f32.mrb[0].mxu0
        %v1497 = vpop.f32.mrb[0].mxu0
        %v1498 = vadd.f32 0.0, %v1497
        %v1499 = vpop.f32.mrb[0].mxu0
        %1500 = vmatprep.mubr.bf16.mxu0 0
        %1501 = vmatmul.mubr.bf16.gmra.mrb[0].mxu0 %v1378
        %v1502 = vpop.f32.mrb[0].mxu0
        %v1503 = vadd.f32 0.0, %v1502
        %v1504 = vpop.f32.mrb[0].mxu0
        %v1505 = vpop.f32.mrb[0].mxu0
        %v1506 = vadd.f32 0.0, %v1505
        %v1507 = vpop.f32.mrb[0].mxu0
        %1508 = vmatprep.mubr.bf16.mxu0 0
        %1509 = vmatmul.mubr.bf16.gmra.mrb[0].mxu0 %v1380
        %v1510 = vpop.f32.mrb[0].mxu0
        %v1511 = vadd.f32 0.0, %v1510
        %v1512 = vpop.f32.mrb[0].mxu0
        %v1513 = vpop.f32.mrb[0].mxu0
        %v1514 = vadd.f32 0.0, %v1513
        %v1515 = vpop.f32.mrb[0].mxu0
        %1516 = vmatprep.mubr.bf16.mxu0 0
        %1517 = vmatmul.mubr.bf16.gmra.mrb[0].mxu0 %v1382
        %v1518 = vpop.f32.mrb[0].mxu0
        %v1519 = vadd.f32 0.0, %v1518
        %v1520 = vpop.f32.mrb[0].mxu0
        %v1521 = vpop.f32.mrb[0].mxu0
        %v1522 = vadd.f32 0.0, %v1521
        %v1523 = vpop.f32.mrb[0].mxu0
        %1524 = vmatprep.mubr.bf16.mxu0 0
        %1525 = vmatmul.mubr.bf16.gmra.mrb[0].mxu0 %v1384
        %v1526 = vpop.f32.mrb[0].mxu0
        %v1527 = vadd.f32 0.0, %v1526
        %v1528 = vpop.f32.mrb[0].mxu0
        %v1529 = vpop.f32.mrb[0].mxu0
        %v1530 = vadd.f32 0.0, %v1529
        %v1531 = vpop.f32.mrb[0].mxu0
        %1532 = vmatprep.mubr.bf16.mxu0 0
        %1533 = vmatmul.mubr.bf16.gmra.mrb[0].mxu0 %v1386
        %v1534 = vpop.f32.mrb[0].mxu0
        %v1535 = vadd.f32 0.0, %v1534
        %v1536 = vpop.f32.mrb[0].mxu0
        %v1537 = vpop.f32.mrb[0].mxu0
        %v1538 = vadd.f32 0.0, %v1537
        %v1539 = vpop.f32.mrb[0].mxu0
        %1540 = vmatprep.mubr.bf16.mxu0 0
        %1541 = vmatmul.mubr.bf16.gmra.mrb[0].mxu0 %v1388
        %v1542 = vpop.f32.mrb[0].mxu0
        %v1543 = vadd.f32 0.0, %v1542
        %v1544 = vpop.f32.mrb[0].mxu0
        %v1545 = vpop.f32.mrb[0].mxu0
        %v1546 = vadd.f32 0.0, %v1545
        %v1547 = vpop.f32.mrb[0].mxu0
        %1548 = vmatprep.mubr.bf16.mxu0 0
        %1549 = vmatmul.mubr.bf16.gmra.mrb[0].mxu0 %v1390
        %v1550 = vpop.f32.mrb[0].mxu0
        %v1551 = vadd.f32 0.0, %v1550
        %v1552 = vpop.f32.mrb[0].mxu0
        %v1553 = vpop.f32.mrb[0].mxu0
        %v1554 = vadd.f32 0.0, %v1553
        %v1555 = vpop.f32.mrb[0].mxu0
        %1556 = vdwg.mxu0
        %v1557 = vmax.f32 %v1431, 0.0
        %v1558 = vmax.f32 %v1434, 0.0
        %v1559 = vmax.f32 %v1439, 0.0
        %v1560 = vmax.f32 %v1442, 0.0
        %v1561 = vmax.f32 %v1447, 0.0
        %v1562 = vmax.f32 %v1450, 0.0
        %v1563 = vmax.f32 %v1455, 0.0
        %v1564 = vmax.f32 %v1458, 0.0
        %v1565 = vmax.f32 %v1463, 0.0
        %v1566 = vmax.f32 %v1466, 0.0
        %v1567 = vmax.f32 %v1471, 0.0
        %v1568 = vmax.f32 %v1474, 0.0
        %v1569 = vmax.f32 %v1479, 0.0
        %v1570 = vmax.f32 %v1482, 0.0
        %v1571 = vmax.f32 %v1487, 0.0
        %v1572 = vmax.f32 %v1490, 0.0
        %v1573 = vmax.f32 %v1495, 0.0
        %v1574 = vmax.f32 %v1498, 0.0
        %v1575 = vmax.f32 %v1503, 0.0
        %v1576 = vmax.f32 %v1506, 0.0
        %v1577 = vmax.f32 %v1511, 0.0
        %v1578 = vmax.f32 %v1514, 0.0
        %v1579 = vmax.f32 %v1519, 0.0
        %v1580 = vmax.f32 %v1522, 0.0
        %v1581 = vmax.f32 %v1527, 0.0
        %v1582 = vmax.f32 %v1530, 0.0
        %v1583 = vmax.f32 %v1535, 0.0
        %v1584 = vmax.f32 %v1538, 0.0
        %v1585 = vmax.f32 %v1543, 0.0
        %v1586 = vmax.f32 %v1546, 0.0
        %v1587 = vmax.f32 %v1551, 0.0
        %v1588 = vmax.f32 %v1554, 0.0
        %s1589 = scalar_lea.vmem [#allocation2], 24
        %1590 = vst.msk [vmem:[%s1589 + $0x1] sm:$0xff] %vm296, %v1557
        %1591 = vst.msk [vmem:[%s1589 + $0x9] sm:$0xff] %vm296, %v1558
        %1592 = vst.msk [vmem:[%s1589 + $0x19] sm:$0xff] %vm296, %v1559
        %1593 = vst.msk [vmem:[%s1589 + $0x21] sm:$0xff] %vm296, %v1560
        %1594 = vst.msk [vmem:[%s1589 + $0x31] sm:$0xff] %vm296, %v1561
        %1595 = vst.msk [vmem:[%s1589 + $0x39] sm:$0xff] %vm296, %v1562
        %1596 = vst.msk [vmem:[%s1589 + $0x49] sm:$0xff] %vm296, %v1563
        %1597 = vst.msk [vmem:[%s1589 + $0x51] sm:$0xff] %vm296, %v1564
        %1598 = vst.msk [vmem:[%s1589 + $0x61] sm:$0xff] %vm296, %v1565
        %1599 = vst.msk [vmem:[%s1589 + $0x69] sm:$0xff] %vm296, %v1566
        %1600 = vst.msk [vmem:[%s1589 + $0x79] sm:$0xff] %vm296, %v1567
        %1601 = vst.msk [vmem:[%s1589 + $0x81] sm:$0xff] %vm296, %v1568
        %1602 = vst.msk [vmem:[%s1589 + $0x91] sm:$0xff] %vm296, %v1569
        %1603 = vst.msk [vmem:[%s1589 + $0x99] sm:$0xff] %vm296, %v1570
        %1604 = vst.msk [vmem:[%s1589 + $0xa9] sm:$0xff] %vm296, %v1571
        %1605 = vst.msk [vmem:[%s1589 + $0xb1] sm:$0xff] %vm296, %v1572
        %1606 = vst.msk [vmem:[%s1589 + $0xc1] sm:$0xff] %vm296, %v1573
        %1607 = vst.msk [vmem:[%s1589 + $0xc9] sm:$0xff] %vm296, %v1574
        %1608 = vst.msk [vmem:[%s1589 + $0xd9] sm:$0xff] %vm296, %v1575
        %1609 = vst.msk [vmem:[%s1589 + $0xe1] sm:$0xff] %vm296, %v1576
        %1610 = vst.msk [vmem:[%s1589 + $0xf1] sm:$0xff] %vm296, %v1577
        %1611 = vst.msk [vmem:[%s1589 + $0xf9] sm:$0xff] %vm296, %v1578
        %1612 = vst.msk [vmem:[%s1589 + $0x109] sm:$0xff] %vm296, %v1579
        %1613 = vst.msk [vmem:[%s1589 + $0x111] sm:$0xff] %vm296, %v1580
        %1614 = vst.msk [vmem:[%s1589 + $0x121] sm:$0xff] %vm296, %v1581
        %1615 = vst.msk [vmem:[%s1589 + $0x129] sm:$0xff] %vm296, %v1582
        %1616 = vst.msk [vmem:[%s1589 + $0x139] sm:$0xff] %vm296, %v1583
        %1617 = vst.msk [vmem:[%s1589 + $0x141] sm:$0xff] %vm296, %v1584
        %1618 = vst.msk [vmem:[%s1589 + $0x151] sm:$0xff] %vm296, %v1585
        %1619 = vst.msk [vmem:[%s1589 + $0x159] sm:$0xff] %vm296, %v1586
        %1620 = vst.msk [vmem:[%s1589 + $0x169] sm:$0xff] %vm296, %v1587
        %1621 = vst.msk [vmem:[%s1589 + $0x171] sm:$0xff] %vm296, %v1588
      $region52: #{resblocknet_forward.1} parent=47 // pred_fallthru
        _
      %v1622 = vld [vmem:[#allocation2] sm:$0xff]
      %v1623 = vld [vmem:[#allocation2 + $0x8] sm:$0xff]
      %v1624 = vld [vmem:[#allocation2 + $0x10] sm:$0x3]
      %v1625 = vld [vmem:[#allocation2 + $0x18] sm:$0xff]
      %v1626 = vld [vmem:[#allocation2 + $0x20] sm:$0xff]
      %v1627 = vld [vmem:[#allocation2 + $0x28] sm:$0x3]
      %v1628 = vld [vmem:[#allocation2 + $0x30] sm:$0xff]
      %v1629 = vld [vmem:[#allocation2 + $0x38] sm:$0xff]
      %v1630 = vld [vmem:[#allocation2 + $0x40] sm:$0x3]
      %v1631 = vld [vmem:[#allocation2 + $0x48] sm:$0xff]
      %v1632 = vld [vmem:[#allocation2 + $0x50] sm:$0xff]
      %v1633 = vld [vmem:[#allocation2 + $0x58] sm:$0x3]
      %v1634 = vld [vmem:[#allocation2 + $0x60] sm:$0xff]
      %v1635 = vld [vmem:[#allocation2 + $0x68] sm:$0xff]
      %v1636 = vld [vmem:[#allocation2 + $0x70] sm:$0x3]
      %v1637 = vld [vmem:[#allocation2 + $0x78] sm:$0xff]
      %v1638 = vld [vmem:[#allocation2 + $0x80] sm:$0xff]
      %v1639 = vld [vmem:[#allocation2 + $0x88] sm:$0x3]
      %v1640 = vld [vmem:[#allocation2 + $0x90] sm:$0xff]
      %v1641 = vld [vmem:[#allocation2 + $0x98] sm:$0xff]
      %v1642 = vld [vmem:[#allocation2 + $0xa0] sm:$0x3]
      %v1643 = vld [vmem:[#allocation2 + $0xa8] sm:$0xff]
      %v1644 = vld [vmem:[#allocation2 + $0xb0] sm:$0xff]
      %v1645 = vld [vmem:[#allocation2 + $0xb8] sm:$0x3]
      %v1646 = vld [vmem:[#allocation2 + $0xc0] sm:$0xff]
      %v1647 = vld [vmem:[#allocation2 + $0xc8] sm:$0xff]
      %v1648 = vld [vmem:[#allocation2 + $0xd0] sm:$0x3]
      %v1649 = vld [vmem:[#allocation2 + $0xd8] sm:$0xff]
      %v1650 = vld [vmem:[#allocation2 + $0xe0] sm:$0xff]
      %v1651 = vld [vmem:[#allocation2 + $0xe8] sm:$0x3]
      %v1652 = vld [vmem:[#allocation2 + $0xf0] sm:$0xff]
      %v1653 = vld [vmem:[#allocation2 + $0xf8] sm:$0xff]
      %v1654 = vld [vmem:[#allocation2 + $0x100] sm:$0x3]
      %v1655 = vld [vmem:[#allocation2 + $0x108] sm:$0xff]
      %v1656 = vld [vmem:[#allocation2 + $0x110] sm:$0xff]
      %v1657 = vld [vmem:[#allocation2 + $0x118] sm:$0x3]
      %v1658 = vld [vmem:[#allocation2 + $0x120] sm:$0xff]
      %v1659 = vld [vmem:[#allocation2 + $0x128] sm:$0xff]
      %v1660 = vld [vmem:[#allocation2 + $0x130] sm:$0x3]
      %v1661 = vld [vmem:[#allocation2 + $0x138] sm:$0xff]
      %v1662 = vld [vmem:[#allocation2 + $0x140] sm:$0xff]
      %v1663 = vld [vmem:[#allocation2 + $0x148] sm:$0x3]
      %v1664 = vld [vmem:[#allocation2 + $0x150] sm:$0xff]
      %v1665 = vld [vmem:[#allocation2 + $0x158] sm:$0xff]
      %v1666 = vld [vmem:[#allocation2 + $0x160] sm:$0x3]
      %v1667 = vld [vmem:[#allocation2 + $0x168] sm:$0xff]
      %v1668 = vld [vmem:[#allocation2 + $0x170] sm:$0xff]
      %v1669 = vld [vmem:[#allocation2 + $0x178] sm:$0x3]
      %v1670 = vld [vmem:[#allocation2 + $0x180] sm:$0xff]
      %v1671 = vld [vmem:[#allocation2 + $0x188] sm:$0xff]
      %v1672 = vld [vmem:[#allocation2 + $0x190] sm:$0x3]
      %v1673 = vld [vmem:[#allocation2 + $0x198] sm:$0xff]
      %v1674 = vld [vmem:[#allocation2 + $0x1a0] sm:$0xff]
      %v1675 = vld [vmem:[#allocation2 + $0x1a8] sm:$0x3]
      %vm1724 = vcmask 1046528
      %v1725 = vrot.slane %v1625, 1
      %v1726 = vrot.slane %v1626, 1
      %v1727 = vsel %vm1724, %v1725, %v1726
      %v1728 = vrot.slane %v1627, 1
      %v1729 = vsel %vm1724, %v1726, %v1728
      %v1730 = vrot.slane %v1628, 1
      %v1731 = vrot.slane %v1629, 1
      %v1732 = vsel %vm1724, %v1730, %v1731
      %v1733 = vrot.slane %v1630, 1
      %v1734 = vsel %vm1724, %v1731, %v1733
      %v1735 = vrot.slane %v1631, 1
      %v1736 = vrot.slane %v1632, 1
      %v1737 = vsel %vm1724, %v1735, %v1736
      %v1738 = vrot.slane %v1633, 1
      %v1739 = vsel %vm1724, %v1736, %v1738
      %v1740 = vrot.slane %v1634, 1
      %v1741 = vrot.slane %v1635, 1
      %v1742 = vsel %vm1724, %v1740, %v1741
      %v1743 = vrot.slane %v1636, 1
      %v1744 = vsel %vm1724, %v1741, %v1743
      %v1745 = vrot.slane %v1637, 1
      %v1746 = vrot.slane %v1638, 1
      %v1747 = vsel %vm1724, %v1745, %v1746
      %v1748 = vrot.slane %v1639, 1
      %v1749 = vsel %vm1724, %v1746, %v1748
      %v1750 = vrot.slane %v1640, 1
      %v1751 = vrot.slane %v1641, 1
      %v1752 = vsel %vm1724, %v1750, %v1751
      %v1753 = vrot.slane %v1642, 1
      %v1754 = vsel %vm1724, %v1751, %v1753
      %v1755 = vrot.slane %v1643, 1
      %v1756 = vrot.slane %v1644, 1
      %v1757 = vsel %vm1724, %v1755, %v1756
      %v1758 = vrot.slane %v1645, 1
      %v1759 = vsel %vm1724, %v1756, %v1758
      %v1760 = vrot.slane %v1646, 1
      %v1761 = vrot.slane %v1647, 1
      %v1762 = vsel %vm1724, %v1760, %v1761
      %v1763 = vrot.slane %v1648, 1
      %v1764 = vsel %vm1724, %v1761, %v1763
      %v1765 = vrot.slane %v1649, 1
      %v1766 = vrot.slane %v1650, 1
      %v1767 = vsel %vm1724, %v1765, %v1766
      %v1768 = vrot.slane %v1651, 1
      %v1769 = vsel %vm1724, %v1766, %v1768
      %v1770 = vrot.slane %v1652, 1
      %v1771 = vrot.slane %v1653, 1
      %v1772 = vsel %vm1724, %v1770, %v1771
      %v1773 = vrot.slane %v1654, 1
      %v1774 = vsel %vm1724, %v1771, %v1773
      %v1775 = vrot.slane %v1655, 1
      %v1776 = vrot.slane %v1656, 1
      %v1777 = vsel %vm1724, %v1775, %v1776
      %v1778 = vrot.slane %v1657, 1
      %v1779 = vsel %vm1724, %v1776, %v1778
      %v1780 = vrot.slane %v1658, 1
      %v1781 = vrot.slane %v1659, 1
      %v1782 = vsel %vm1724, %v1780, %v1781
      %v1783 = vrot.slane %v1660, 1
      %v1784 = vsel %vm1724, %v1781, %v1783
      %v1785 = vrot.slane %v1661, 1
      %v1786 = vrot.slane %v1662, 1
      %v1787 = vsel %vm1724, %v1785, %v1786
      %v1788 = vrot.slane %v1663, 1
      %v1789 = vsel %vm1724, %v1786, %v1788
      %v1790 = vrot.slane %v1664, 1
      %v1791 = vrot.slane %v1665, 1
      %v1792 = vsel %vm1724, %v1790, %v1791
      %v1793 = vrot.slane %v1666, 1
      %v1794 = vsel %vm1724, %v1791, %v1793
      %v1795 = vrot.slane %v1667, 1
      %v1796 = vrot.slane %v1668, 1
      %v1797 = vsel %vm1724, %v1795, %v1796
      %v1798 = vrot.slane %v1669, 1
      %v1799 = vsel %vm1724, %v1796, %v1798
      %v1800 = vrot.slane %v1670, 1
      %v1801 = vrot.slane %v1671, 1
      %v1802 = vsel %vm1724, %v1800, %v1801
      %v1803 = vrot.slane %v1672, 1
      %v1804 = vsel %vm1724, %v1801, %v1803
      %v1837 = vpack.c.bf16 %v1623, %v1622
      %v1838 = vpack.c.bf16 %v1626, %v1625
      %v1839 = vpack.c.bf16 %v1629, %v1628
      %v1840 = vpack.c.bf16 %v1632, %v1631
      %v1841 = vpack.c.bf16 %v1635, %v1634
      %v1842 = vpack.c.bf16 %v1638, %v1637
      %v1843 = vpack.c.bf16 %v1641, %v1640
      %v1844 = vpack.c.bf16 %v1644, %v1643
      %v1845 = vpack.c.bf16 %v1647, %v1646
      %v1846 = vpack.c.bf16 %v1650, %v1649
      %v1847 = vpack.c.bf16 %v1653, %v1652
      %v1848 = vpack.c.bf16 %v1656, %v1655
      %v1849 = vpack.c.bf16 %v1659, %v1658
      %v1850 = vpack.c.bf16 %v1662, %v1661
      %v1851 = vpack.c.bf16 %v1665, %v1664
      %v1852 = vpack.c.bf16 %v1668, %v1667
      %v1853 = vpack.c.bf16 %v1624, %v1624
      %v1854 = vpack.c.bf16 %v1627, %v1627
      %v1855 = vpack.c.bf16 %v1630, %v1630
      %v1856 = vpack.c.bf16 %v1633, %v1633
      %v1857 = vpack.c.bf16 %v1636, %v1636
      %v1858 = vpack.c.bf16 %v1639, %v1639
      %v1859 = vpack.c.bf16 %v1642, %v1642
      %v1860 = vpack.c.bf16 %v1645, %v1645
      %v1861 = vpack.c.bf16 %v1648, %v1648
      %v1862 = vpack.c.bf16 %v1651, %v1651
      %v1863 = vpack.c.bf16 %v1654, %v1654
      %v1864 = vpack.c.bf16 %v1657, %v1657
      %v1865 = vpack.c.bf16 %v1660, %v1660
      %v1866 = vpack.c.bf16 %v1663, %v1663
      %v1867 = vpack.c.bf16 %v1666, %v1666
      %v1868 = vpack.c.bf16 %v1669, %v1669
      %vm1869 = vsmask.f32 7424
      %v1871 = vshrl.u32 %v1837, 16
      %v1873 = vshll.u32 %v1837, 16
      %v1875 = vrot.slane %v1873, 1
      %v1876 = vor.u32 %v1871, %v1875
      %v1878 = vshll.u32 %v1853, 16
      %v1880 = vrot.slane %v1878, 1
      %v1881 = vsel %vm1869, %v1876, %v1880
      %v1883 = vshrl.u32 %v1838, 16
      %v1885 = vshll.u32 %v1838, 16
      %v1887 = vrot.slane %v1885, 1
      %v1888 = vor.u32 %v1883, %v1887
      %v1890 = vshll.u32 %v1854, 16
      %v1892 = vrot.slane %v1890, 1
      %v1893 = vsel %vm1869, %v1888, %v1892
      %v1895 = vshrl.u32 %v1839, 16
      %v1897 = vshll.u32 %v1839, 16
      %v1899 = vrot.slane %v1897, 1
      %v1900 = vor.u32 %v1895, %v1899
      %v1902 = vshll.u32 %v1855, 16
      %v1904 = vrot.slane %v1902, 1
      %v1905 = vsel %vm1869, %v1900, %v1904
      %v1907 = vshrl.u32 %v1840, 16
      %v1909 = vshll.u32 %v1840, 16
      %v1911 = vrot.slane %v1909, 1
      %v1912 = vor.u32 %v1907, %v1911
      %v1914 = vshll.u32 %v1856, 16
      %v1916 = vrot.slane %v1914, 1
      %v1917 = vsel %vm1869, %v1912, %v1916
      %v1919 = vshrl.u32 %v1841, 16
      %v1921 = vshll.u32 %v1841, 16
      %v1923 = vrot.slane %v1921, 1
      %v1924 = vor.u32 %v1919, %v1923
      %v1926 = vshll.u32 %v1857, 16
      %v1928 = vrot.slane %v1926, 1
      %v1929 = vsel %vm1869, %v1924, %v1928
      %v1931 = vshrl.u32 %v1842, 16
      %v1933 = vshll.u32 %v1842, 16
      %v1935 = vrot.slane %v1933, 1
      %v1936 = vor.u32 %v1931, %v1935
      %v1938 = vshll.u32 %v1858, 16
      %v1940 = vrot.slane %v1938, 1
      %v1941 = vsel %vm1869, %v1936, %v1940
      %v1943 = vshrl.u32 %v1843, 16
      %v1945 = vshll.u32 %v1843, 16
      %v1947 = vrot.slane %v1945, 1
      %v1948 = vor.u32 %v1943, %v1947
      %v1950 = vshll.u32 %v1859, 16
      %v1952 = vrot.slane %v1950, 1
      %v1953 = vsel %vm1869, %v1948, %v1952
      %v1955 = vshrl.u32 %v1844, 16
      %v1957 = vshll.u32 %v1844, 16
      %v1959 = vrot.slane %v1957, 1
      %v1960 = vor.u32 %v1955, %v1959
      %v1962 = vshll.u32 %v1860, 16
      %v1964 = vrot.slane %v1962, 1
      %v1965 = vsel %vm1869, %v1960, %v1964
      %v1967 = vshrl.u32 %v1845, 16
      %v1969 = vshll.u32 %v1845, 16
      %v1971 = vrot.slane %v1969, 1
      %v1972 = vor.u32 %v1967, %v1971
      %v1974 = vshll.u32 %v1861, 16
      %v1976 = vrot.slane %v1974, 1
      %v1977 = vsel %vm1869, %v1972, %v1976
      %v1979 = vshrl.u32 %v1846, 16
      %v1981 = vshll.u32 %v1846, 16
      %v1983 = vrot.slane %v1981, 1
      %v1984 = vor.u32 %v1979, %v1983
      %v1986 = vshll.u32 %v1862, 16
      %v1988 = vrot.slane %v1986, 1
      %v1989 = vsel %vm1869, %v1984, %v1988
      %v1991 = vshrl.u32 %v1847, 16
      %v1993 = vshll.u32 %v1847, 16
      %v1995 = vrot.slane %v1993, 1
      %v1996 = vor.u32 %v1991, %v1995
      %v1998 = vshll.u32 %v1863, 16
      %v2000 = vrot.slane %v1998, 1
      %v2001 = vsel %vm1869, %v1996, %v2000
      %v2003 = vshrl.u32 %v1848, 16
      %v2005 = vshll.u32 %v1848, 16
      %v2007 = vrot.slane %v2005, 1
      %v2008 = vor.u32 %v2003, %v2007
      %v2010 = vshll.u32 %v1864, 16
      %v2012 = vrot.slane %v2010, 1
      %v2013 = vsel %vm1869, %v2008, %v2012
      %v2015 = vshrl.u32 %v1849, 16
      %v2017 = vshll.u32 %v1849, 16
      %v2019 = vrot.slane %v2017, 1
      %v2020 = vor.u32 %v2015, %v2019
      %v2022 = vshll.u32 %v1865, 16
      %v2024 = vrot.slane %v2022, 1
      %v2025 = vsel %vm1869, %v2020, %v2024
      %v2027 = vshrl.u32 %v1850, 16
      %v2029 = vshll.u32 %v1850, 16
      %v2031 = vrot.slane %v2029, 1
      %v2032 = vor.u32 %v2027, %v2031
      %v2034 = vshll.u32 %v1866, 16
      %v2036 = vrot.slane %v2034, 1
      %v2037 = vsel %vm1869, %v2032, %v2036
      %v2039 = vshrl.u32 %v1851, 16
      %v2041 = vshll.u32 %v1851, 16
      %v2043 = vrot.slane %v2041, 1
      %v2044 = vor.u32 %v2039, %v2043
      %v2046 = vshll.u32 %v1867, 16
      %v2048 = vrot.slane %v2046, 1
      %v2049 = vsel %vm1869, %v2044, %v2048
      %v2051 = vshrl.u32 %v1852, 16
      %v2053 = vshll.u32 %v1852, 16
      %v2055 = vrot.slane %v2053, 1
      %v2056 = vor.u32 %v2051, %v2055
      %v2058 = vshll.u32 %v1868, 16
      %v2060 = vrot.slane %v2058, 1
      %v2061 = vsel %vm1869, %v2056, %v2060
      %vm2094 = vcmask 1046528
      %v2095 = vrot.slane %v1837, 1
      %v2096 = vrot.slane %v1853, 1
      %v2097 = vsel %vm2094, %v2095, %v2096
      %v2098 = vrot.slane %v1838, 1
      %v2099 = vrot.slane %v1854, 1
      %v2100 = vsel %vm2094, %v2098, %v2099
      %v2101 = vrot.slane %v1839, 1
      %v2102 = vrot.slane %v1855, 1
      %v2103 = vsel %vm2094, %v2101, %v2102
      %v2104 = vrot.slane %v1840, 1
      %v2105 = vrot.slane %v1856, 1
      %v2106 = vsel %vm2094, %v2104, %v2105
      %v2107 = vrot.slane %v1841, 1
      %v2108 = vrot.slane %v1857, 1
      %v2109 = vsel %vm2094, %v2107, %v2108
      %v2110 = vrot.slane %v1842, 1
      %v2111 = vrot.slane %v1858, 1
      %v2112 = vsel %vm2094, %v2110, %v2111
      %v2113 = vrot.slane %v1843, 1
      %v2114 = vrot.slane %v1859, 1
      %v2115 = vsel %vm2094, %v2113, %v2114
      %v2116 = vrot.slane %v1844, 1
      %v2117 = vrot.slane %v1860, 1
      %v2118 = vsel %vm2094, %v2116, %v2117
      %v2119 = vrot.slane %v1845, 1
      %v2120 = vrot.slane %v1861, 1
      %v2121 = vsel %vm2094, %v2119, %v2120
      %v2122 = vrot.slane %v1846, 1
      %v2123 = vrot.slane %v1862, 1
      %v2124 = vsel %vm2094, %v2122, %v2123
      %v2125 = vrot.slane %v1847, 1
      %v2126 = vrot.slane %v1863, 1
      %v2127 = vsel %vm2094, %v2125, %v2126
      %v2128 = vrot.slane %v1848, 1
      %v2129 = vrot.slane %v1864, 1
      %v2130 = vsel %vm2094, %v2128, %v2129
      %v2131 = vrot.slane %v1849, 1
      %v2132 = vrot.slane %v1865, 1
      %v2133 = vsel %vm2094, %v2131, %v2132
      %v2134 = vrot.slane %v1850, 1
      %v2135 = vrot.slane %v1866, 1
      %v2136 = vsel %vm2094, %v2134, %v2135
      %v2137 = vrot.slane %v1851, 1
      %v2138 = vrot.slane %v1867, 1
      %v2139 = vsel %vm2094, %v2137, %v2138
      %v2140 = vrot.slane %v1852, 1
      %v2141 = vrot.slane %v1868, 1
      %v2142 = vsel %vm2094, %v2140, %v2141
      %v2143 = vpack.c.bf16 %v1671, %v1670
      %v2144 = vpack.c.bf16 %v1672, %v1672
      %v2146 = vshrl.u32 %v2143, 16
      %v2148 = vshll.u32 %v2143, 16
      %v2150 = vrot.slane %v2148, 1
      %v2151 = vor.u32 %v2146, %v2150
      %v2153 = vshll.u32 %v2144, 16
      %v2155 = vrot.slane %v2153, 1
      %v2156 = vsel %vm1869, %v2151, %v2155
      %v2159 = vrot.slane %v2143, 1
      %v2160 = vrot.slane %v2144, 1
      %v2161 = vsel %vm2094, %v2159, %v2160
      %v2162 = vpack.c.bf16 %v1674, %v1673
      %v2163 = vpack.c.bf16 %v1675, %v1675
      %v2165 = vshrl.u32 %v2162, 16
      %v2167 = vshll.u32 %v2162, 16
      %v2169 = vrot.slane %v2167, 1
      %v2170 = vor.u32 %v2165, %v2169
      %v2172 = vshll.u32 %v2163, 16
      %v2174 = vrot.slane %v2172, 1
      %v2175 = vsel %vm1869, %v2170, %v2174
      %v2178 = vrot.slane %v2162, 1
      %v2179 = vrot.slane %v2163, 1
      %v2180 = vsel %vm2094, %v2178, %v2179
      %2181 = vrot.lane.b32.xlu0 %v1881, 64
      %v2182 = vpop.permute.xlu0 %2181
      %2183 = vrot.lane.b32.xlu0 %v1893, 64
      %v2184 = vpop.permute.xlu0 %2183
      %2185 = vrot.lane.b32.xlu0 %v1905, 64
      %v2186 = vpop.permute.xlu0 %2185
      %2187 = vrot.lane.b32.xlu0 %v1917, 64
      %v2188 = vpop.permute.xlu0 %2187
      %2189 = vrot.lane.b32.xlu0 %v1929, 64
      %v2190 = vpop.permute.xlu0 %2189
      %2191 = vrot.lane.b32.xlu0 %v1941, 64
      %v2192 = vpop.permute.xlu0 %2191
      %2193 = vrot.lane.b32.xlu0 %v1953, 64
      %v2194 = vpop.permute.xlu0 %2193
      %2195 = vrot.lane.b32.xlu0 %v1965, 64
      %v2196 = vpop.permute.xlu0 %2195
      %2197 = vrot.lane.b32.xlu0 %v1977, 64
      %v2198 = vpop.permute.xlu0 %2197
      %2199 = vrot.lane.b32.xlu0 %v1989, 64
      %v2200 = vpop.permute.xlu0 %2199
      %2201 = vrot.lane.b32.xlu0 %v2001, 64
      %v2202 = vpop.permute.xlu0 %2201
      %2203 = vrot.lane.b32.xlu0 %v2013, 64
      %v2204 = vpop.permute.xlu0 %2203
      %2205 = vrot.lane.b32.xlu0 %v2025, 64
      %v2206 = vpop.permute.xlu0 %2205
      %2207 = vrot.lane.b32.xlu0 %v2037, 64
      %v2208 = vpop.permute.xlu0 %2207
      %2209 = vrot.lane.b32.xlu0 %v2049, 64
      %v2210 = vpop.permute.xlu0 %2209
      %2211 = vrot.lane.b32.xlu0 %v2061, 64
      %v2212 = vpop.permute.xlu0 %2211
      %2213 = vrot.lane.b32.xlu0 %v1838, 64
      %v2214 = vpop.permute.xlu0 %2213
      %2215 = vrot.lane.b32.xlu0 %v1839, 64
      %v2216 = vpop.permute.xlu0 %2215
      %2217 = vrot.lane.b32.xlu0 %v1840, 64
      %v2218 = vpop.permute.xlu0 %2217
      %2219 = vrot.lane.b32.xlu0 %v1841, 64
      %v2220 = vpop.permute.xlu0 %2219
      %2221 = vrot.lane.b32.xlu0 %v1842, 64
      %v2222 = vpop.permute.xlu0 %2221
      %2223 = vrot.lane.b32.xlu0 %v1843, 64
      %v2224 = vpop.permute.xlu0 %2223
      %2225 = vrot.lane.b32.xlu0 %v1844, 64
      %v2226 = vpop.permute.xlu0 %2225
      %2227 = vrot.lane.b32.xlu0 %v1845, 64
      %v2228 = vpop.permute.xlu0 %2227
      %2229 = vrot.lane.b32.xlu0 %v1846, 64
      %v2230 = vpop.permute.xlu0 %2229
      %2231 = vrot.lane.b32.xlu0 %v1847, 64
      %v2232 = vpop.permute.xlu0 %2231
      %2233 = vrot.lane.b32.xlu0 %v1848, 64
      %v2234 = vpop.permute.xlu0 %2233
      %2235 = vrot.lane.b32.xlu0 %v1849, 64
      %v2236 = vpop.permute.xlu0 %2235
      %2237 = vrot.lane.b32.xlu0 %v1850, 64
      %v2238 = vpop.permute.xlu0 %2237
      %2239 = vrot.lane.b32.xlu0 %v1851, 64
      %v2240 = vpop.permute.xlu0 %2239
      %2241 = vrot.lane.b32.xlu0 %v1852, 64
      %v2242 = vpop.permute.xlu0 %2241
      %2243 = vrot.lane.b32.xlu0 %v2143, 64
      %v2244 = vpop.permute.xlu0 %2243
      %2245 = vrot.lane.b32.xlu0 %v2100, 64
      %v2246 = vpop.permute.xlu0 %2245
      %2247 = vrot.lane.b32.xlu0 %v2103, 64
      %v2248 = vpop.permute.xlu0 %2247
      %2249 = vrot.lane.b32.xlu0 %v2106, 64
      %v2250 = vpop.permute.xlu0 %2249
      %2251 = vrot.lane.b32.xlu0 %v2109, 64
      %v2252 = vpop.permute.xlu0 %2251
      %2253 = vrot.lane.b32.xlu0 %v2112, 64
      %v2254 = vpop.permute.xlu0 %2253
      %2255 = vrot.lane.b32.xlu0 %v2115, 64
      %v2256 = vpop.permute.xlu0 %2255
      %2257 = vrot.lane.b32.xlu0 %v2118, 64
      %v2258 = vpop.permute.xlu0 %2257
      %2259 = vrot.lane.b32.xlu0 %v2121, 64
      %v2260 = vpop.permute.xlu0 %2259
      %2261 = vrot.lane.b32.xlu0 %v2124, 64
      %v2262 = vpop.permute.xlu0 %2261
      %2263 = vrot.lane.b32.xlu0 %v2127, 64
      %v2264 = vpop.permute.xlu0 %2263
      %2265 = vrot.lane.b32.xlu0 %v2130, 64
      %v2266 = vpop.permute.xlu0 %2265
      %2267 = vrot.lane.b32.xlu0 %v2133, 64
      %v2268 = vpop.permute.xlu0 %2267
      %2269 = vrot.lane.b32.xlu0 %v2136, 64
      %v2270 = vpop.permute.xlu0 %2269
      %2271 = vrot.lane.b32.xlu0 %v2139, 64
      %v2272 = vpop.permute.xlu0 %2271
      %2273 = vrot.lane.b32.xlu0 %v2142, 64
      %v2274 = vpop.permute.xlu0 %2273
      %2275 = vrot.lane.b32.xlu0 %v2161, 64
      %v2276 = vpop.permute.xlu0 %2275
      %2277 = vrot.lane.b32.xlu0 %v2156, 64
      %v2278 = vpop.permute.xlu0 %2277
      %2279 = vrot.lane.b32.xlu0 %v2175, 64
      %v2280 = vpop.permute.xlu0 %2279
      %vm2281 = vcmask 523264
      %v2283 = vsel %vm2281, %v1837, %v2182
      %v2286 = vsel %vm2281, %v1838, %v2184
      %v2289 = vsel %vm2281, %v1839, %v2186
      %v2292 = vsel %vm2281, %v1840, %v2188
      %v2295 = vsel %vm2281, %v1841, %v2190
      %v2298 = vsel %vm2281, %v1842, %v2192
      %v2301 = vsel %vm2281, %v1843, %v2194
      %v2304 = vsel %vm2281, %v1844, %v2196
      %v2307 = vsel %vm2281, %v1845, %v2198
      %v2310 = vsel %vm2281, %v1846, %v2200
      %v2313 = vsel %vm2281, %v1847, %v2202
      %v2316 = vsel %vm2281, %v1848, %v2204
      %v2319 = vsel %vm2281, %v1849, %v2206
      %v2322 = vsel %vm2281, %v1850, %v2208
      %v2325 = vsel %vm2281, %v1851, %v2210
      %v2328 = vsel %vm2281, %v1852, %v2212
      %v2332 = vsel %vm2281, %v2097, %v2214
      %v2336 = vsel %vm2281, %v2100, %v2216
      %v2340 = vsel %vm2281, %v2103, %v2218
      %v2344 = vsel %vm2281, %v2106, %v2220
      %v2348 = vsel %vm2281, %v2109, %v2222
      %v2352 = vsel %vm2281, %v2112, %v2224
      %v2356 = vsel %vm2281, %v2115, %v2226
      %v2360 = vsel %vm2281, %v2118, %v2228
      %v2364 = vsel %vm2281, %v2121, %v2230
      %v2368 = vsel %vm2281, %v2124, %v2232
      %v2372 = vsel %vm2281, %v2127, %v2234
      %v2376 = vsel %vm2281, %v2130, %v2236
      %v2380 = vsel %vm2281, %v2133, %v2238
      %v2384 = vsel %vm2281, %v2136, %v2240
      %v2388 = vsel %vm2281, %v2139, %v2242
      %v2392 = vsel %vm2281, %v2142, %v2244
      %v2396 = vsel %vm2281, %v1893, %v2246
      %v2400 = vsel %vm2281, %v1905, %v2248
      %v2404 = vsel %vm2281, %v1917, %v2250
      %v2408 = vsel %vm2281, %v1929, %v2252
      %v2412 = vsel %vm2281, %v1941, %v2254
      %v2416 = vsel %vm2281, %v1953, %v2256
      %v2420 = vsel %vm2281, %v1965, %v2258
      %v2424 = vsel %vm2281, %v1977, %v2260
      %v2428 = vsel %vm2281, %v1989, %v2262
      %v2432 = vsel %vm2281, %v2001, %v2264
      %v2436 = vsel %vm2281, %v2013, %v2266
      %v2440 = vsel %vm2281, %v2025, %v2268
      %v2444 = vsel %vm2281, %v2037, %v2270
      %v2448 = vsel %vm2281, %v2049, %v2272
      %v2452 = vsel %vm2281, %v2061, %v2274
      %v2456 = vsel %vm2281, %v2156, %v2276
      %v2459 = vsel %vm2281, %v2143, %v2278
      %v2462 = vsel %vm2281, %v2162, %v2280
      %s2464 = smul.u32 %s23, 72
      %s2465 = smul.addr %s2464, 4
      %s2466 = scalar_lea.vmem %s2, %s2465
      %v2467 = vld [vmem:[%s2466] sm:$0xf]
      %v2468 = vld [vmem:[%s2466 + $0x4] sm:$0xf]
      %v2469 = vld [vmem:[%s2466 + $0x8] sm:$0xf]
      %v2470 = vld [vmem:[%s2466 + $0xc] sm:$0xf]
      %v2471 = vld [vmem:[%s2466 + $0x10] sm:$0xf]
      %v2472 = vld [vmem:[%s2466 + $0x14] sm:$0xf]
      %v2473 = vld [vmem:[%s2466 + $0x18] sm:$0xf]
      %v2474 = vld [vmem:[%s2466 + $0x1c] sm:$0xf]
      %v2475 = vld [vmem:[%s2466 + $0x20] sm:$0xf]
      %v2476 = vld [vmem:[%s2466 + $0x24] sm:$0xf]
      %v2477 = vld [vmem:[%s2466 + $0x28] sm:$0xf]
      %v2478 = vld [vmem:[%s2466 + $0x2c] sm:$0xf]
      %v2479 = vld [vmem:[%s2466 + $0x30] sm:$0xf]
      %v2480 = vld [vmem:[%s2466 + $0x34] sm:$0xf]
      %v2481 = vld [vmem:[%s2466 + $0x38] sm:$0xf]
      %v2482 = vld [vmem:[%s2466 + $0x3c] sm:$0xf]
      %v2483 = vld [vmem:[%s2466 + $0x40] sm:$0xf]
      %v2484 = vld [vmem:[%s2466 + $0x44] sm:$0xf]
      %v2485 = vld [vmem:[%s2466 + $0x48] sm:$0xf]
      %v2486 = vld [vmem:[%s2466 + $0x4c] sm:$0xf]
      %v2487 = vld [vmem:[%s2466 + $0x50] sm:$0xf]
      %v2488 = vld [vmem:[%s2466 + $0x54] sm:$0xf]
      %v2489 = vld [vmem:[%s2466 + $0x58] sm:$0xf]
      %v2490 = vld [vmem:[%s2466 + $0x5c] sm:$0xf]
      %v2491 = vld [vmem:[%s2466 + $0x60] sm:$0xf]
      %v2492 = vld [vmem:[%s2466 + $0x64] sm:$0xf]
      %v2493 = vld [vmem:[%s2466 + $0x68] sm:$0xf]
      %v2494 = vld [vmem:[%s2466 + $0x6c] sm:$0xf]
      %v2495 = vld [vmem:[%s2466 + $0x70] sm:$0xf]
      %v2496 = vld [vmem:[%s2466 + $0x74] sm:$0xf]
      %v2497 = vld [vmem:[%s2466 + $0x78] sm:$0xf]
      %v2498 = vld [vmem:[%s2466 + $0x7c] sm:$0xf]
      %v2499 = vld [vmem:[%s2466 + $0x80] sm:$0xf]
      %v2500 = vld [vmem:[%s2466 + $0x84] sm:$0xf]
      %v2501 = vld [vmem:[%s2466 + $0x88] sm:$0xf]
      %v2502 = vld [vmem:[%s2466 + $0x8c] sm:$0xf]
      %v2503 = vld [vmem:[%s2466 + $0x90] sm:$0xf]
      %v2504 = vld [vmem:[%s2466 + $0x94] sm:$0xf]
      %v2505 = vld [vmem:[%s2466 + $0x98] sm:$0xf]
      %v2506 = vld [vmem:[%s2466 + $0x9c] sm:$0xf]
      %v2507 = vld [vmem:[%s2466 + $0xa0] sm:$0xf]
      %v2508 = vld [vmem:[%s2466 + $0xa4] sm:$0xf]
      %v2509 = vld [vmem:[%s2466 + $0xa8] sm:$0xf]
      %v2510 = vld [vmem:[%s2466 + $0xac] sm:$0xf]
      %v2511 = vld [vmem:[%s2466 + $0xb0] sm:$0xf]
      %v2512 = vld [vmem:[%s2466 + $0xb4] sm:$0xf]
      %v2513 = vld [vmem:[%s2466 + $0xb8] sm:$0xf]
      %v2514 = vld [vmem:[%s2466 + $0xbc] sm:$0xf]
      %v2515 = vld [vmem:[%s2466 + $0xc0] sm:$0xf]
      %v2516 = vld [vmem:[%s2466 + $0xc4] sm:$0xf]
      %v2517 = vld [vmem:[%s2466 + $0xc8] sm:$0xf]
      %v2518 = vld [vmem:[%s2466 + $0xcc] sm:$0xf]
      %v2519 = vld [vmem:[%s2466 + $0xd0] sm:$0xf]
      %v2520 = vld [vmem:[%s2466 + $0xd4] sm:$0xf]
      %v2521 = vld [vmem:[%s2466 + $0xd8] sm:$0xf]
      %v2522 = vld [vmem:[%s2466 + $0xdc] sm:$0xf]
      %v2523 = vld [vmem:[%s2466 + $0xe0] sm:$0xf]
      %v2524 = vld [vmem:[%s2466 + $0xe4] sm:$0xf]
      %v2525 = vld [vmem:[%s2466 + $0xe8] sm:$0xf]
      %v2526 = vld [vmem:[%s2466 + $0xec] sm:$0xf]
      %v2527 = vld [vmem:[%s2466 + $0xf0] sm:$0xf]
      %v2528 = vld [vmem:[%s2466 + $0xf4] sm:$0xf]
      %v2529 = vld [vmem:[%s2466 + $0xf8] sm:$0xf]
      %v2530 = vld [vmem:[%s2466 + $0xfc] sm:$0xf]
      %v2531 = vld [vmem:[%s2466 + $0x100] sm:$0xf]
      %v2532 = vld [vmem:[%s2466 + $0x104] sm:$0xf]
      %v2533 = vld [vmem:[%s2466 + $0x108] sm:$0xf]
      %v2534 = vld [vmem:[%s2466 + $0x10c] sm:$0xf]
      %v2535 = vld [vmem:[%s2466 + $0x110] sm:$0xf]
      %v2536 = vld [vmem:[%s2466 + $0x114] sm:$0xf]
      %v2537 = vld [vmem:[%s2466 + $0x118] sm:$0xf]
      %v2538 = vld [vmem:[%s2466 + $0x11c] sm:$0xf]
      %s2539 = scalar_lea.vmem %s3, %s23
      %v2540 = vld [vmem:[%s2539] sm:$0x1]
      %v2542 = vlaneseq
      %v2543 = vshrl.u32 %v2542, 7
      %v2544 = vsub.s32 0, %v2543
      %v2545 = vrot.slane %v2540, %v2544
      %v2619 = vunpack.c.l.b16 %v2467
      %v2620 = vunpack.c.l.b16 %v2468
      %v2621 = vunpack.c.l.b16 %v2469
      %v2622 = vunpack.c.l.b16 %v2470
      %v2623 = vunpack.c.l.b16 %v2471
      %v2624 = vunpack.c.l.b16 %v2472
      %v2625 = vunpack.c.l.b16 %v2473
      %v2626 = vunpack.c.l.b16 %v2474
      %v2627 = vunpack.c.l.b16 %v2475
      %v2628 = vunpack.c.l.b16 %v2476
      %v2629 = vunpack.c.l.b16 %v2477
      %v2630 = vunpack.c.l.b16 %v2478
      %v2631 = vunpack.c.l.b16 %v2479
      %v2632 = vunpack.c.l.b16 %v2480
      %v2633 = vunpack.c.l.b16 %v2481
      %v2634 = vunpack.c.l.b16 %v2482
      %v2635 = vunpack.c.l.b16 %v2483
      %v2636 = vunpack.c.l.b16 %v2484
      %v2637 = vunpack.c.l.b16 %v2485
      %v2638 = vunpack.c.l.b16 %v2486
      %v2639 = vunpack.c.l.b16 %v2487
      %v2640 = vunpack.c.l.b16 %v2488
      %v2641 = vunpack.c.l.b16 %v2489
      %v2642 = vunpack.c.l.b16 %v2490
      %v2643 = vunpack.c.l.b16 %v2491
      %v2644 = vunpack.c.l.b16 %v2492
      %v2645 = vunpack.c.l.b16 %v2493
      %v2646 = vunpack.c.l.b16 %v2494
      %v2647 = vunpack.c.l.b16 %v2495
      %v2648 = vunpack.c.l.b16 %v2496
      %v2649 = vunpack.c.l.b16 %v2497
      %v2650 = vunpack.c.l.b16 %v2498
      %v2651 = vunpack.c.l.b16 %v2499
      %v2652 = vunpack.c.l.b16 %v2500
      %v2653 = vunpack.c.l.b16 %v2501
      %v2654 = vunpack.c.l.b16 %v2502
      %v2655 = vunpack.c.l.b16 %v2503
      %v2656 = vunpack.c.l.b16 %v2504
      %v2657 = vunpack.c.l.b16 %v2505
      %v2658 = vunpack.c.l.b16 %v2506
      %v2659 = vunpack.c.l.b16 %v2507
      %v2660 = vunpack.c.l.b16 %v2508
      %v2661 = vunpack.c.l.b16 %v2509
      %v2662 = vunpack.c.l.b16 %v2510
      %v2663 = vunpack.c.l.b16 %v2511
      %v2664 = vunpack.c.l.b16 %v2512
      %v2665 = vunpack.c.l.b16 %v2513
      %v2666 = vunpack.c.l.b16 %v2514
      %v2667 = vunpack.c.l.b16 %v2515
      %v2668 = vunpack.c.l.b16 %v2516
      %v2669 = vunpack.c.l.b16 %v2517
      %v2670 = vunpack.c.l.b16 %v2518
      %v2671 = vunpack.c.l.b16 %v2519
      %v2672 = vunpack.c.l.b16 %v2520
      %v2673 = vunpack.c.l.b16 %v2521
      %v2674 = vunpack.c.l.b16 %v2522
      %v2675 = vunpack.c.l.b16 %v2523
      %v2676 = vunpack.c.l.b16 %v2524
      %v2677 = vunpack.c.l.b16 %v2525
      %v2678 = vunpack.c.l.b16 %v2526
      %v2679 = vunpack.c.l.b16 %v2527
      %v2680 = vunpack.c.l.b16 %v2528
      %v2681 = vunpack.c.l.b16 %v2529
      %v2682 = vunpack.c.l.b16 %v2530
      %v2683 = vunpack.c.l.b16 %v2531
      %v2684 = vunpack.c.l.b16 %v2532
      %v2685 = vunpack.c.l.b16 %v2533
      %v2686 = vunpack.c.l.b16 %v2534
      %v2687 = vunpack.c.l.b16 %v2535
      %v2688 = vunpack.c.l.b16 %v2536
      %v2689 = vunpack.c.l.b16 %v2537
      %v2690 = vunpack.c.l.b16 %v2538
      %v2691 = vpack.c.b16 %v2620, %v2619
      %v2692 = vpack.c.b16 %v2622, %v2621
      %v2693 = vpack.c.b16 %v2624, %v2623
      %v2694 = vpack.c.b16 %v2626, %v2625
      %v2695 = vpack.c.b16 %v2628, %v2627
      %v2696 = vpack.c.b16 %v2630, %v2629
      %v2697 = vpack.c.b16 %v2632, %v2631
      %v2698 = vpack.c.b16 %v2634, %v2633
      %v2699 = vpack.c.b16 %v2636, %v2635
      %v2700 = vpack.c.b16 %v2638, %v2637
      %v2701 = vpack.c.b16 %v2640, %v2639
      %v2702 = vpack.c.b16 %v2642, %v2641
      %v2703 = vpack.c.b16 %v2644, %v2643
      %v2704 = vpack.c.b16 %v2646, %v2645
      %v2705 = vpack.c.b16 %v2648, %v2647
      %v2706 = vpack.c.b16 %v2650, %v2649
      %v2707 = vpack.c.b16 %v2652, %v2651
      %v2708 = vpack.c.b16 %v2654, %v2653
      %v2709 = vpack.c.b16 %v2656, %v2655
      %v2710 = vpack.c.b16 %v2658, %v2657
      %v2711 = vpack.c.b16 %v2660, %v2659
      %v2712 = vpack.c.b16 %v2662, %v2661
      %v2713 = vpack.c.b16 %v2664, %v2663
      %v2714 = vpack.c.b16 %v2666, %v2665
      %v2715 = vpack.c.b16 %v2668, %v2667
      %v2716 = vpack.c.b16 %v2670, %v2669
      %v2717 = vpack.c.b16 %v2672, %v2671
      %v2718 = vpack.c.b16 %v2674, %v2673
      %v2719 = vpack.c.b16 %v2676, %v2675
      %v2720 = vpack.c.b16 %v2678, %v2677
      %v2721 = vpack.c.b16 %v2680, %v2679
      %v2722 = vpack.c.b16 %v2682, %v2681
      %v2723 = vpack.c.b16 %v2684, %v2683
      %v2724 = vpack.c.b16 %v2686, %v2685
      %v2725 = vpack.c.b16 %v2688, %v2687
      %v2726 = vpack.c.b16 %v2690, %v2689
      %v2763 = vsel %vm2281, %v2103, 0
      %v2765 = vsel %vm2281, %v2106, 0
      %v2767 = vsel %vm2281, %v2109, 0
      %v2769 = vsel %vm2281, %v2112, 0
      %v2771 = vsel %vm2281, %v2115, 0
      %v2773 = vsel %vm2281, %v2118, 0
      %v2775 = vsel %vm2281, %v2121, 0
      %v2777 = vsel %vm2281, %v2124, 0
      %v2779 = vsel %vm2281, %v2127, 0
      %v2781 = vsel %vm2281, %v2130, 0
      %v2783 = vsel %vm2281, %v2133, 0
      %v2785 = vsel %vm2281, %v2136, 0
      %v2787 = vsel %vm2281, %v2139, 0
      %v2789 = vsel %vm2281, %v2142, 0
      %v2792 = vsel %vm2281, %v2161, 0
      %v2795 = vsel %vm2281, %v2180, 0
      %2797 = vmatprep.subr.bf16.mxu0 0
      %2798 = vmatpush1.bf16.msra.mxu0 %v2691
      %2799 = vmatprep.subr.bf16.mxu0 0
      %2800 = vmatpush1.bf16.msra.mxu0 %v2692
      %2801 = vmatprep.subr.bf16.mxu0 0
      %2802 = vmatpush1.bf16.msra.mxu0 %v2693
      %2803 = vmatprep.subr.bf16.mxu0 0
      %2804 = vmatpush1.bf16.msra.mxu0 %v2694
      %2805 = vmatprep.subr.bf16.mxu0 0
      %2806 = vmatpush1.bf16.msra.mxu0 %v2695
      %2807 = vmatprep.subr.bf16.mxu0 0
      %2808 = vmatpush1.bf16.msra.mxu0 %v2696
      %2809 = vmatprep.subr.bf16.mxu0 0
      %2810 = vmatpush1.bf16.msra.mxu0 %v2697
      %2811 = vmatprep.subr.bf16.mxu0 0
      %2812 = vmatpush1.bf16.msra.mxu0 %v2698
      %2813 = vmatprep.subr.bf16.mxu0 0
      %2814 = vmatpush1.bf16.msra.mxu0 %v2699
      %2815 = vmatprep.subr.bf16.mxu0 0
      %2816 = vmatpush1.bf16.msra.mxu0 %v2700
      %2817 = vmatprep.subr.bf16.mxu0 0
      %2818 = vmatpush1.bf16.msra.mxu0 %v2701
      %2819 = vmatprep.subr.bf16.mxu0 0
      %2820 = vmatpush1.bf16.msra.mxu0 %v2702
      %2821 = vmatprep.subr.bf16.mxu0 0
      %2822 = vmatpush1.bf16.msra.mxu0 %v2703
      %2823 = vmatprep.subr.bf16.mxu0 0
      %2824 = vmatpush1.bf16.msra.mxu0 %v2704
      %2825 = vmatprep.subr.bf16.mxu0 0
      %2826 = vmatpush1.bf16.msra.mxu0 %v2705
      %2827 = vmatprep.subr.bf16.mxu0 0
      %2828 = vmatpush1.bf16.msra.mxu0 %v2706
      %2829 = vmatprep.mubr.bf16.mxu0 %v2332
      %2830 = vmatmul.mubr.bf16.gmra.mrb[0].mxu0 %v2283
      %v2831 = vpop.f32.mrb[0].mxu0
      %v2832 = vadd.f32 %v2545, %v2831
      %v2833 = vpop.f32.mrb[0].mxu0
      %v2834 = vpop.f32.mrb[0].mxu0
      %v2835 = vadd.f32 %v2545, %v2834
      %v2836 = vpop.f32.mrb[0].mxu0
      %2837 = vmatprep.mubr.bf16.mxu0 %v2336
      %2838 = vmatmul.mubr.bf16.gmra.mrb[0].mxu0 %v2286
      %v2839 = vpop.f32.mrb[0].mxu0
      %v2840 = vadd.f32 %v2545, %v2839
      %v2841 = vpop.f32.mrb[0].mxu0
      %v2842 = vpop.f32.mrb[0].mxu0
      %v2843 = vadd.f32 %v2545, %v2842
      %v2844 = vpop.f32.mrb[0].mxu0
      %2845 = vmatprep.mubr.bf16.mxu0 %v2340
      %2846 = vmatmul.mubr.bf16.gmra.mrb[0].mxu0 %v2289
      %v2847 = vpop.f32.mrb[0].mxu0
      %v2848 = vadd.f32 %v2545, %v2847
      %v2849 = vpop.f32.mrb[0].mxu0
      %v2850 = vpop.f32.mrb[0].mxu0
      %v2851 = vadd.f32 %v2545, %v2850
      %v2852 = vpop.f32.mrb[0].mxu0
      %2853 = vmatprep.mubr.bf16.mxu0 %v2344
      %2854 = vmatmul.mubr.bf16.gmra.mrb[0].mxu0 %v2292
      %v2855 = vpop.f32.mrb[0].mxu0
      %v2856 = vadd.f32 %v2545, %v2855
      %v2857 = vpop.f32.mrb[0].mxu0
      %v2858 = vpop.f32.mrb[0].mxu0
      %v2859 = vadd.f32 %v2545, %v2858
      %v2860 = vpop.f32.mrb[0].mxu0
      %2861 = vmatprep.mubr.bf16.mxu0 %v2348
      %2862 = vmatmul.mubr.bf16.gmra.mrb[0].mxu0 %v2295
      %v2863 = vpop.f32.mrb[0].mxu0
      %v2864 = vadd.f32 %v2545, %v2863
      %v2865 = vpop.f32.mrb[0].mxu0
      %v2866 = vpop.f32.mrb[0].mxu0
      %v2867 = vadd.f32 %v2545, %v2866
      %v2868 = vpop.f32.mrb[0].mxu0
      %2869 = vmatprep.mubr.bf16.mxu0 %v2352
      %2870 = vmatmul.mubr.bf16.gmra.mrb[0].mxu0 %v2298
      %v2871 = vpop.f32.mrb[0].mxu0
      %v2872 = vadd.f32 %v2545, %v2871
      %v2873 = vpop.f32.mrb[0].mxu0
      %v2874 = vpop.f32.mrb[0].mxu0
      %v2875 = vadd.f32 %v2545, %v2874
      %v2876 = vpop.f32.mrb[0].mxu0
      %2877 = vmatprep.mubr.bf16.mxu0 %v2356
      %2878 = vmatmul.mubr.bf16.gmra.mrb[0].mxu0 %v2301
      %v2879 = vpop.f32.mrb[0].mxu0
      %v2880 = vadd.f32 %v2545, %v2879
      %v2881 = vpop.f32.mrb[0].mxu0
      %v2882 = vpop.f32.mrb[0].mxu0
      %v2883 = vadd.f32 %v2545, %v2882
      %v2884 = vpop.f32.mrb[0].mxu0
      %2885 = vmatprep.mubr.bf16.mxu0 %v2360
      %2886 = vmatmul.mubr.bf16.gmra.mrb[0].mxu0 %v2304
      %v2887 = vpop.f32.mrb[0].mxu0
      %v2888 = vadd.f32 %v2545, %v2887
      %v2889 = vpop.f32.mrb[0].mxu0
      %v2890 = vpop.f32.mrb[0].mxu0
      %v2891 = vadd.f32 %v2545, %v2890
      %v2892 = vpop.f32.mrb[0].mxu0
      %2893 = vmatprep.mubr.bf16.mxu0 %v2364
      %2894 = vmatmul.mubr.bf16.gmra.mrb[0].mxu0 %v2307
      %v2895 = vpop.f32.mrb[0].mxu0
      %v2896 = vadd.f32 %v2545, %v2895
      %v2897 = vpop.f32.mrb[0].mxu0
      %v2898 = vpop.f32.mrb[0].mxu0
      %v2899 = vadd.f32 %v2545, %v2898
      %v2900 = vpop.f32.mrb[0].mxu0
      %2901 = vmatprep.mubr.bf16.mxu0 %v2368
      %2902 = vmatmul.mubr.bf16.gmra.mrb[0].mxu0 %v2310
      %v2903 = vpop.f32.mrb[0].mxu0
      %v2904 = vadd.f32 %v2545, %v2903
      %v2905 = vpop.f32.mrb[0].mxu0
      %v2906 = vpop.f32.mrb[0].mxu0
      %v2907 = vadd.f32 %v2545, %v2906
      %v2908 = vpop.f32.mrb[0].mxu0
      %2909 = vmatprep.mubr.bf16.mxu0 %v2372
      %2910 = vmatmul.mubr.bf16.gmra.mrb[0].mxu0 %v2313
      %v2911 = vpop.f32.mrb[0].mxu0
      %v2912 = vadd.f32 %v2545, %v2911
      %v2913 = vpop.f32.mrb[0].mxu0
      %v2914 = vpop.f32.mrb[0].mxu0
      %v2915 = vadd.f32 %v2545, %v2914
      %v2916 = vpop.f32.mrb[0].mxu0
      %2917 = vmatprep.mubr.bf16.mxu0 %v2376
      %2918 = vmatmul.mubr.bf16.gmra.mrb[0].mxu0 %v2316
      %v2919 = vpop.f32.mrb[0].mxu0
      %v2920 = vadd.f32 %v2545, %v2919
      %v2921 = vpop.f32.mrb[0].mxu0
      %v2922 = vpop.f32.mrb[0].mxu0
      %v2923 = vadd.f32 %v2545, %v2922
      %v2924 = vpop.f32.mrb[0].mxu0
      %2925 = vmatprep.mubr.bf16.mxu0 %v2380
      %2926 = vmatmul.mubr.bf16.gmra.mrb[0].mxu0 %v2319
      %v2927 = vpop.f32.mrb[0].mxu0
      %v2928 = vadd.f32 %v2545, %v2927
      %v2929 = vpop.f32.mrb[0].mxu0
      %v2930 = vpop.f32.mrb[0].mxu0
      %v2931 = vadd.f32 %v2545, %v2930
      %v2932 = vpop.f32.mrb[0].mxu0
      %2933 = vmatprep.mubr.bf16.mxu0 %v2384
      %2934 = vmatmul.mubr.bf16.gmra.mrb[0].mxu0 %v2322
      %v2935 = vpop.f32.mrb[0].mxu0
      %v2936 = vadd.f32 %v2545, %v2935
      %v2937 = vpop.f32.mrb[0].mxu0
      %v2938 = vpop.f32.mrb[0].mxu0
      %v2939 = vadd.f32 %v2545, %v2938
      %v2940 = vpop.f32.mrb[0].mxu0
      %2941 = vmatprep.mubr.bf16.mxu0 %v2388
      %2942 = vmatmul.mubr.bf16.gmra.mrb[0].mxu0 %v2325
      %v2943 = vpop.f32.mrb[0].mxu0
      %v2944 = vadd.f32 %v2545, %v2943
      %v2945 = vpop.f32.mrb[0].mxu0
      %v2946 = vpop.f32.mrb[0].mxu0
      %v2947 = vadd.f32 %v2545, %v2946
      %v2948 = vpop.f32.mrb[0].mxu0
      %2949 = vmatprep.mubr.bf16.mxu0 %v2392
      %2950 = vmatmul.mubr.bf16.gmra.mrb[0].mxu0 %v2328
      %v2951 = vpop.f32.mrb[0].mxu0
      %v2952 = vadd.f32 %v2545, %v2951
      %v2953 = vpop.f32.mrb[0].mxu0
      %v2954 = vpop.f32.mrb[0].mxu0
      %v2955 = vadd.f32 %v2545, %v2954
      %v2956 = vpop.f32.mrb[0].mxu0
      %2957 = vdwg.mxu0
      %2958 = vmatprep.subr.bf16.mxu0 0
      %2959 = vmatpush1.bf16.msra.mxu0 %v2707
      %2960 = vmatprep.subr.bf16.mxu0 0
      %2961 = vmatpush1.bf16.msra.mxu0 %v2708
      %2962 = vmatprep.subr.bf16.mxu0 0
      %2963 = vmatpush1.bf16.msra.mxu0 %v2709
      %2964 = vmatprep.subr.bf16.mxu0 0
      %2965 = vmatpush1.bf16.msra.mxu0 %v2710
      %2966 = vmatprep.subr.bf16.mxu0 0
      %2967 = vmatpush1.bf16.msra.mxu0 %v2711
      %2968 = vmatprep.subr.bf16.mxu0 0
      %2969 = vmatpush1.bf16.msra.mxu0 %v2712
      %2970 = vmatprep.subr.bf16.mxu0 0
      %2971 = vmatpush1.bf16.msra.mxu0 %v2713
      %2972 = vmatprep.subr.bf16.mxu0 0
      %2973 = vmatpush1.bf16.msra.mxu0 %v2714
      %2974 = vmatprep.subr.bf16.mxu0 0
      %2975 = vmatpush1.bf16.msra.mxu0 %v2715
      %2976 = vmatprep.subr.bf16.mxu0 0
      %2977 = vmatpush1.bf16.msra.mxu0 %v2716
      %2978 = vmatprep.subr.bf16.mxu0 0
      %2979 = vmatpush1.bf16.msra.mxu0 %v2717
      %2980 = vmatprep.subr.bf16.mxu0 0
      %2981 = vmatpush1.bf16.msra.mxu0 %v2718
      %2982 = vmatprep.subr.bf16.mxu0 0
      %2983 = vmatpush1.bf16.msra.mxu0 %v2719
      %2984 = vmatprep.subr.bf16.mxu0 0
      %2985 = vmatpush1.bf16.msra.mxu0 %v2720
      %2986 = vmatprep.subr.bf16.mxu0 0
      %2987 = vmatpush1.bf16.msra.mxu0 %v2721
      %2988 = vmatprep.subr.bf16.mxu0 0
      %2989 = vmatpush1.bf16.msra.mxu0 %v2722
      %2990 = vmatprep.mubr.bf16.mxu0 %v2289
      %2991 = vmatmul.mubr.bf16.gmra.mrb[0].mxu0 %v2396
      %v2992 = vpop.f32.mrb[0].mxu0
      %v2993 = vadd.f32 %v2832, %v2992
      %v2994 = vpop.f32.mrb[0].mxu0
      %v2995 = vpop.f32.mrb[0].mxu0
      %v2996 = vadd.f32 %v2835, %v2995
      %v2997 = vpop.f32.mrb[0].mxu0
      %2998 = vmatprep.mubr.bf16.mxu0 %v2292
      %2999 = vmatmul.mubr.bf16.gmra.mrb[0].mxu0 %v2400
      %v3000 = vpop.f32.mrb[0].mxu0
      %v3001 = vadd.f32 %v2840, %v3000
      %v3002 = vpop.f32.mrb[0].mxu0
      %v3003 = vpop.f32.mrb[0].mxu0
      %v3004 = vadd.f32 %v2843, %v3003
      %v3005 = vpop.f32.mrb[0].mxu0
      %3006 = vmatprep.mubr.bf16.mxu0 %v2295
      %3007 = vmatmul.mubr.bf16.gmra.mrb[0].mxu0 %v2404
      %v3008 = vpop.f32.mrb[0].mxu0
      %v3009 = vadd.f32 %v2848, %v3008
      %v3010 = vpop.f32.mrb[0].mxu0
      %v3011 = vpop.f32.mrb[0].mxu0
      %v3012 = vadd.f32 %v2851, %v3011
      %v3013 = vpop.f32.mrb[0].mxu0
      %3014 = vmatprep.mubr.bf16.mxu0 %v2298
      %3015 = vmatmul.mubr.bf16.gmra.mrb[0].mxu0 %v2408
      %v3016 = vpop.f32.mrb[0].mxu0
      %v3017 = vadd.f32 %v2856, %v3016
      %v3018 = vpop.f32.mrb[0].mxu0
      %v3019 = vpop.f32.mrb[0].mxu0
      %v3020 = vadd.f32 %v2859, %v3019
      %v3021 = vpop.f32.mrb[0].mxu0
      %3022 = vmatprep.mubr.bf16.mxu0 %v2301
      %3023 = vmatmul.mubr.bf16.gmra.mrb[0].mxu0 %v2412
      %v3024 = vpop.f32.mrb[0].mxu0
      %v3025 = vadd.f32 %v2864, %v3024
      %v3026 = vpop.f32.mrb[0].mxu0
      %v3027 = vpop.f32.mrb[0].mxu0
      %v3028 = vadd.f32 %v2867, %v3027
      %v3029 = vpop.f32.mrb[0].mxu0
      %3030 = vmatprep.mubr.bf16.mxu0 %v2304
      %3031 = vmatmul.mubr.bf16.gmra.mrb[0].mxu0 %v2416
      %v3032 = vpop.f32.mrb[0].mxu0
      %v3033 = vadd.f32 %v2872, %v3032
      %v3034 = vpop.f32.mrb[0].mxu0
      %v3035 = vpop.f32.mrb[0].mxu0
      %v3036 = vadd.f32 %v2875, %v3035
      %v3037 = vpop.f32.mrb[0].mxu0
      %3038 = vmatprep.mubr.bf16.mxu0 %v2307
      %3039 = vmatmul.mubr.bf16.gmra.mrb[0].mxu0 %v2420
      %v3040 = vpop.f32.mrb[0].mxu0
      %v3041 = vadd.f32 %v2880, %v3040
      %v3042 = vpop.f32.mrb[0].mxu0
      %v3043 = vpop.f32.mrb[0].mxu0
      %v3044 = vadd.f32 %v2883, %v3043
      %v3045 = vpop.f32.mrb[0].mxu0
      %3046 = vmatprep.mubr.bf16.mxu0 %v2310
      %3047 = vmatmul.mubr.bf16.gmra.mrb[0].mxu0 %v2424
      %v3048 = vpop.f32.mrb[0].mxu0
      %v3049 = vadd.f32 %v2888, %v3048
      %v3050 = vpop.f32.mrb[0].mxu0
      %v3051 = vpop.f32.mrb[0].mxu0
      %v3052 = vadd.f32 %v2891, %v3051
      %v3053 = vpop.f32.mrb[0].mxu0
      %3054 = vmatprep.mubr.bf16.mxu0 %v2313
      %3055 = vmatmul.mubr.bf16.gmra.mrb[0].mxu0 %v2428
      %v3056 = vpop.f32.mrb[0].mxu0
      %v3057 = vadd.f32 %v2896, %v3056
      %v3058 = vpop.f32.mrb[0].mxu0
      %v3059 = vpop.f32.mrb[0].mxu0
      %v3060 = vadd.f32 %v2899, %v3059
      %v3061 = vpop.f32.mrb[0].mxu0
      %3062 = vmatprep.mubr.bf16.mxu0 %v2316
      %3063 = vmatmul.mubr.bf16.gmra.mrb[0].mxu0 %v2432
      %v3064 = vpop.f32.mrb[0].mxu0
      %v3065 = vadd.f32 %v2904, %v3064
      %v3066 = vpop.f32.mrb[0].mxu0
      %v3067 = vpop.f32.mrb[0].mxu0
      %v3068 = vadd.f32 %v2907, %v3067
      %v3069 = vpop.f32.mrb[0].mxu0
      %3070 = vmatprep.mubr.bf16.mxu0 %v2319
      %3071 = vmatmul.mubr.bf16.gmra.mrb[0].mxu0 %v2436
      %v3072 = vpop.f32.mrb[0].mxu0
      %v3073 = vadd.f32 %v2912, %v3072
      %v3074 = vpop.f32.mrb[0].mxu0
      %v3075 = vpop.f32.mrb[0].mxu0
      %v3076 = vadd.f32 %v2915, %v3075
      %v3077 = vpop.f32.mrb[0].mxu0
      %3078 = vmatprep.mubr.bf16.mxu0 %v2322
      %3079 = vmatmul.mubr.bf16.gmra.mrb[0].mxu0 %v2440
      %v3080 = vpop.f32.mrb[0].mxu0
      %v3081 = vadd.f32 %v2920, %v3080
      %v3082 = vpop.f32.mrb[0].mxu0
      %v3083 = vpop.f32.mrb[0].mxu0
      %v3084 = vadd.f32 %v2923, %v3083
      %v3085 = vpop.f32.mrb[0].mxu0
      %3086 = vmatprep.mubr.bf16.mxu0 %v2325
      %3087 = vmatmul.mubr.bf16.gmra.mrb[0].mxu0 %v2444
      %v3088 = vpop.f32.mrb[0].mxu0
      %v3089 = vadd.f32 %v2928, %v3088
      %v3090 = vpop.f32.mrb[0].mxu0
      %v3091 = vpop.f32.mrb[0].mxu0
      %v3092 = vadd.f32 %v2931, %v3091
      %v3093 = vpop.f32.mrb[0].mxu0
      %3094 = vmatprep.mubr.bf16.mxu0 %v2328
      %3095 = vmatmul.mubr.bf16.gmra.mrb[0].mxu0 %v2448
      %v3096 = vpop.f32.mrb[0].mxu0
      %v3097 = vadd.f32 %v2936, %v3096
      %v3098 = vpop.f32.mrb[0].mxu0
      %v3099 = vpop.f32.mrb[0].mxu0
      %v3100 = vadd.f32 %v2939, %v3099
      %v3101 = vpop.f32.mrb[0].mxu0
      %3102 = vmatprep.mubr.bf16.mxu0 %v2459
      %3103 = vmatmul.mubr.bf16.gmra.mrb[0].mxu0 %v2452
      %v3104 = vpop.f32.mrb[0].mxu0
      %v3105 = vadd.f32 %v2944, %v3104
      %v3106 = vpop.f32.mrb[0].mxu0
      %v3107 = vpop.f32.mrb[0].mxu0
      %v3108 = vadd.f32 %v2947, %v3107
      %v3109 = vpop.f32.mrb[0].mxu0
      %3110 = vmatprep.mubr.bf16.mxu0 %v2462
      %3111 = vmatmul.mubr.bf16.gmra.mrb[0].mxu0 %v2456
      %v3112 = vpop.f32.mrb[0].mxu0
      %v3113 = vadd.f32 %v2952, %v3112
      %v3114 = vpop.f32.mrb[0].mxu0
      %v3115 = vpop.f32.mrb[0].mxu0
      %v3116 = vadd.f32 %v2955, %v3115
      %v3117 = vpop.f32.mrb[0].mxu0
      %3118 = vdwg.mxu0
      %3119 = vmatprep.subr.bf16.mxu0 0
      %3120 = vmatpush1.bf16.msra.mxu0 %v2723
      %3121 = vmatprep.subr.bf16.mxu0 0
      %3122 = vmatpush1.bf16.msra.mxu0 %v2724
      %3123 = vmatprep.subr.bf16.mxu0 0
      %3124 = vmatpush1.bf16.msra.mxu0 %v2725
      %3125 = vmatprep.subr.bf16.mxu0 0
      %3126 = vmatpush1.bf16.msra.mxu0 %v2726
      %3127 = vmatprep.subr.bf16.mxu0 0
      %3128 = vmatpush1.bf16.msra.mxu0 0
      %3129 = vmatprep.subr.bf16.mxu0 0
      %3130 = vmatpush1.bf16.msra.mxu0 0
      %3131 = vmatprep.subr.bf16.mxu0 0
      %3132 = vmatpush1.bf16.msra.mxu0 0
      %3133 = vmatprep.subr.bf16.mxu0 0
      %3134 = vmatpush1.bf16.msra.mxu0 0
      %3135 = vmatprep.subr.bf16.mxu0 0
      %3136 = vmatpush1.bf16.msra.mxu0 0
      %3137 = vmatprep.subr.bf16.mxu0 0
      %3138 = vmatpush1.bf16.msra.mxu0 0
      %3139 = vmatprep.subr.bf16.mxu0 0
      %3140 = vmatpush1.bf16.msra.mxu0 0
      %3141 = vmatprep.subr.bf16.mxu0 0
      %3142 = vmatpush1.bf16.msra.mxu0 0
      %3143 = vmatprep.subr.bf16.mxu0 0
      %3144 = vmatpush1.bf16.msra.mxu0 0
      %3145 = vmatprep.subr.bf16.mxu0 0
      %3146 = vmatpush1.bf16.msra.mxu0 0
      %3147 = vmatprep.subr.bf16.mxu0 0
      %3148 = vmatpush1.bf16.msra.mxu0 0
      %3149 = vmatprep.subr.bf16.mxu0 0
      %3150 = vmatpush1.bf16.msra.mxu0 0
      %3151 = vmatprep.mubr.bf16.mxu0 0
      %3152 = vmatmul.mubr.bf16.gmra.mrb[0].mxu0 %v2763
      %v3153 = vpop.f32.mrb[0].mxu0
      %v3154 = vadd.f32 %v2993, %v3153
      %v3155 = vpop.f32.mrb[0].mxu0
      %v3156 = vpop.f32.mrb[0].mxu0
      %v3157 = vadd.f32 %v2996, %v3156
      %v3158 = vpop.f32.mrb[0].mxu0
      %3159 = vmatprep.mubr.bf16.mxu0 0
      %3160 = vmatmul.mubr.bf16.gmra.mrb[0].mxu0 %v2765
      %v3161 = vpop.f32.mrb[0].mxu0
      %v3162 = vadd.f32 %v3001, %v3161
      %v3163 = vpop.f32.mrb[0].mxu0
      %v3164 = vpop.f32.mrb[0].mxu0
      %v3165 = vadd.f32 %v3004, %v3164
      %v3166 = vpop.f32.mrb[0].mxu0
      %3167 = vmatprep.mubr.bf16.mxu0 0
      %3168 = vmatmul.mubr.bf16.gmra.mrb[0].mxu0 %v2767
      %v3169 = vpop.f32.mrb[0].mxu0
      %v3170 = vadd.f32 %v3009, %v3169
      %v3171 = vpop.f32.mrb[0].mxu0
      %v3172 = vpop.f32.mrb[0].mxu0
      %v3173 = vadd.f32 %v3012, %v3172
      %v3174 = vpop.f32.mrb[0].mxu0
      %3175 = vmatprep.mubr.bf16.mxu0 0
      %3176 = vmatmul.mubr.bf16.gmra.mrb[0].mxu0 %v2769
      %v3177 = vpop.f32.mrb[0].mxu0
      %v3178 = vadd.f32 %v3017, %v3177
      %v3179 = vpop.f32.mrb[0].mxu0
      %v3180 = vpop.f32.mrb[0].mxu0
      %v3181 = vadd.f32 %v3020, %v3180
      %v3182 = vpop.f32.mrb[0].mxu0
      %3183 = vmatprep.mubr.bf16.mxu0 0
      %3184 = vmatmul.mubr.bf16.gmra.mrb[0].mxu0 %v2771
      %v3185 = vpop.f32.mrb[0].mxu0
      %v3186 = vadd.f32 %v3025, %v3185
      %v3187 = vpop.f32.mrb[0].mxu0
      %v3188 = vpop.f32.mrb[0].mxu0
      %v3189 = vadd.f32 %v3028, %v3188
      %v3190 = vpop.f32.mrb[0].mxu0
      %3191 = vmatprep.mubr.bf16.mxu0 0
      %3192 = vmatmul.mubr.bf16.gmra.mrb[0].mxu0 %v2773
      %v3193 = vpop.f32.mrb[0].mxu0
      %v3194 = vadd.f32 %v3033, %v3193
      %v3195 = vpop.f32.mrb[0].mxu0
      %v3196 = vpop.f32.mrb[0].mxu0
      %v3197 = vadd.f32 %v3036, %v3196
      %v3198 = vpop.f32.mrb[0].mxu0
      %3199 = vmatprep.mubr.bf16.mxu0 0
      %3200 = vmatmul.mubr.bf16.gmra.mrb[0].mxu0 %v2775
      %v3201 = vpop.f32.mrb[0].mxu0
      %v3202 = vadd.f32 %v3041, %v3201
      %v3203 = vpop.f32.mrb[0].mxu0
      %v3204 = vpop.f32.mrb[0].mxu0
      %v3205 = vadd.f32 %v3044, %v3204
      %v3206 = vpop.f32.mrb[0].mxu0
      %3207 = vmatprep.mubr.bf16.mxu0 0
      %3208 = vmatmul.mubr.bf16.gmra.mrb[0].mxu0 %v2777
      %v3209 = vpop.f32.mrb[0].mxu0
      %v3210 = vadd.f32 %v3049, %v3209
      %v3211 = vpop.f32.mrb[0].mxu0
      %v3212 = vpop.f32.mrb[0].mxu0
      %v3213 = vadd.f32 %v3052, %v3212
      %v3214 = vpop.f32.mrb[0].mxu0
      %3215 = vmatprep.mubr.bf16.mxu0 0
      %3216 = vmatmul.mubr.bf16.gmra.mrb[0].mxu0 %v2779
      %v3217 = vpop.f32.mrb[0].mxu0
      %v3218 = vadd.f32 %v3057, %v3217
      %v3219 = vpop.f32.mrb[0].mxu0
      %v3220 = vpop.f32.mrb[0].mxu0
      %v3221 = vadd.f32 %v3060, %v3220
      %v3222 = vpop.f32.mrb[0].mxu0
      %3223 = vmatprep.mubr.bf16.mxu0 0
      %3224 = vmatmul.mubr.bf16.gmra.mrb[0].mxu0 %v2781
      %v3225 = vpop.f32.mrb[0].mxu0
      %v3226 = vadd.f32 %v3065, %v3225
      %v3227 = vpop.f32.mrb[0].mxu0
      %v3228 = vpop.f32.mrb[0].mxu0
      %v3229 = vadd.f32 %v3068, %v3228
      %v3230 = vpop.f32.mrb[0].mxu0
      %3231 = vmatprep.mubr.bf16.mxu0 0
      %3232 = vmatmul.mubr.bf16.gmra.mrb[0].mxu0 %v2783
      %v3233 = vpop.f32.mrb[0].mxu0
      %v3234 = vadd.f32 %v3073, %v3233
      %v3235 = vpop.f32.mrb[0].mxu0
      %v3236 = vpop.f32.mrb[0].mxu0
      %v3237 = vadd.f32 %v3076, %v3236
      %v3238 = vpop.f32.mrb[0].mxu0
      %3239 = vmatprep.mubr.bf16.mxu0 0
      %3240 = vmatmul.mubr.bf16.gmra.mrb[0].mxu0 %v2785
      %v3241 = vpop.f32.mrb[0].mxu0
      %v3242 = vadd.f32 %v3081, %v3241
      %v3243 = vpop.f32.mrb[0].mxu0
      %v3244 = vpop.f32.mrb[0].mxu0
      %v3245 = vadd.f32 %v3084, %v3244
      %v3246 = vpop.f32.mrb[0].mxu0
      %3247 = vmatprep.mubr.bf16.mxu0 0
      %3248 = vmatmul.mubr.bf16.gmra.mrb[0].mxu0 %v2787
      %v3249 = vpop.f32.mrb[0].mxu0
      %v3250 = vadd.f32 %v3089, %v3249
      %v3251 = vpop.f32.mrb[0].mxu0
      %v3252 = vpop.f32.mrb[0].mxu0
      %v3253 = vadd.f32 %v3092, %v3252
      %v3254 = vpop.f32.mrb[0].mxu0
      %3255 = vmatprep.mubr.bf16.mxu0 0
      %3256 = vmatmul.mubr.bf16.gmra.mrb[0].mxu0 %v2789
      %v3257 = vpop.f32.mrb[0].mxu0
      %v3258 = vadd.f32 %v3097, %v3257
      %v3259 = vpop.f32.mrb[0].mxu0
      %v3260 = vpop.f32.mrb[0].mxu0
      %v3261 = vadd.f32 %v3100, %v3260
      %v3262 = vpop.f32.mrb[0].mxu0
      %3263 = vmatprep.mubr.bf16.mxu0 0
      %3264 = vmatmul.mubr.bf16.gmra.mrb[0].mxu0 %v2792
      %v3265 = vpop.f32.mrb[0].mxu0
      %v3266 = vadd.f32 %v3105, %v3265
      %v3267 = vpop.f32.mrb[0].mxu0
      %v3268 = vpop.f32.mrb[0].mxu0
      %v3269 = vadd.f32 %v3108, %v3268
      %v3270 = vpop.f32.mrb[0].mxu0
      %3271 = vmatprep.mubr.bf16.mxu0 0
      %3272 = vmatmul.mubr.bf16.gmra.mrb[0].mxu0 %v2795
      %v3273 = vpop.f32.mrb[0].mxu0
      %v3274 = vadd.f32 %v3113, %v3273
      %v3275 = vpop.f32.mrb[0].mxu0
      %v3276 = vpop.f32.mrb[0].mxu0
      %v3277 = vadd.f32 %v3116, %v3276
      %v3278 = vpop.f32.mrb[0].mxu0
      %3279 = vdwg.mxu0
      %v3280 = vmax.f32 %v3154, 0.0
      %v3281 = vmax.f32 %v3157, 0.0
      %v3282 = vmax.f32 %v3162, 0.0
      %v3283 = vmax.f32 %v3165, 0.0
      %v3284 = vmax.f32 %v3170, 0.0
      %v3285 = vmax.f32 %v3173, 0.0
      %v3286 = vmax.f32 %v3178, 0.0
      %v3287 = vmax.f32 %v3181, 0.0
      %v3288 = vmax.f32 %v3186, 0.0
      %v3289 = vmax.f32 %v3189, 0.0
      %v3290 = vmax.f32 %v3194, 0.0
      %v3291 = vmax.f32 %v3197, 0.0
      %v3292 = vmax.f32 %v3202, 0.0
      %v3293 = vmax.f32 %v3205, 0.0
      %v3294 = vmax.f32 %v3210, 0.0
      %v3295 = vmax.f32 %v3213, 0.0
      %v3296 = vmax.f32 %v3218, 0.0
      %v3297 = vmax.f32 %v3221, 0.0
      %v3298 = vmax.f32 %v3226, 0.0
      %v3299 = vmax.f32 %v3229, 0.0
      %v3300 = vmax.f32 %v3234, 0.0
      %v3301 = vmax.f32 %v3237, 0.0
      %v3302 = vmax.f32 %v3242, 0.0
      %v3303 = vmax.f32 %v3245, 0.0
      %v3304 = vmax.f32 %v3250, 0.0
      %v3305 = vmax.f32 %v3253, 0.0
      %v3306 = vmax.f32 %v3258, 0.0
      %v3307 = vmax.f32 %v3261, 0.0
      %v3308 = vmax.f32 %v3266, 0.0
      %v3309 = vmax.f32 %v3269, 0.0
      %v3310 = vmax.f32 %v3274, 0.0
      %v3311 = vmax.f32 %v3277, 0.0
      %s3312 = scalar_lea.vmem [#allocation3], 24
      %3313 = vst.msk [vmem:[%s3312 + $0x1] sm:$0xff] %vm2281, %v3280
      %3314 = vst.msk [vmem:[%s3312 + $0x9] sm:$0xff] %vm2281, %v3281
      %3315 = vst.msk [vmem:[%s3312 + $0x19] sm:$0xff] %vm2281, %v3282
      %3316 = vst.msk [vmem:[%s3312 + $0x21] sm:$0xff] %vm2281, %v3283
      %3317 = vst.msk [vmem:[%s3312 + $0x31] sm:$0xff] %vm2281, %v3284
      %3318 = vst.msk [vmem:[%s3312 + $0x39] sm:$0xff] %vm2281, %v3285
      %3319 = vst.msk [vmem:[%s3312 + $0x49] sm:$0xff] %vm2281, %v3286
      %3320 = vst.msk [vmem:[%s3312 + $0x51] sm:$0xff] %vm2281, %v3287
      %3321 = vst.msk [vmem:[%s3312 + $0x61] sm:$0xff] %vm2281, %v3288
      %3322 = vst.msk [vmem:[%s3312 + $0x69] sm:$0xff] %vm2281, %v3289
      %3323 = vst.msk [vmem:[%s3312 + $0x79] sm:$0xff] %vm2281, %v3290
      %3324 = vst.msk [vmem:[%s3312 + $0x81] sm:$0xff] %vm2281, %v3291
      %3325 = vst.msk [vmem:[%s3312 + $0x91] sm:$0xff] %vm2281, %v3292
      %3326 = vst.msk [vmem:[%s3312 + $0x99] sm:$0xff] %vm2281, %v3293
      %3327 = vst.msk [vmem:[%s3312 + $0xa9] sm:$0xff] %vm2281, %v3294
      %3328 = vst.msk [vmem:[%s3312 + $0xb1] sm:$0xff] %vm2281, %v3295
      %3329 = vst.msk [vmem:[%s3312 + $0xc1] sm:$0xff] %vm2281, %v3296
      %3330 = vst.msk [vmem:[%s3312 + $0xc9] sm:$0xff] %vm2281, %v3297
      %3331 = vst.msk [vmem:[%s3312 + $0xd9] sm:$0xff] %vm2281, %v3298
      %3332 = vst.msk [vmem:[%s3312 + $0xe1] sm:$0xff] %vm2281, %v3299
      %3333 = vst.msk [vmem:[%s3312 + $0xf1] sm:$0xff] %vm2281, %v3300
      %3334 = vst.msk [vmem:[%s3312 + $0xf9] sm:$0xff] %vm2281, %v3301
      %3335 = vst.msk [vmem:[%s3312 + $0x109] sm:$0xff] %vm2281, %v3302
      %3336 = vst.msk [vmem:[%s3312 + $0x111] sm:$0xff] %vm2281, %v3303
      %3337 = vst.msk [vmem:[%s3312 + $0x121] sm:$0xff] %vm2281, %v3304
      %3338 = vst.msk [vmem:[%s3312 + $0x129] sm:$0xff] %vm2281, %v3305
      %3339 = vst.msk [vmem:[%s3312 + $0x139] sm:$0xff] %vm2281, %v3306
      %3340 = vst.msk [vmem:[%s3312 + $0x141] sm:$0xff] %vm2281, %v3307
      %3341 = vst.msk [vmem:[%s3312 + $0x151] sm:$0xff] %vm2281, %v3308
      %3342 = vst.msk [vmem:[%s3312 + $0x159] sm:$0xff] %vm2281, %v3309
      %3343 = vst.msk [vmem:[%s3312 + $0x169] sm:$0xff] %vm2281, %v3310
      %3344 = vst.msk [vmem:[%s3312 + $0x171] sm:$0xff] %vm2281, %v3311
      %v3345 = vld [vmem:[#allocation3] sm:$0xff]
      %v3346 = vld [vmem:[#allocation3 + $0x8] sm:$0xff]
      %v3347 = vld [vmem:[#allocation3 + $0x10] sm:$0x3]
      %v3348 = vld [vmem:[#allocation3 + $0x18] sm:$0xff]
      %v3349 = vld [vmem:[#allocation3 + $0x20] sm:$0xff]
      %v3350 = vld [vmem:[#allocation3 + $0x28] sm:$0x3]
      %v3351 = vld [vmem:[#allocation3 + $0x30] sm:$0xff]
      %v3352 = vld [vmem:[#allocation3 + $0x38] sm:$0xff]
      %v3353 = vld [vmem:[#allocation3 + $0x40] sm:$0x3]
      %v3354 = vld [vmem:[#allocation3 + $0x48] sm:$0xff]
      %v3355 = vld [vmem:[#allocation3 + $0x50] sm:$0xff]
      %v3356 = vld [vmem:[#allocation3 + $0x58] sm:$0x3]
      %v3357 = vld [vmem:[#allocation3 + $0x60] sm:$0xff]
      %v3358 = vld [vmem:[#allocation3 + $0x68] sm:$0xff]
      %v3359 = vld [vmem:[#allocation3 + $0x70] sm:$0x3]
      %v3360 = vld [vmem:[#allocation3 + $0x78] sm:$0xff]
      %v3361 = vld [vmem:[#allocation3 + $0x80] sm:$0xff]
      %v3362 = vld [vmem:[#allocation3 + $0x88] sm:$0x3]
      %v3363 = vld [vmem:[#allocation3 + $0x90] sm:$0xff]
      %v3364 = vld [vmem:[#allocation3 + $0x98] sm:$0xff]
      %v3365 = vld [vmem:[#allocation3 + $0xa0] sm:$0x3]
      %v3366 = vld [vmem:[#allocation3 + $0xa8] sm:$0xff]
      %v3367 = vld [vmem:[#allocation3 + $0xb0] sm:$0xff]
      %v3368 = vld [vmem:[#allocation3 + $0xb8] sm:$0x3]
      %v3369 = vld [vmem:[#allocation3 + $0xc0] sm:$0xff]
      %v3370 = vld [vmem:[#allocation3 + $0xc8] sm:$0xff]
      %v3371 = vld [vmem:[#allocation3 + $0xd0] sm:$0x3]
      %v3372 = vld [vmem:[#allocation3 + $0xd8] sm:$0xff]
      %v3373 = vld [vmem:[#allocation3 + $0xe0] sm:$0xff]
      %v3374 = vld [vmem:[#allocation3 + $0xe8] sm:$0x3]
      %v3375 = vld [vmem:[#allocation3 + $0xf0] sm:$0xff]
      %v3376 = vld [vmem:[#allocation3 + $0xf8] sm:$0xff]
      %v3377 = vld [vmem:[#allocation3 + $0x100] sm:$0x3]
      %v3378 = vld [vmem:[#allocation3 + $0x108] sm:$0xff]
      %v3379 = vld [vmem:[#allocation3 + $0x110] sm:$0xff]
      %v3380 = vld [vmem:[#allocation3 + $0x118] sm:$0x3]
      %v3381 = vld [vmem:[#allocation3 + $0x120] sm:$0xff]
      %v3382 = vld [vmem:[#allocation3 + $0x128] sm:$0xff]
      %v3383 = vld [vmem:[#allocation3 + $0x130] sm:$0x3]
      %v3384 = vld [vmem:[#allocation3 + $0x138] sm:$0xff]
      %v3385 = vld [vmem:[#allocation3 + $0x140] sm:$0xff]
      %v3386 = vld [vmem:[#allocation3 + $0x148] sm:$0x3]
      %v3387 = vld [vmem:[#allocation3 + $0x150] sm:$0xff]
      %v3388 = vld [vmem:[#allocation3 + $0x158] sm:$0xff]
      %v3389 = vld [vmem:[#allocation3 + $0x160] sm:$0x3]
      %v3390 = vld [vmem:[#allocation3 + $0x168] sm:$0xff]
      %v3391 = vld [vmem:[#allocation3 + $0x170] sm:$0xff]
      %v3392 = vld [vmem:[#allocation3 + $0x178] sm:$0x3]
      %v3393 = vld [vmem:[#allocation3 + $0x180] sm:$0xff]
      %v3394 = vld [vmem:[#allocation3 + $0x188] sm:$0xff]
      %v3395 = vld [vmem:[#allocation3 + $0x190] sm:$0x3]
      %v3396 = vld [vmem:[#allocation3 + $0x198] sm:$0xff]
      %v3397 = vld [vmem:[#allocation3 + $0x1a0] sm:$0xff]
      %v3398 = vld [vmem:[#allocation3 + $0x1a8] sm:$0x3]
      %v3399 = vpack.c.bf16 %v3346, %v3345
      %v3400 = vpack.c.bf16 %v3349, %v3348
      %v3401 = vpack.c.bf16 %v3352, %v3351
      %v3402 = vpack.c.bf16 %v3355, %v3354
      %v3403 = vpack.c.bf16 %v3358, %v3357
      %v3404 = vpack.c.bf16 %v3361, %v3360
      %v3405 = vpack.c.bf16 %v3364, %v3363
      %v3406 = vpack.c.bf16 %v3367, %v3366
      %v3407 = vpack.c.bf16 %v3370, %v3369
      %v3408 = vpack.c.bf16 %v3373, %v3372
      %v3409 = vpack.c.bf16 %v3376, %v3375
      %v3410 = vpack.c.bf16 %v3379, %v3378
      %v3411 = vpack.c.bf16 %v3382, %v3381
      %v3412 = vpack.c.bf16 %v3385, %v3384
      %v3413 = vpack.c.bf16 %v3388, %v3387
      %v3414 = vpack.c.bf16 %v3391, %v3390
      %v3415 = vpack.c.bf16 %v3347, %v3347
      %v3416 = vpack.c.bf16 %v3350, %v3350
      %v3417 = vpack.c.bf16 %v3353, %v3353
      %v3418 = vpack.c.bf16 %v3356, %v3356
      %v3419 = vpack.c.bf16 %v3359, %v3359
      %v3420 = vpack.c.bf16 %v3362, %v3362
      %v3421 = vpack.c.bf16 %v3365, %v3365
      %v3422 = vpack.c.bf16 %v3368, %v3368
      %v3423 = vpack.c.bf16 %v3371, %v3371
      %v3424 = vpack.c.bf16 %v3374, %v3374
      %v3425 = vpack.c.bf16 %v3377, %v3377
      %v3426 = vpack.c.bf16 %v3380, %v3380
      %v3427 = vpack.c.bf16 %v3383, %v3383
      %v3428 = vpack.c.bf16 %v3386, %v3386
      %v3429 = vpack.c.bf16 %v3389, %v3389
      %v3430 = vpack.c.bf16 %v3392, %v3392
      %v3432 = vshrl.u32 %v3399, 16
      %v3434 = vshll.u32 %v3399, 16
      %v3436 = vrot.slane %v3434, 1
      %v3437 = vor.u32 %v3432, %v3436
      %v3439 = vshll.u32 %v3415, 16
      %v3441 = vrot.slane %v3439, 1
      %v3442 = vsel %vm1869, %v3437, %v3441
      %v3444 = vshrl.u32 %v3400, 16
      %v3446 = vshll.u32 %v3400, 16
      %v3448 = vrot.slane %v3446, 1
      %v3449 = vor.u32 %v3444, %v3448
      %v3451 = vshll.u32 %v3416, 16
      %v3453 = vrot.slane %v3451, 1
      %v3454 = vsel %vm1869, %v3449, %v3453
      %v3456 = vshrl.u32 %v3401, 16
      %v3458 = vshll.u32 %v3401, 16
      %v3460 = vrot.slane %v3458, 1
      %v3461 = vor.u32 %v3456, %v3460
      %v3463 = vshll.u32 %v3417, 16
      %v3465 = vrot.slane %v3463, 1
      %v3466 = vsel %vm1869, %v3461, %v3465
      %v3468 = vshrl.u32 %v3402, 16
      %v3470 = vshll.u32 %v3402, 16
      %v3472 = vrot.slane %v3470, 1
      %v3473 = vor.u32 %v3468, %v3472
      %v3475 = vshll.u32 %v3418, 16
      %v3477 = vrot.slane %v3475, 1
      %v3478 = vsel %vm1869, %v3473, %v3477
      %v3480 = vshrl.u32 %v3403, 16
      %v3482 = vshll.u32 %v3403, 16
      %v3484 = vrot.slane %v3482, 1
      %v3485 = vor.u32 %v3480, %v3484
      %v3487 = vshll.u32 %v3419, 16
      %v3489 = vrot.slane %v3487, 1
      %v3490 = vsel %vm1869, %v3485, %v3489
      %v3492 = vshrl.u32 %v3404, 16
      %v3494 = vshll.u32 %v3404, 16
      %v3496 = vrot.slane %v3494, 1
      %v3497 = vor.u32 %v3492, %v3496
      %v3499 = vshll.u32 %v3420, 16
      %v3501 = vrot.slane %v3499, 1
      %v3502 = vsel %vm1869, %v3497, %v3501
      %v3504 = vshrl.u32 %v3405, 16
      %v3506 = vshll.u32 %v3405, 16
      %v3508 = vrot.slane %v3506, 1
      %v3509 = vor.u32 %v3504, %v3508
      %v3511 = vshll.u32 %v3421, 16
      %v3513 = vrot.slane %v3511, 1
      %v3514 = vsel %vm1869, %v3509, %v3513
      %v3516 = vshrl.u32 %v3406, 16
      %v3518 = vshll.u32 %v3406, 16
      %v3520 = vrot.slane %v3518, 1
      %v3521 = vor.u32 %v3516, %v3520
      %v3523 = vshll.u32 %v3422, 16
      %v3525 = vrot.slane %v3523, 1
      %v3526 = vsel %vm1869, %v3521, %v3525
      %v3528 = vshrl.u32 %v3407, 16
      %v3530 = vshll.u32 %v3407, 16
      %v3532 = vrot.slane %v3530, 1
      %v3533 = vor.u32 %v3528, %v3532
      %v3535 = vshll.u32 %v3423, 16
      %v3537 = vrot.slane %v3535, 1
      %v3538 = vsel %vm1869, %v3533, %v3537
      %v3540 = vshrl.u32 %v3408, 16
      %v3542 = vshll.u32 %v3408, 16
      %v3544 = vrot.slane %v3542, 1
      %v3545 = vor.u32 %v3540, %v3544
      %v3547 = vshll.u32 %v3424, 16
      %v3549 = vrot.slane %v3547, 1
      %v3550 = vsel %vm1869, %v3545, %v3549
      %v3552 = vshrl.u32 %v3409, 16
      %v3554 = vshll.u32 %v3409, 16
      %v3556 = vrot.slane %v3554, 1
      %v3557 = vor.u32 %v3552, %v3556
      %v3559 = vshll.u32 %v3425, 16
      %v3561 = vrot.slane %v3559, 1
      %v3562 = vsel %vm1869, %v3557, %v3561
      %v3564 = vshrl.u32 %v3410, 16
      %v3566 = vshll.u32 %v3410, 16
      %v3568 = vrot.slane %v3566, 1
      %v3569 = vor.u32 %v3564, %v3568
      %v3571 = vshll.u32 %v3426, 16
      %v3573 = vrot.slane %v3571, 1
      %v3574 = vsel %vm1869, %v3569, %v3573
      %v3576 = vshrl.u32 %v3411, 16
      %v3578 = vshll.u32 %v3411, 16
      %v3580 = vrot.slane %v3578, 1
      %v3581 = vor.u32 %v3576, %v3580
      %v3583 = vshll.u32 %v3427, 16
      %v3585 = vrot.slane %v3583, 1
      %v3586 = vsel %vm1869, %v3581, %v3585
      %v3588 = vshrl.u32 %v3412, 16
      %v3590 = vshll.u32 %v3412, 16
      %v3592 = vrot.slane %v3590, 1
      %v3593 = vor.u32 %v3588, %v3592
      %v3595 = vshll.u32 %v3428, 16
      %v3597 = vrot.slane %v3595, 1
      %v3598 = vsel %vm1869, %v3593, %v3597
      %v3600 = vshrl.u32 %v3413, 16
      %v3602 = vshll.u32 %v3413, 16
      %v3604 = vrot.slane %v3602, 1
      %v3605 = vor.u32 %v3600, %v3604
      %v3607 = vshll.u32 %v3429, 16
      %v3609 = vrot.slane %v3607, 1
      %v3610 = vsel %vm1869, %v3605, %v3609
      %v3612 = vshrl.u32 %v3414, 16
      %v3614 = vshll.u32 %v3414, 16
      %v3616 = vrot.slane %v3614, 1
      %v3617 = vor.u32 %v3612, %v3616
      %v3619 = vshll.u32 %v3430, 16
      %v3621 = vrot.slane %v3619, 1
      %v3622 = vsel %vm1869, %v3617, %v3621
      %v3655 = vrot.slane %v3399, 1
      %v3656 = vrot.slane %v3415, 1
      %v3657 = vsel %vm2094, %v3655, %v3656
      %v3658 = vrot.slane %v3400, 1
      %v3659 = vrot.slane %v3416, 1
      %v3660 = vsel %vm2094, %v3658, %v3659
      %v3661 = vrot.slane %v3401, 1
      %v3662 = vrot.slane %v3417, 1
      %v3663 = vsel %vm2094, %v3661, %v3662
      %v3664 = vrot.slane %v3402, 1
      %v3665 = vrot.slane %v3418, 1
      %v3666 = vsel %vm2094, %v3664, %v3665
      %v3667 = vrot.slane %v3403, 1
      %v3668 = vrot.slane %v3419, 1
      %v3669 = vsel %vm2094, %v3667, %v3668
      %v3670 = vrot.slane %v3404, 1
      %v3671 = vrot.slane %v3420, 1
      %v3672 = vsel %vm2094, %v3670, %v3671
      %v3673 = vrot.slane %v3405, 1
      %v3674 = vrot.slane %v3421, 1
      %v3675 = vsel %vm2094, %v3673, %v3674
      %v3676 = vrot.slane %v3406, 1
      %v3677 = vrot.slane %v3422, 1
      %v3678 = vsel %vm2094, %v3676, %v3677
      %v3679 = vrot.slane %v3407, 1
      %v3680 = vrot.slane %v3423, 1
      %v3681 = vsel %vm2094, %v3679, %v3680
      %v3682 = vrot.slane %v3408, 1
      %v3683 = vrot.slane %v3424, 1
      %v3684 = vsel %vm2094, %v3682, %v3683
      %v3685 = vrot.slane %v3409, 1
      %v3686 = vrot.slane %v3425, 1
      %v3687 = vsel %vm2094, %v3685, %v3686
      %v3688 = vrot.slane %v3410, 1
      %v3689 = vrot.slane %v3426, 1
      %v3690 = vsel %vm2094, %v3688, %v3689
      %v3691 = vrot.slane %v3411, 1
      %v3692 = vrot.slane %v3427, 1
      %v3693 = vsel %vm2094, %v3691, %v3692
      %v3694 = vrot.slane %v3412, 1
      %v3695 = vrot.slane %v3428, 1
      %v3696 = vsel %vm2094, %v3694, %v3695
      %v3697 = vrot.slane %v3413, 1
      %v3698 = vrot.slane %v3429, 1
      %v3699 = vsel %vm2094, %v3697, %v3698
      %v3700 = vrot.slane %v3414, 1
      %v3701 = vrot.slane %v3430, 1
      %v3702 = vsel %vm2094, %v3700, %v3701
      %v3703 = vpack.c.bf16 %v3394, %v3393
      %v3704 = vpack.c.bf16 %v3395, %v3395
      %v3706 = vshrl.u32 %v3703, 16
      %v3708 = vshll.u32 %v3703, 16
      %v3710 = vrot.slane %v3708, 1
      %v3711 = vor.u32 %v3706, %v3710
      %v3713 = vshll.u32 %v3704, 16
      %v3715 = vrot.slane %v3713, 1
      %v3716 = vsel %vm1869, %v3711, %v3715
      %v3719 = vrot.slane %v3703, 1
      %v3720 = vrot.slane %v3704, 1
      %v3721 = vsel %vm2094, %v3719, %v3720
      %v3722 = vpack.c.bf16 %v3397, %v3396
      %v3723 = vpack.c.bf16 %v3398, %v3398
      %v3725 = vshrl.u32 %v3722, 16
      %v3727 = vshll.u32 %v3722, 16
      %v3729 = vrot.slane %v3727, 1
      %v3730 = vor.u32 %v3725, %v3729
      %v3732 = vshll.u32 %v3723, 16
      %v3734 = vrot.slane %v3732, 1
      %v3735 = vsel %vm1869, %v3730, %v3734
      %v3738 = vrot.slane %v3722, 1
      %v3739 = vrot.slane %v3723, 1
      %v3740 = vsel %vm2094, %v3738, %v3739
      %3741 = vrot.lane.b32.xlu0 %v3442, 64
      %v3742 = vpop.permute.xlu0 %3741
      %3743 = vrot.lane.b32.xlu0 %v3454, 64
      %v3744 = vpop.permute.xlu0 %3743
      %3745 = vrot.lane.b32.xlu0 %v3466, 64
      %v3746 = vpop.permute.xlu0 %3745
      %3747 = vrot.lane.b32.xlu0 %v3478, 64
      %v3748 = vpop.permute.xlu0 %3747
      %3749 = vrot.lane.b32.xlu0 %v3490, 64
      %v3750 = vpop.permute.xlu0 %3749
      %3751 = vrot.lane.b32.xlu0 %v3502, 64
      %v3752 = vpop.permute.xlu0 %3751
      %3753 = vrot.lane.b32.xlu0 %v3514, 64
      %v3754 = vpop.permute.xlu0 %3753
      %3755 = vrot.lane.b32.xlu0 %v3526, 64
      %v3756 = vpop.permute.xlu0 %3755
      %3757 = vrot.lane.b32.xlu0 %v3538, 64
      %v3758 = vpop.permute.xlu0 %3757
      %3759 = vrot.lane.b32.xlu0 %v3550, 64
      %v3760 = vpop.permute.xlu0 %3759
      %3761 = vrot.lane.b32.xlu0 %v3562, 64
      %v3762 = vpop.permute.xlu0 %3761
      %3763 = vrot.lane.b32.xlu0 %v3574, 64
      %v3764 = vpop.permute.xlu0 %3763
      %3765 = vrot.lane.b32.xlu0 %v3586, 64
      %v3766 = vpop.permute.xlu0 %3765
      %3767 = vrot.lane.b32.xlu0 %v3598, 64
      %v3768 = vpop.permute.xlu0 %3767
      %3769 = vrot.lane.b32.xlu0 %v3610, 64
      %v3770 = vpop.permute.xlu0 %3769
      %3771 = vrot.lane.b32.xlu0 %v3622, 64
      %v3772 = vpop.permute.xlu0 %3771
      %3773 = vrot.lane.b32.xlu0 %v3400, 64
      %v3774 = vpop.permute.xlu0 %3773
      %3775 = vrot.lane.b32.xlu0 %v3401, 64
      %v3776 = vpop.permute.xlu0 %3775
      %3777 = vrot.lane.b32.xlu0 %v3402, 64
      %v3778 = vpop.permute.xlu0 %3777
      %3779 = vrot.lane.b32.xlu0 %v3403, 64
      %v3780 = vpop.permute.xlu0 %3779
      %3781 = vrot.lane.b32.xlu0 %v3404, 64
      %v3782 = vpop.permute.xlu0 %3781
      %3783 = vrot.lane.b32.xlu0 %v3405, 64
      %v3784 = vpop.permute.xlu0 %3783
      %3785 = vrot.lane.b32.xlu0 %v3406, 64
      %v3786 = vpop.permute.xlu0 %3785
      %3787 = vrot.lane.b32.xlu0 %v3407, 64
      %v3788 = vpop.permute.xlu0 %3787
      %3789 = vrot.lane.b32.xlu0 %v3408, 64
      %v3790 = vpop.permute.xlu0 %3789
      %3791 = vrot.lane.b32.xlu0 %v3409, 64
      %v3792 = vpop.permute.xlu0 %3791
      %3793 = vrot.lane.b32.xlu0 %v3410, 64
      %v3794 = vpop.permute.xlu0 %3793
      %3795 = vrot.lane.b32.xlu0 %v3411, 64
      %v3796 = vpop.permute.xlu0 %3795
      %3797 = vrot.lane.b32.xlu0 %v3412, 64
      %v3798 = vpop.permute.xlu0 %3797
      %3799 = vrot.lane.b32.xlu0 %v3413, 64
      %v3800 = vpop.permute.xlu0 %3799
      %3801 = vrot.lane.b32.xlu0 %v3414, 64
      %v3802 = vpop.permute.xlu0 %3801
      %3803 = vrot.lane.b32.xlu0 %v3703, 64
      %v3804 = vpop.permute.xlu0 %3803
      %3805 = vrot.lane.b32.xlu0 %v3660, 64
      %v3806 = vpop.permute.xlu0 %3805
      %3807 = vrot.lane.b32.xlu0 %v3663, 64
      %v3808 = vpop.permute.xlu0 %3807
      %3809 = vrot.lane.b32.xlu0 %v3666, 64
      %v3810 = vpop.permute.xlu0 %3809
      %3811 = vrot.lane.b32.xlu0 %v3669, 64
      %v3812 = vpop.permute.xlu0 %3811
      %3813 = vrot.lane.b32.xlu0 %v3672, 64
      %v3814 = vpop.permute.xlu0 %3813
      %3815 = vrot.lane.b32.xlu0 %v3675, 64
      %v3816 = vpop.permute.xlu0 %3815
      %3817 = vrot.lane.b32.xlu0 %v3678, 64
      %v3818 = vpop.permute.xlu0 %3817
      %3819 = vrot.lane.b32.xlu0 %v3681, 64
      %v3820 = vpop.permute.xlu0 %3819
      %3821 = vrot.lane.b32.xlu0 %v3684, 64
      %v3822 = vpop.permute.xlu0 %3821
      %3823 = vrot.lane.b32.xlu0 %v3687, 64
      %v3824 = vpop.permute.xlu0 %3823
      %3825 = vrot.lane.b32.xlu0 %v3690, 64
      %v3826 = vpop.permute.xlu0 %3825
      %3827 = vrot.lane.b32.xlu0 %v3693, 64
      %v3828 = vpop.permute.xlu0 %3827
      %3829 = vrot.lane.b32.xlu0 %v3696, 64
      %v3830 = vpop.permute.xlu0 %3829
      %3831 = vrot.lane.b32.xlu0 %v3699, 64
      %v3832 = vpop.permute.xlu0 %3831
      %3833 = vrot.lane.b32.xlu0 %v3702, 64
      %v3834 = vpop.permute.xlu0 %3833
      %3835 = vrot.lane.b32.xlu0 %v3721, 64
      %v3836 = vpop.permute.xlu0 %3835
      %3837 = vrot.lane.b32.xlu0 %v3716, 64
      %v3838 = vpop.permute.xlu0 %3837
      %3839 = vrot.lane.b32.xlu0 %v3735, 64
      %v3840 = vpop.permute.xlu0 %3839
      %v3842 = vsel %vm2281, %v3399, %v3742
      %v3845 = vsel %vm2281, %v3400, %v3744
      %v3848 = vsel %vm2281, %v3401, %v3746
      %v3851 = vsel %vm2281, %v3402, %v3748
      %v3854 = vsel %vm2281, %v3403, %v3750
      %v3857 = vsel %vm2281, %v3404, %v3752
      %v3860 = vsel %vm2281, %v3405, %v3754
      %v3863 = vsel %vm2281, %v3406, %v3756
      %v3866 = vsel %vm2281, %v3407, %v3758
      %v3869 = vsel %vm2281, %v3408, %v3760
      %v3872 = vsel %vm2281, %v3409, %v3762
      %v3875 = vsel %vm2281, %v3410, %v3764
      %v3878 = vsel %vm2281, %v3411, %v3766
      %v3881 = vsel %vm2281, %v3412, %v3768
      %v3884 = vsel %vm2281, %v3413, %v3770
      %v3887 = vsel %vm2281, %v3414, %v3772
      %v3891 = vsel %vm2281, %v3657, %v3774
      %v3895 = vsel %vm2281, %v3660, %v3776
      %v3899 = vsel %vm2281, %v3663, %v3778
      %v3903 = vsel %vm2281, %v3666, %v3780
      %v3907 = vsel %vm2281, %v3669, %v3782
      %v3911 = vsel %vm2281, %v3672, %v3784
      %v3915 = vsel %vm2281, %v3675, %v3786
      %v3919 = vsel %vm2281, %v3678, %v3788
      %v3923 = vsel %vm2281, %v3681, %v3790
      %v3927 = vsel %vm2281, %v3684, %v3792
      %v3931 = vsel %vm2281, %v3687, %v3794
      %v3935 = vsel %vm2281, %v3690, %v3796
      %v3939 = vsel %vm2281, %v3693, %v3798
      %v3943 = vsel %vm2281, %v3696, %v3800
      %v3947 = vsel %vm2281, %v3699, %v3802
      %v3951 = vsel %vm2281, %v3702, %v3804
      %v3955 = vsel %vm2281, %v3454, %v3806
      %v3959 = vsel %vm2281, %v3466, %v3808
      %v3963 = vsel %vm2281, %v3478, %v3810
      %v3967 = vsel %vm2281, %v3490, %v3812
      %v3971 = vsel %vm2281, %v3502, %v3814
      %v3975 = vsel %vm2281, %v3514, %v3816
      %v3979 = vsel %vm2281, %v3526, %v3818
      %v3983 = vsel %vm2281, %v3538, %v3820
      %v3987 = vsel %vm2281, %v3550, %v3822
      %v3991 = vsel %vm2281, %v3562, %v3824
      %v3995 = vsel %vm2281, %v3574, %v3826
      %v3999 = vsel %vm2281, %v3586, %v3828
      %v4003 = vsel %vm2281, %v3598, %v3830
      %v4007 = vsel %vm2281, %v3610, %v3832
      %v4011 = vsel %vm2281, %v3622, %v3834
      %v4015 = vsel %vm2281, %v3716, %v3836
      %v4018 = vsel %vm2281, %v3703, %v3838
      %v4021 = vsel %vm2281, %v3722, %v3840
      %s4023 = smul.addr %s2464, 4
      %s4024 = scalar_lea.vmem %s4, %s4023
      %v4025 = vld [vmem:[%s4024] sm:$0xf]
      %v4026 = vld [vmem:[%s4024 + $0x4] sm:$0xf]
      %v4027 = vld [vmem:[%s4024 + $0x8] sm:$0xf]
      %v4028 = vld [vmem:[%s4024 + $0xc] sm:$0xf]
      %v4029 = vld [vmem:[%s4024 + $0x10] sm:$0xf]
      %v4030 = vld [vmem:[%s4024 + $0x14] sm:$0xf]
      %v4031 = vld [vmem:[%s4024 + $0x18] sm:$0xf]
      %v4032 = vld [vmem:[%s4024 + $0x1c] sm:$0xf]
      %v4033 = vld [vmem:[%s4024 + $0x20] sm:$0xf]
      %v4034 = vld [vmem:[%s4024 + $0x24] sm:$0xf]
      %v4035 = vld [vmem:[%s4024 + $0x28] sm:$0xf]
      %v4036 = vld [vmem:[%s4024 + $0x2c] sm:$0xf]
      %v4037 = vld [vmem:[%s4024 + $0x30] sm:$0xf]
      %v4038 = vld [vmem:[%s4024 + $0x34] sm:$0xf]
      %v4039 = vld [vmem:[%s4024 + $0x38] sm:$0xf]
      %v4040 = vld [vmem:[%s4024 + $0x3c] sm:$0xf]
      %v4041 = vld [vmem:[%s4024 + $0x40] sm:$0xf]
      %v4042 = vld [vmem:[%s4024 + $0x44] sm:$0xf]
      %v4043 = vld [vmem:[%s4024 + $0x48] sm:$0xf]
      %v4044 = vld [vmem:[%s4024 + $0x4c] sm:$0xf]
      %v4045 = vld [vmem:[%s4024 + $0x50] sm:$0xf]
      %v4046 = vld [vmem:[%s4024 + $0x54] sm:$0xf]
      %v4047 = vld [vmem:[%s4024 + $0x58] sm:$0xf]
      %v4048 = vld [vmem:[%s4024 + $0x5c] sm:$0xf]
      %v4049 = vld [vmem:[%s4024 + $0x60] sm:$0xf]
      %v4050 = vld [vmem:[%s4024 + $0x64] sm:$0xf]
      %v4051 = vld [vmem:[%s4024 + $0x68] sm:$0xf]
      %v4052 = vld [vmem:[%s4024 + $0x6c] sm:$0xf]
      %v4053 = vld [vmem:[%s4024 + $0x70] sm:$0xf]
      %v4054 = vld [vmem:[%s4024 + $0x74] sm:$0xf]
      %v4055 = vld [vmem:[%s4024 + $0x78] sm:$0xf]
      %v4056 = vld [vmem:[%s4024 + $0x7c] sm:$0xf]
      %v4057 = vld [vmem:[%s4024 + $0x80] sm:$0xf]
      %v4058 = vld [vmem:[%s4024 + $0x84] sm:$0xf]
      %v4059 = vld [vmem:[%s4024 + $0x88] sm:$0xf]
      %v4060 = vld [vmem:[%s4024 + $0x8c] sm:$0xf]
      %v4061 = vld [vmem:[%s4024 + $0x90] sm:$0xf]
      %v4062 = vld [vmem:[%s4024 + $0x94] sm:$0xf]
      %v4063 = vld [vmem:[%s4024 + $0x98] sm:$0xf]
      %v4064 = vld [vmem:[%s4024 + $0x9c] sm:$0xf]
      %v4065 = vld [vmem:[%s4024 + $0xa0] sm:$0xf]
      %v4066 = vld [vmem:[%s4024 + $0xa4] sm:$0xf]
      %v4067 = vld [vmem:[%s4024 + $0xa8] sm:$0xf]
      %v4068 = vld [vmem:[%s4024 + $0xac] sm:$0xf]
      %v4069 = vld [vmem:[%s4024 + $0xb0] sm:$0xf]
      %v4070 = vld [vmem:[%s4024 + $0xb4] sm:$0xf]
      %v4071 = vld [vmem:[%s4024 + $0xb8] sm:$0xf]
      %v4072 = vld [vmem:[%s4024 + $0xbc] sm:$0xf]
      %v4073 = vld [vmem:[%s4024 + $0xc0] sm:$0xf]
      %v4074 = vld [vmem:[%s4024 + $0xc4] sm:$0xf]
      %v4075 = vld [vmem:[%s4024 + $0xc8] sm:$0xf]
      %v4076 = vld [vmem:[%s4024 + $0xcc] sm:$0xf]
      %v4077 = vld [vmem:[%s4024 + $0xd0] sm:$0xf]
      %v4078 = vld [vmem:[%s4024 + $0xd4] sm:$0xf]
      %v4079 = vld [vmem:[%s4024 + $0xd8] sm:$0xf]
      %v4080 = vld [vmem:[%s4024 + $0xdc] sm:$0xf]
      %v4081 = vld [vmem:[%s4024 + $0xe0] sm:$0xf]
      %v4082 = vld [vmem:[%s4024 + $0xe4] sm:$0xf]
      %v4083 = vld [vmem:[%s4024 + $0xe8] sm:$0xf]
      %v4084 = vld [vmem:[%s4024 + $0xec] sm:$0xf]
      %v4085 = vld [vmem:[%s4024 + $0xf0] sm:$0xf]
      %v4086 = vld [vmem:[%s4024 + $0xf4] sm:$0xf]
      %v4087 = vld [vmem:[%s4024 + $0xf8] sm:$0xf]
      %v4088 = vld [vmem:[%s4024 + $0xfc] sm:$0xf]
      %v4089 = vld [vmem:[%s4024 + $0x100] sm:$0xf]
      %v4090 = vld [vmem:[%s4024 + $0x104] sm:$0xf]
      %v4091 = vld [vmem:[%s4024 + $0x108] sm:$0xf]
      %v4092 = vld [vmem:[%s4024 + $0x10c] sm:$0xf]
      %v4093 = vld [vmem:[%s4024 + $0x110] sm:$0xf]
      %v4094 = vld [vmem:[%s4024 + $0x114] sm:$0xf]
      %v4095 = vld [vmem:[%s4024 + $0x118] sm:$0xf]
      %v4096 = vld [vmem:[%s4024 + $0x11c] sm:$0xf]
      %s4097 = scalar_lea.vmem %s5, %s23
      %v4098 = vld [vmem:[%s4097] sm:$0x1]
      %v4100 = vlaneseq
      %v4101 = vshrl.u32 %v4100, 7
      %v4102 = vsub.s32 0, %v4101
      %v4103 = vrot.slane %v4098, %v4102
      %v4177 = vunpack.c.l.b16 %v4025
      %v4178 = vunpack.c.l.b16 %v4026
      %v4179 = vunpack.c.l.b16 %v4027
      %v4180 = vunpack.c.l.b16 %v4028
      %v4181 = vunpack.c.l.b16 %v4029
      %v4182 = vunpack.c.l.b16 %v4030
      %v4183 = vunpack.c.l.b16 %v4031
      %v4184 = vunpack.c.l.b16 %v4032
      %v4185 = vunpack.c.l.b16 %v4033
      %v4186 = vunpack.c.l.b16 %v4034
      %v4187 = vunpack.c.l.b16 %v4035
      %v4188 = vunpack.c.l.b16 %v4036
      %v4189 = vunpack.c.l.b16 %v4037
      %v4190 = vunpack.c.l.b16 %v4038
      %v4191 = vunpack.c.l.b16 %v4039
      %v4192 = vunpack.c.l.b16 %v4040
      %v4193 = vunpack.c.l.b16 %v4041
      %v4194 = vunpack.c.l.b16 %v4042
      %v4195 = vunpack.c.l.b16 %v4043
      %v4196 = vunpack.c.l.b16 %v4044
      %v4197 = vunpack.c.l.b16 %v4045
      %v4198 = vunpack.c.l.b16 %v4046
      %v4199 = vunpack.c.l.b16 %v4047
      %v4200 = vunpack.c.l.b16 %v4048
      %v4201 = vunpack.c.l.b16 %v4049
      %v4202 = vunpack.c.l.b16 %v4050
      %v4203 = vunpack.c.l.b16 %v4051
      %v4204 = vunpack.c.l.b16 %v4052
      %v4205 = vunpack.c.l.b16 %v4053
      %v4206 = vunpack.c.l.b16 %v4054
      %v4207 = vunpack.c.l.b16 %v4055
      %v4208 = vunpack.c.l.b16 %v4056
      %v4209 = vunpack.c.l.b16 %v4057
      %v4210 = vunpack.c.l.b16 %v4058
      %v4211 = vunpack.c.l.b16 %v4059
      %v4212 = vunpack.c.l.b16 %v4060
      %v4213 = vunpack.c.l.b16 %v4061
      %v4214 = vunpack.c.l.b16 %v4062
      %v4215 = vunpack.c.l.b16 %v4063
      %v4216 = vunpack.c.l.b16 %v4064
      %v4217 = vunpack.c.l.b16 %v4065
      %v4218 = vunpack.c.l.b16 %v4066
      %v4219 = vunpack.c.l.b16 %v4067
      %v4220 = vunpack.c.l.b16 %v4068
      %v4221 = vunpack.c.l.b16 %v4069
      %v4222 = vunpack.c.l.b16 %v4070
      %v4223 = vunpack.c.l.b16 %v4071
      %v4224 = vunpack.c.l.b16 %v4072
      %v4225 = vunpack.c.l.b16 %v4073
      %v4226 = vunpack.c.l.b16 %v4074
      %v4227 = vunpack.c.l.b16 %v4075
      %v4228 = vunpack.c.l.b16 %v4076
      %v4229 = vunpack.c.l.b16 %v4077
      %v4230 = vunpack.c.l.b16 %v4078
      %v4231 = vunpack.c.l.b16 %v4079
      %v4232 = vunpack.c.l.b16 %v4080
      %v4233 = vunpack.c.l.b16 %v4081
      %v4234 = vunpack.c.l.b16 %v4082
      %v4235 = vunpack.c.l.b16 %v4083
      %v4236 = vunpack.c.l.b16 %v4084
      %v4237 = vunpack.c.l.b16 %v4085
      %v4238 = vunpack.c.l.b16 %v4086
      %v4239 = vunpack.c.l.b16 %v4087
      %v4240 = vunpack.c.l.b16 %v4088
      %v4241 = vunpack.c.l.b16 %v4089
      %v4242 = vunpack.c.l.b16 %v4090
      %v4243 = vunpack.c.l.b16 %v4091
      %v4244 = vunpack.c.l.b16 %v4092
      %v4245 = vunpack.c.l.b16 %v4093
      %v4246 = vunpack.c.l.b16 %v4094
      %v4247 = vunpack.c.l.b16 %v4095
      %v4248 = vunpack.c.l.b16 %v4096
      %v4249 = vpack.c.b16 %v4178, %v4177
      %v4250 = vpack.c.b16 %v4180, %v4179
      %v4251 = vpack.c.b16 %v4182, %v4181
      %v4252 = vpack.c.b16 %v4184, %v4183
      %v4253 = vpack.c.b16 %v4186, %v4185
      %v4254 = vpack.c.b16 %v4188, %v4187
      %v4255 = vpack.c.b16 %v4190, %v4189
      %v4256 = vpack.c.b16 %v4192, %v4191
      %v4257 = vpack.c.b16 %v4194, %v4193
      %v4258 = vpack.c.b16 %v4196, %v4195
      %v4259 = vpack.c.b16 %v4198, %v4197
      %v4260 = vpack.c.b16 %v4200, %v4199
      %v4261 = vpack.c.b16 %v4202, %v4201
      %v4262 = vpack.c.b16 %v4204, %v4203
      %v4263 = vpack.c.b16 %v4206, %v4205
      %v4264 = vpack.c.b16 %v4208, %v4207
      %v4265 = vpack.c.b16 %v4210, %v4209
      %v4266 = vpack.c.b16 %v4212, %v4211
      %v4267 = vpack.c.b16 %v4214, %v4213
      %v4268 = vpack.c.b16 %v4216, %v4215
      %v4269 = vpack.c.b16 %v4218, %v4217
      %v4270 = vpack.c.b16 %v4220, %v4219
      %v4271 = vpack.c.b16 %v4222, %v4221
      %v4272 = vpack.c.b16 %v4224, %v4223
      %v4273 = vpack.c.b16 %v4226, %v4225
      %v4274 = vpack.c.b16 %v4228, %v4227
      %v4275 = vpack.c.b16 %v4230, %v4229
      %v4276 = vpack.c.b16 %v4232, %v4231
      %v4277 = vpack.c.b16 %v4234, %v4233
      %v4278 = vpack.c.b16 %v4236, %v4235
      %v4279 = vpack.c.b16 %v4238, %v4237
      %v4280 = vpack.c.b16 %v4240, %v4239
      %v4281 = vpack.c.b16 %v4242, %v4241
      %v4282 = vpack.c.b16 %v4244, %v4243
      %v4283 = vpack.c.b16 %v4246, %v4245
      %v4284 = vpack.c.b16 %v4248, %v4247
      %v4321 = vsel %vm2281, %v3663, 0
      %v4323 = vsel %vm2281, %v3666, 0
      %v4325 = vsel %vm2281, %v3669, 0
      %v4327 = vsel %vm2281, %v3672, 0
      %v4329 = vsel %vm2281, %v3675, 0
      %v4331 = vsel %vm2281, %v3678, 0
      %v4333 = vsel %vm2281, %v3681, 0
      %v4335 = vsel %vm2281, %v3684, 0
      %v4337 = vsel %vm2281, %v3687, 0
      %v4339 = vsel %vm2281, %v3690, 0
      %v4341 = vsel %vm2281, %v3693, 0
      %v4343 = vsel %vm2281, %v3696, 0
      %v4345 = vsel %vm2281, %v3699, 0
      %v4347 = vsel %vm2281, %v3702, 0
      %v4350 = vsel %vm2281, %v3721, 0
      %v4353 = vsel %vm2281, %v3740, 0
      %4355 = vmatprep.subr.bf16.mxu0 0
      %4356 = vmatpush1.bf16.msra.mxu0 %v4249
      %4357 = vmatprep.subr.bf16.mxu0 0
      %4358 = vmatpush1.bf16.msra.mxu0 %v4250
      %4359 = vmatprep.subr.bf16.mxu0 0
      %4360 = vmatpush1.bf16.msra.mxu0 %v4251
      %4361 = vmatprep.subr.bf16.mxu0 0
      %4362 = vmatpush1.bf16.msra.mxu0 %v4252
      %4363 = vmatprep.subr.bf16.mxu0 0
      %4364 = vmatpush1.bf16.msra.mxu0 %v4253
      %4365 = vmatprep.subr.bf16.mxu0 0
      %4366 = vmatpush1.bf16.msra.mxu0 %v4254
      %4367 = vmatprep.subr.bf16.mxu0 0
      %4368 = vmatpush1.bf16.msra.mxu0 %v4255
      %4369 = vmatprep.subr.bf16.mxu0 0
      %4370 = vmatpush1.bf16.msra.mxu0 %v4256
      %4371 = vmatprep.subr.bf16.mxu0 0
      %4372 = vmatpush1.bf16.msra.mxu0 %v4257
      %4373 = vmatprep.subr.bf16.mxu0 0
      %4374 = vmatpush1.bf16.msra.mxu0 %v4258
      %4375 = vmatprep.subr.bf16.mxu0 0
      %4376 = vmatpush1.bf16.msra.mxu0 %v4259
      %4377 = vmatprep.subr.bf16.mxu0 0
      %4378 = vmatpush1.bf16.msra.mxu0 %v4260
      %4379 = vmatprep.subr.bf16.mxu0 0
      %4380 = vmatpush1.bf16.msra.mxu0 %v4261
      %4381 = vmatprep.subr.bf16.mxu0 0
      %4382 = vmatpush1.bf16.msra.mxu0 %v4262
      %4383 = vmatprep.subr.bf16.mxu0 0
      %4384 = vmatpush1.bf16.msra.mxu0 %v4263
      %4385 = vmatprep.subr.bf16.mxu0 0
      %4386 = vmatpush1.bf16.msra.mxu0 %v4264
      %4387 = vmatprep.mubr.bf16.mxu0 %v3891
      %4388 = vmatmul.mubr.bf16.gmra.mrb[0].mxu0 %v3842
      %v4389 = vpop.f32.mrb[0].mxu0
      %v4390 = vadd.f32 %v4103, %v4389
      %v4391 = vpop.f32.mrb[0].mxu0
      %v4392 = vpop.f32.mrb[0].mxu0
      %v4393 = vadd.f32 %v4103, %v4392
      %v4394 = vpop.f32.mrb[0].mxu0
      %4395 = vmatprep.mubr.bf16.mxu0 %v3895
      %4396 = vmatmul.mubr.bf16.gmra.mrb[0].mxu0 %v3845
      %v4397 = vpop.f32.mrb[0].mxu0
      %v4398 = vadd.f32 %v4103, %v4397
      %v4399 = vpop.f32.mrb[0].mxu0
      %v4400 = vpop.f32.mrb[0].mxu0
      %v4401 = vadd.f32 %v4103, %v4400
      %v4402 = vpop.f32.mrb[0].mxu0
      %4403 = vmatprep.mubr.bf16.mxu0 %v3899
      %4404 = vmatmul.mubr.bf16.gmra.mrb[0].mxu0 %v3848
      %v4405 = vpop.f32.mrb[0].mxu0
      %v4406 = vadd.f32 %v4103, %v4405
      %v4407 = vpop.f32.mrb[0].mxu0
      %v4408 = vpop.f32.mrb[0].mxu0
      %v4409 = vadd.f32 %v4103, %v4408
      %v4410 = vpop.f32.mrb[0].mxu0
      %4411 = vmatprep.mubr.bf16.mxu0 %v3903
      %4412 = vmatmul.mubr.bf16.gmra.mrb[0].mxu0 %v3851
      %v4413 = vpop.f32.mrb[0].mxu0
      %v4414 = vadd.f32 %v4103, %v4413
      %v4415 = vpop.f32.mrb[0].mxu0
      %v4416 = vpop.f32.mrb[0].mxu0
      %v4417 = vadd.f32 %v4103, %v4416
      %v4418 = vpop.f32.mrb[0].mxu0
      %4419 = vmatprep.mubr.bf16.mxu0 %v3907
      %4420 = vmatmul.mubr.bf16.gmra.mrb[0].mxu0 %v3854
      %v4421 = vpop.f32.mrb[0].mxu0
      %v4422 = vadd.f32 %v4103, %v4421
      %v4423 = vpop.f32.mrb[0].mxu0
      %v4424 = vpop.f32.mrb[0].mxu0
      %v4425 = vadd.f32 %v4103, %v4424
      %v4426 = vpop.f32.mrb[0].mxu0
      %4427 = vmatprep.mubr.bf16.mxu0 %v3911
      %4428 = vmatmul.mubr.bf16.gmra.mrb[0].mxu0 %v3857
      %v4429 = vpop.f32.mrb[0].mxu0
      %v4430 = vadd.f32 %v4103, %v4429
      %v4431 = vpop.f32.mrb[0].mxu0
      %v4432 = vpop.f32.mrb[0].mxu0
      %v4433 = vadd.f32 %v4103, %v4432
      %v4434 = vpop.f32.mrb[0].mxu0
      %4435 = vmatprep.mubr.bf16.mxu0 %v3915
      %4436 = vmatmul.mubr.bf16.gmra.mrb[0].mxu0 %v3860
      %v4437 = vpop.f32.mrb[0].mxu0
      %v4438 = vadd.f32 %v4103, %v4437
      %v4439 = vpop.f32.mrb[0].mxu0
      %v4440 = vpop.f32.mrb[0].mxu0
      %v4441 = vadd.f32 %v4103, %v4440
      %v4442 = vpop.f32.mrb[0].mxu0
      %4443 = vmatprep.mubr.bf16.mxu0 %v3919
      %4444 = vmatmul.mubr.bf16.gmra.mrb[0].mxu0 %v3863
      %v4445 = vpop.f32.mrb[0].mxu0
      %v4446 = vadd.f32 %v4103, %v4445
      %v4447 = vpop.f32.mrb[0].mxu0
      %v4448 = vpop.f32.mrb[0].mxu0
      %v4449 = vadd.f32 %v4103, %v4448
      %v4450 = vpop.f32.mrb[0].mxu0
      %4451 = vmatprep.mubr.bf16.mxu0 %v3923
      %4452 = vmatmul.mubr.bf16.gmra.mrb[0].mxu0 %v3866
      %v4453 = vpop.f32.mrb[0].mxu0
      %v4454 = vadd.f32 %v4103, %v4453
      %v4455 = vpop.f32.mrb[0].mxu0
      %v4456 = vpop.f32.mrb[0].mxu0
      %v4457 = vadd.f32 %v4103, %v4456
      %v4458 = vpop.f32.mrb[0].mxu0
      %4459 = vmatprep.mubr.bf16.mxu0 %v3927
      %4460 = vmatmul.mubr.bf16.gmra.mrb[0].mxu0 %v3869
      %v4461 = vpop.f32.mrb[0].mxu0
      %v4462 = vadd.f32 %v4103, %v4461
      %v4463 = vpop.f32.mrb[0].mxu0
      %v4464 = vpop.f32.mrb[0].mxu0
      %v4465 = vadd.f32 %v4103, %v4464
      %v4466 = vpop.f32.mrb[0].mxu0
      %4467 = vmatprep.mubr.bf16.mxu0 %v3931
      %4468 = vmatmul.mubr.bf16.gmra.mrb[0].mxu0 %v3872
      %v4469 = vpop.f32.mrb[0].mxu0
      %v4470 = vadd.f32 %v4103, %v4469
      %v4471 = vpop.f32.mrb[0].mxu0
      %v4472 = vpop.f32.mrb[0].mxu0
      %v4473 = vadd.f32 %v4103, %v4472
      %v4474 = vpop.f32.mrb[0].mxu0
      %4475 = vmatprep.mubr.bf16.mxu0 %v3935
      %4476 = vmatmul.mubr.bf16.gmra.mrb[0].mxu0 %v3875
      %v4477 = vpop.f32.mrb[0].mxu0
      %v4478 = vadd.f32 %v4103, %v4477
      %v4479 = vpop.f32.mrb[0].mxu0
      %v4480 = vpop.f32.mrb[0].mxu0
      %v4481 = vadd.f32 %v4103, %v4480
      %v4482 = vpop.f32.mrb[0].mxu0
      %4483 = vmatprep.mubr.bf16.mxu0 %v3939
      %4484 = vmatmul.mubr.bf16.gmra.mrb[0].mxu0 %v3878
      %v4485 = vpop.f32.mrb[0].mxu0
      %v4486 = vadd.f32 %v4103, %v4485
      %v4487 = vpop.f32.mrb[0].mxu0
      %v4488 = vpop.f32.mrb[0].mxu0
      %v4489 = vadd.f32 %v4103, %v4488
      %v4490 = vpop.f32.mrb[0].mxu0
      %4491 = vmatprep.mubr.bf16.mxu0 %v3943
      %4492 = vmatmul.mubr.bf16.gmra.mrb[0].mxu0 %v3881
      %v4493 = vpop.f32.mrb[0].mxu0
      %v4494 = vadd.f32 %v4103, %v4493
      %v4495 = vpop.f32.mrb[0].mxu0
      %v4496 = vpop.f32.mrb[0].mxu0
      %v4497 = vadd.f32 %v4103, %v4496
      %v4498 = vpop.f32.mrb[0].mxu0
      %4499 = vmatprep.mubr.bf16.mxu0 %v3947
      %4500 = vmatmul.mubr.bf16.gmra.mrb[0].mxu0 %v3884
      %v4501 = vpop.f32.mrb[0].mxu0
      %v4502 = vadd.f32 %v4103, %v4501
      %v4503 = vpop.f32.mrb[0].mxu0
      %v4504 = vpop.f32.mrb[0].mxu0
      %v4505 = vadd.f32 %v4103, %v4504
      %v4506 = vpop.f32.mrb[0].mxu0
      %4507 = vmatprep.mubr.bf16.mxu0 %v3951
      %4508 = vmatmul.mubr.bf16.gmra.mrb[0].mxu0 %v3887
      %v4509 = vpop.f32.mrb[0].mxu0
      %v4510 = vadd.f32 %v4103, %v4509
      %v4511 = vpop.f32.mrb[0].mxu0
      %v4512 = vpop.f32.mrb[0].mxu0
      %v4513 = vadd.f32 %v4103, %v4512
      %v4514 = vpop.f32.mrb[0].mxu0
      %4515 = vdwg.mxu0
      %4516 = vmatprep.subr.bf16.mxu0 0
      %4517 = vmatpush1.bf16.msra.mxu0 %v4265
      %4518 = vmatprep.subr.bf16.mxu0 0
      %4519 = vmatpush1.bf16.msra.mxu0 %v4266
      %4520 = vmatprep.subr.bf16.mxu0 0
      %4521 = vmatpush1.bf16.msra.mxu0 %v4267
      %4522 = vmatprep.subr.bf16.mxu0 0
      %4523 = vmatpush1.bf16.msra.mxu0 %v4268
      %4524 = vmatprep.subr.bf16.mxu0 0
      %4525 = vmatpush1.bf16.msra.mxu0 %v4269
      %4526 = vmatprep.subr.bf16.mxu0 0
      %4527 = vmatpush1.bf16.msra.mxu0 %v4270
      %4528 = vmatprep.subr.bf16.mxu0 0
      %4529 = vmatpush1.bf16.msra.mxu0 %v4271
      %4530 = vmatprep.subr.bf16.mxu0 0
      %4531 = vmatpush1.bf16.msra.mxu0 %v4272
      %4532 = vmatprep.subr.bf16.mxu0 0
      %4533 = vmatpush1.bf16.msra.mxu0 %v4273
      %4534 = vmatprep.subr.bf16.mxu0 0
      %4535 = vmatpush1.bf16.msra.mxu0 %v4274
      %4536 = vmatprep.subr.bf16.mxu0 0
      %4537 = vmatpush1.bf16.msra.mxu0 %v4275
      %4538 = vmatprep.subr.bf16.mxu0 0
      %4539 = vmatpush1.bf16.msra.mxu0 %v4276
      %4540 = vmatprep.subr.bf16.mxu0 0
      %4541 = vmatpush1.bf16.msra.mxu0 %v4277
      %4542 = vmatprep.subr.bf16.mxu0 0
      %4543 = vmatpush1.bf16.msra.mxu0 %v4278
      %4544 = vmatprep.subr.bf16.mxu0 0
      %4545 = vmatpush1.bf16.msra.mxu0 %v4279
      %4546 = vmatprep.subr.bf16.mxu0 0
      %4547 = vmatpush1.bf16.msra.mxu0 %v4280
      %4548 = vmatprep.mubr.bf16.mxu0 %v3848
      %4549 = vmatmul.mubr.bf16.gmra.mrb[0].mxu0 %v3955
      %v4550 = vpop.f32.mrb[0].mxu0
      %v4551 = vadd.f32 %v4390, %v4550
      %v4552 = vpop.f32.mrb[0].mxu0
      %v4553 = vpop.f32.mrb[0].mxu0
      %v4554 = vadd.f32 %v4393, %v4553
      %v4555 = vpop.f32.mrb[0].mxu0
      %4556 = vmatprep.mubr.bf16.mxu0 %v3851
      %4557 = vmatmul.mubr.bf16.gmra.mrb[0].mxu0 %v3959
      %v4558 = vpop.f32.mrb[0].mxu0
      %v4559 = vadd.f32 %v4398, %v4558
      %v4560 = vpop.f32.mrb[0].mxu0
      %v4561 = vpop.f32.mrb[0].mxu0
      %v4562 = vadd.f32 %v4401, %v4561
      %v4563 = vpop.f32.mrb[0].mxu0
      %4564 = vmatprep.mubr.bf16.mxu0 %v3854
      %4565 = vmatmul.mubr.bf16.gmra.mrb[0].mxu0 %v3963
      %v4566 = vpop.f32.mrb[0].mxu0
      %v4567 = vadd.f32 %v4406, %v4566
      %v4568 = vpop.f32.mrb[0].mxu0
      %v4569 = vpop.f32.mrb[0].mxu0
      %v4570 = vadd.f32 %v4409, %v4569
      %v4571 = vpop.f32.mrb[0].mxu0
      %4572 = vmatprep.mubr.bf16.mxu0 %v3857
      %4573 = vmatmul.mubr.bf16.gmra.mrb[0].mxu0 %v3967
      %v4574 = vpop.f32.mrb[0].mxu0
      %v4575 = vadd.f32 %v4414, %v4574
      %v4576 = vpop.f32.mrb[0].mxu0
      %v4577 = vpop.f32.mrb[0].mxu0
      %v4578 = vadd.f32 %v4417, %v4577
      %v4579 = vpop.f32.mrb[0].mxu0
      %4580 = vmatprep.mubr.bf16.mxu0 %v3860
      %4581 = vmatmul.mubr.bf16.gmra.mrb[0].mxu0 %v3971
      %v4582 = vpop.f32.mrb[0].mxu0
      %v4583 = vadd.f32 %v4422, %v4582
      %v4584 = vpop.f32.mrb[0].mxu0
      %v4585 = vpop.f32.mrb[0].mxu0
      %v4586 = vadd.f32 %v4425, %v4585
      %v4587 = vpop.f32.mrb[0].mxu0
      %4588 = vmatprep.mubr.bf16.mxu0 %v3863
      %4589 = vmatmul.mubr.bf16.gmra.mrb[0].mxu0 %v3975
      %v4590 = vpop.f32.mrb[0].mxu0
      %v4591 = vadd.f32 %v4430, %v4590
      %v4592 = vpop.f32.mrb[0].mxu0
      %v4593 = vpop.f32.mrb[0].mxu0
      %v4594 = vadd.f32 %v4433, %v4593
      %v4595 = vpop.f32.mrb[0].mxu0
      %4596 = vmatprep.mubr.bf16.mxu0 %v3866
      %4597 = vmatmul.mubr.bf16.gmra.mrb[0].mxu0 %v3979
      %v4598 = vpop.f32.mrb[0].mxu0
      %v4599 = vadd.f32 %v4438, %v4598
      %v4600 = vpop.f32.mrb[0].mxu0
      %v4601 = vpop.f32.mrb[0].mxu0
      %v4602 = vadd.f32 %v4441, %v4601
      %v4603 = vpop.f32.mrb[0].mxu0
      %4604 = vmatprep.mubr.bf16.mxu0 %v3869
      %4605 = vmatmul.mubr.bf16.gmra.mrb[0].mxu0 %v3983
      %v4606 = vpop.f32.mrb[0].mxu0
      %v4607 = vadd.f32 %v4446, %v4606
      %v4608 = vpop.f32.mrb[0].mxu0
      %v4609 = vpop.f32.mrb[0].mxu0
      %v4610 = vadd.f32 %v4449, %v4609
      %v4611 = vpop.f32.mrb[0].mxu0
      %4612 = vmatprep.mubr.bf16.mxu0 %v3872
      %4613 = vmatmul.mubr.bf16.gmra.mrb[0].mxu0 %v3987
      %v4614 = vpop.f32.mrb[0].mxu0
      %v4615 = vadd.f32 %v4454, %v4614
      %v4616 = vpop.f32.mrb[0].mxu0
      %v4617 = vpop.f32.mrb[0].mxu0
      %v4618 = vadd.f32 %v4457, %v4617
      %v4619 = vpop.f32.mrb[0].mxu0
      %4620 = vmatprep.mubr.bf16.mxu0 %v3875
      %4621 = vmatmul.mubr.bf16.gmra.mrb[0].mxu0 %v3991
      %v4622 = vpop.f32.mrb[0].mxu0
      %v4623 = vadd.f32 %v4462, %v4622
      %v4624 = vpop.f32.mrb[0].mxu0
      %v4625 = vpop.f32.mrb[0].mxu0
      %v4626 = vadd.f32 %v4465, %v4625
      %v4627 = vpop.f32.mrb[0].mxu0
      %4628 = vmatprep.mubr.bf16.mxu0 %v3878
      %4629 = vmatmul.mubr.bf16.gmra.mrb[0].mxu0 %v3995
      %v4630 = vpop.f32.mrb[0].mxu0
      %v4631 = vadd.f32 %v4470, %v4630
      %v4632 = vpop.f32.mrb[0].mxu0
      %v4633 = vpop.f32.mrb[0].mxu0
      %v4634 = vadd.f32 %v4473, %v4633
      %v4635 = vpop.f32.mrb[0].mxu0
      %4636 = vmatprep.mubr.bf16.mxu0 %v3881
      %4637 = vmatmul.mubr.bf16.gmra.mrb[0].mxu0 %v3999
      %v4638 = vpop.f32.mrb[0].mxu0
      %v4639 = vadd.f32 %v4478, %v4638
      %v4640 = vpop.f32.mrb[0].mxu0
      %v4641 = vpop.f32.mrb[0].mxu0
      %v4642 = vadd.f32 %v4481, %v4641
      %v4643 = vpop.f32.mrb[0].mxu0
      %4644 = vmatprep.mubr.bf16.mxu0 %v3884
      %4645 = vmatmul.mubr.bf16.gmra.mrb[0].mxu0 %v4003
      %v4646 = vpop.f32.mrb[0].mxu0
      %v4647 = vadd.f32 %v4486, %v4646
      %v4648 = vpop.f32.mrb[0].mxu0
      %v4649 = vpop.f32.mrb[0].mxu0
      %v4650 = vadd.f32 %v4489, %v4649
      %v4651 = vpop.f32.mrb[0].mxu0
      %4652 = vmatprep.mubr.bf16.mxu0 %v3887
      %4653 = vmatmul.mubr.bf16.gmra.mrb[0].mxu0 %v4007
      %v4654 = vpop.f32.mrb[0].mxu0
      %v4655 = vadd.f32 %v4494, %v4654
      %v4656 = vpop.f32.mrb[0].mxu0
      %v4657 = vpop.f32.mrb[0].mxu0
      %v4658 = vadd.f32 %v4497, %v4657
      %v4659 = vpop.f32.mrb[0].mxu0
      %4660 = vmatprep.mubr.bf16.mxu0 %v4018
      %4661 = vmatmul.mubr.bf16.gmra.mrb[0].mxu0 %v4011
      %v4662 = vpop.f32.mrb[0].mxu0
      %v4663 = vadd.f32 %v4502, %v4662
      %v4664 = vpop.f32.mrb[0].mxu0
      %v4665 = vpop.f32.mrb[0].mxu0
      %v4666 = vadd.f32 %v4505, %v4665
      %v4667 = vpop.f32.mrb[0].mxu0
      %4668 = vmatprep.mubr.bf16.mxu0 %v4021
      %4669 = vmatmul.mubr.bf16.gmra.mrb[0].mxu0 %v4015
      %v4670 = vpop.f32.mrb[0].mxu0
      %v4671 = vadd.f32 %v4510, %v4670
      %v4672 = vpop.f32.mrb[0].mxu0
      %v4673 = vpop.f32.mrb[0].mxu0
      %v4674 = vadd.f32 %v4513, %v4673
      %v4675 = vpop.f32.mrb[0].mxu0
      %4676 = vdwg.mxu0
      %4677 = vmatprep.subr.bf16.mxu0 0
      %4678 = vmatpush1.bf16.msra.mxu0 %v4281
      %4679 = vmatprep.subr.bf16.mxu0 0
      %4680 = vmatpush1.bf16.msra.mxu0 %v4282
      %4681 = vmatprep.subr.bf16.mxu0 0
      %4682 = vmatpush1.bf16.msra.mxu0 %v4283
      %4683 = vmatprep.subr.bf16.mxu0 0
      %4684 = vmatpush1.bf16.msra.mxu0 %v4284
      %4685 = vmatprep.subr.bf16.mxu0 0
      %4686 = vmatpush1.bf16.msra.mxu0 0
      %4687 = vmatprep.subr.bf16.mxu0 0
      %4688 = vmatpush1.bf16.msra.mxu0 0
      %4689 = vmatprep.subr.bf16.mxu0 0
      %4690 = vmatpush1.bf16.msra.mxu0 0
      %4691 = vmatprep.subr.bf16.mxu0 0
      %4692 = vmatpush1.bf16.msra.mxu0 0
      %4693 = vmatprep.subr.bf16.mxu0 0
      %4694 = vmatpush1.bf16.msra.mxu0 0
      %4695 = vmatprep.subr.bf16.mxu0 0
      %4696 = vmatpush1.bf16.msra.mxu0 0
      %4697 = vmatprep.subr.bf16.mxu0 0
      %4698 = vmatpush1.bf16.msra.mxu0 0
      %4699 = vmatprep.subr.bf16.mxu0 0
      %4700 = vmatpush1.bf16.msra.mxu0 0
      %4701 = vmatprep.subr.bf16.mxu0 0
      %4702 = vmatpush1.bf16.msra.mxu0 0
      %4703 = vmatprep.subr.bf16.mxu0 0
      %4704 = vmatpush1.bf16.msra.mxu0 0
      %4705 = vmatprep.subr.bf16.mxu0 0
      %4706 = vmatpush1.bf16.msra.mxu0 0
      %4707 = vmatprep.subr.bf16.mxu0 0
      %4708 = vmatpush1.bf16.msra.mxu0 0
      %4709 = vmatprep.mubr.bf16.mxu0 0
      %4710 = vmatmul.mubr.bf16.gmra.mrb[0].mxu0 %v4321
      %v4711 = vpop.f32.mrb[0].mxu0
      %v4712 = vadd.f32 %v4551, %v4711
      %v4713 = vpop.f32.mrb[0].mxu0
      %v4714 = vpop.f32.mrb[0].mxu0
      %v4715 = vadd.f32 %v4554, %v4714
      %v4716 = vpop.f32.mrb[0].mxu0
      %4717 = vmatprep.mubr.bf16.mxu0 0
      %4718 = vmatmul.mubr.bf16.gmra.mrb[0].mxu0 %v4323
      %v4719 = vpop.f32.mrb[0].mxu0
      %v4720 = vadd.f32 %v4559, %v4719
      %v4721 = vpop.f32.mrb[0].mxu0
      %v4722 = vpop.f32.mrb[0].mxu0
      %v4723 = vadd.f32 %v4562, %v4722
      %v4724 = vpop.f32.mrb[0].mxu0
      %4725 = vmatprep.mubr.bf16.mxu0 0
      %4726 = vmatmul.mubr.bf16.gmra.mrb[0].mxu0 %v4325
      %v4727 = vpop.f32.mrb[0].mxu0
      %v4728 = vadd.f32 %v4567, %v4727
      %v4729 = vpop.f32.mrb[0].mxu0
      %v4730 = vpop.f32.mrb[0].mxu0
      %v4731 = vadd.f32 %v4570, %v4730
      %v4732 = vpop.f32.mrb[0].mxu0
      %4733 = vmatprep.mubr.bf16.mxu0 0
      %4734 = vmatmul.mubr.bf16.gmra.mrb[0].mxu0 %v4327
      %v4735 = vpop.f32.mrb[0].mxu0
      %v4736 = vadd.f32 %v4575, %v4735
      %v4737 = vpop.f32.mrb[0].mxu0
      %v4738 = vpop.f32.mrb[0].mxu0
      %v4739 = vadd.f32 %v4578, %v4738
      %v4740 = vpop.f32.mrb[0].mxu0
      %4741 = vmatprep.mubr.bf16.mxu0 0
      %4742 = vmatmul.mubr.bf16.gmra.mrb[0].mxu0 %v4329
      %v4743 = vpop.f32.mrb[0].mxu0
      %v4744 = vadd.f32 %v4583, %v4743
      %v4745 = vpop.f32.mrb[0].mxu0
      %v4746 = vpop.f32.mrb[0].mxu0
      %v4747 = vadd.f32 %v4586, %v4746
      %v4748 = vpop.f32.mrb[0].mxu0
      %4749 = vmatprep.mubr.bf16.mxu0 0
      %4750 = vmatmul.mubr.bf16.gmra.mrb[0].mxu0 %v4331
      %v4751 = vpop.f32.mrb[0].mxu0
      %v4752 = vadd.f32 %v4591, %v4751
      %v4753 = vpop.f32.mrb[0].mxu0
      %v4754 = vpop.f32.mrb[0].mxu0
      %v4755 = vadd.f32 %v4594, %v4754
      %v4756 = vpop.f32.mrb[0].mxu0
      %4757 = vmatprep.mubr.bf16.mxu0 0
      %4758 = vmatmul.mubr.bf16.gmra.mrb[0].mxu0 %v4333
      %v4759 = vpop.f32.mrb[0].mxu0
      %v4760 = vadd.f32 %v4599, %v4759
      %v4761 = vpop.f32.mrb[0].mxu0
      %v4762 = vpop.f32.mrb[0].mxu0
      %v4763 = vadd.f32 %v4602, %v4762
      %v4764 = vpop.f32.mrb[0].mxu0
      %4765 = vmatprep.mubr.bf16.mxu0 0
      %4766 = vmatmul.mubr.bf16.gmra.mrb[0].mxu0 %v4335
      %v4767 = vpop.f32.mrb[0].mxu0
      %v4768 = vadd.f32 %v4607, %v4767
      %v4769 = vpop.f32.mrb[0].mxu0
      %v4770 = vpop.f32.mrb[0].mxu0
      %v4771 = vadd.f32 %v4610, %v4770
      %v4772 = vpop.f32.mrb[0].mxu0
      %4773 = vmatprep.mubr.bf16.mxu0 0
      %4774 = vmatmul.mubr.bf16.gmra.mrb[0].mxu0 %v4337
      %v4775 = vpop.f32.mrb[0].mxu0
      %v4776 = vadd.f32 %v4615, %v4775
      %v4777 = vpop.f32.mrb[0].mxu0
      %v4778 = vpop.f32.mrb[0].mxu0
      %v4779 = vadd.f32 %v4618, %v4778
      %v4780 = vpop.f32.mrb[0].mxu0
      %4781 = vmatprep.mubr.bf16.mxu0 0
      %4782 = vmatmul.mubr.bf16.gmra.mrb[0].mxu0 %v4339
      %v4783 = vpop.f32.mrb[0].mxu0
      %v4784 = vadd.f32 %v4623, %v4783
      %v4785 = vpop.f32.mrb[0].mxu0
      %v4786 = vpop.f32.mrb[0].mxu0
      %v4787 = vadd.f32 %v4626, %v4786
      %v4788 = vpop.f32.mrb[0].mxu0
      %4789 = vmatprep.mubr.bf16.mxu0 0
      %4790 = vmatmul.mubr.bf16.gmra.mrb[0].mxu0 %v4341
      %v4791 = vpop.f32.mrb[0].mxu0
      %v4792 = vadd.f32 %v4631, %v4791
      %v4793 = vpop.f32.mrb[0].mxu0
      %v4794 = vpop.f32.mrb[0].mxu0
      %v4795 = vadd.f32 %v4634, %v4794
      %v4796 = vpop.f32.mrb[0].mxu0
      %4797 = vmatprep.mubr.bf16.mxu0 0
      %4798 = vmatmul.mubr.bf16.gmra.mrb[0].mxu0 %v4343
      %v4799 = vpop.f32.mrb[0].mxu0
      %v4800 = vadd.f32 %v4639, %v4799
      %v4801 = vpop.f32.mrb[0].mxu0
      %v4802 = vpop.f32.mrb[0].mxu0
      %v4803 = vadd.f32 %v4642, %v4802
      %v4804 = vpop.f32.mrb[0].mxu0
      %4805 = vmatprep.mubr.bf16.mxu0 0
      %4806 = vmatmul.mubr.bf16.gmra.mrb[0].mxu0 %v4345
      %v4807 = vpop.f32.mrb[0].mxu0
      %v4808 = vadd.f32 %v4647, %v4807
      %v4809 = vpop.f32.mrb[0].mxu0
      %v4810 = vpop.f32.mrb[0].mxu0
      %v4811 = vadd.f32 %v4650, %v4810
      %v4812 = vpop.f32.mrb[0].mxu0
      %4813 = vmatprep.mubr.bf16.mxu0 0
      %4814 = vmatmul.mubr.bf16.gmra.mrb[0].mxu0 %v4347
      %v4815 = vpop.f32.mrb[0].mxu0
      %v4816 = vadd.f32 %v4655, %v4815
      %v4817 = vpop.f32.mrb[0].mxu0
      %v4818 = vpop.f32.mrb[0].mxu0
      %v4819 = vadd.f32 %v4658, %v4818
      %v4820 = vpop.f32.mrb[0].mxu0
      %4821 = vmatprep.mubr.bf16.mxu0 0
      %4822 = vmatmul.mubr.bf16.gmra.mrb[0].mxu0 %v4350
      %v4823 = vpop.f32.mrb[0].mxu0
      %v4824 = vadd.f32 %v4663, %v4823
      %v4825 = vpop.f32.mrb[0].mxu0
      %v4826 = vpop.f32.mrb[0].mxu0
      %v4827 = vadd.f32 %v4666, %v4826
      %v4828 = vpop.f32.mrb[0].mxu0
      %4829 = vmatprep.mubr.bf16.mxu0 0
      %4830 = vmatmul.mubr.bf16.gmra.mrb[0].mxu0 %v4353
      %v4831 = vpop.f32.mrb[0].mxu0
      %v4832 = vadd.f32 %v4671, %v4831
      %v4833 = vpop.f32.mrb[0].mxu0
      %v4834 = vpop.f32.mrb[0].mxu0
      %v4835 = vadd.f32 %v4674, %v4834
      %v4836 = vpop.f32.mrb[0].mxu0
      %4837 = vdwg.mxu0
      %v4838 = vadd.f32 %v4712, %v1727
      %v4839 = vadd.f32 %v4715, %v1729
      %v4840 = vadd.f32 %v4720, %v1732
      %v4841 = vadd.f32 %v4723, %v1734
      %v4842 = vadd.f32 %v4728, %v1737
      %v4843 = vadd.f32 %v4731, %v1739
      %v4844 = vadd.f32 %v4736, %v1742
      %v4845 = vadd.f32 %v4739, %v1744
      %v4846 = vadd.f32 %v4744, %v1747
      %v4847 = vadd.f32 %v4747, %v1749
      %v4848 = vadd.f32 %v4752, %v1752
      %v4849 = vadd.f32 %v4755, %v1754
      %v4850 = vadd.f32 %v4760, %v1757
      %v4851 = vadd.f32 %v4763, %v1759
      %v4852 = vadd.f32 %v4768, %v1762
      %v4853 = vadd.f32 %v4771, %v1764
      %v4854 = vadd.f32 %v4776, %v1767
      %v4855 = vadd.f32 %v4779, %v1769
      %v4856 = vadd.f32 %v4784, %v1772
      %v4857 = vadd.f32 %v4787, %v1774
      %v4858 = vadd.f32 %v4792, %v1777
      %v4859 = vadd.f32 %v4795, %v1779
      %v4860 = vadd.f32 %v4800, %v1782
      %v4861 = vadd.f32 %v4803, %v1784
      %v4862 = vadd.f32 %v4808, %v1787
      %v4863 = vadd.f32 %v4811, %v1789
      %v4864 = vadd.f32 %v4816, %v1792
      %v4865 = vadd.f32 %v4819, %v1794
      %v4866 = vadd.f32 %v4824, %v1797
      %v4867 = vadd.f32 %v4827, %v1799
      %v4868 = vadd.f32 %v4832, %v1802
      %v4869 = vadd.f32 %v4835, %v1804
      %v4870 = vmax.f32 %v4838, 0.0
      %v4871 = vmax.f32 %v4839, 0.0
      %v4872 = vmax.f32 %v4840, 0.0
      %v4873 = vmax.f32 %v4841, 0.0
      %v4874 = vmax.f32 %v4842, 0.0
      %v4875 = vmax.f32 %v4843, 0.0
      %v4876 = vmax.f32 %v4844, 0.0
      %v4877 = vmax.f32 %v4845, 0.0
      %v4878 = vmax.f32 %v4846, 0.0
      %v4879 = vmax.f32 %v4847, 0.0
      %v4880 = vmax.f32 %v4848, 0.0
      %v4881 = vmax.f32 %v4849, 0.0
      %v4882 = vmax.f32 %v4850, 0.0
      %v4883 = vmax.f32 %v4851, 0.0
      %v4884 = vmax.f32 %v4852, 0.0
      %v4885 = vmax.f32 %v4853, 0.0
      %v4886 = vmax.f32 %v4854, 0.0
      %v4887 = vmax.f32 %v4855, 0.0
      %v4888 = vmax.f32 %v4856, 0.0
      %v4889 = vmax.f32 %v4857, 0.0
      %v4890 = vmax.f32 %v4858, 0.0
      %v4891 = vmax.f32 %v4859, 0.0
      %v4892 = vmax.f32 %v4860, 0.0
      %v4893 = vmax.f32 %v4861, 0.0
      %v4894 = vmax.f32 %v4862, 0.0
      %v4895 = vmax.f32 %v4863, 0.0
      %v4896 = vmax.f32 %v4864, 0.0
      %v4897 = vmax.f32 %v4865, 0.0
      %v4898 = vmax.f32 %v4866, 0.0
      %v4899 = vmax.f32 %v4867, 0.0
      %v4900 = vmax.f32 %v4868, 0.0
      %v4901 = vmax.f32 %v4869, 0.0
      %s4902 = scalar_lea.vmem [#allocation2], 24
      %4903 = vst.msk [vmem:[%s4902 + $0x1] sm:$0xff] %vm2281, %v4870
      %4904 = vst.msk [vmem:[%s4902 + $0x9] sm:$0xff] %vm2281, %v4871
      %4905 = vst.msk [vmem:[%s4902 + $0x19] sm:$0xff] %vm2281, %v4872
      %4906 = vst.msk [vmem:[%s4902 + $0x21] sm:$0xff] %vm2281, %v4873
      %4907 = vst.msk [vmem:[%s4902 + $0x31] sm:$0xff] %vm2281, %v4874
      %4908 = vst.msk [vmem:[%s4902 + $0x39] sm:$0xff] %vm2281, %v4875
      %4909 = vst.msk [vmem:[%s4902 + $0x49] sm:$0xff] %vm2281, %v4876
      %4910 = vst.msk [vmem:[%s4902 + $0x51] sm:$0xff] %vm2281, %v4877
      %4911 = vst.msk [vmem:[%s4902 + $0x61] sm:$0xff] %vm2281, %v4878
      %4912 = vst.msk [vmem:[%s4902 + $0x69] sm:$0xff] %vm2281, %v4879
      %4913 = vst.msk [vmem:[%s4902 + $0x79] sm:$0xff] %vm2281, %v4880
      %4914 = vst.msk [vmem:[%s4902 + $0x81] sm:$0xff] %vm2281, %v4881
      %4915 = vst.msk [vmem:[%s4902 + $0x91] sm:$0xff] %vm2281, %v4882
      %4916 = vst.msk [vmem:[%s4902 + $0x99] sm:$0xff] %vm2281, %v4883
      %4917 = vst.msk [vmem:[%s4902 + $0xa9] sm:$0xff] %vm2281, %v4884
      %4918 = vst.msk [vmem:[%s4902 + $0xb1] sm:$0xff] %vm2281, %v4885
      %4919 = vst.msk [vmem:[%s4902 + $0xc1] sm:$0xff] %vm2281, %v4886
      %4920 = vst.msk [vmem:[%s4902 + $0xc9] sm:$0xff] %vm2281, %v4887
      %4921 = vst.msk [vmem:[%s4902 + $0xd9] sm:$0xff] %vm2281, %v4888
      %4922 = vst.msk [vmem:[%s4902 + $0xe1] sm:$0xff] %vm2281, %v4889
      %4923 = vst.msk [vmem:[%s4902 + $0xf1] sm:$0xff] %vm2281, %v4890
      %4924 = vst.msk [vmem:[%s4902 + $0xf9] sm:$0xff] %vm2281, %v4891
      %4925 = vst.msk [vmem:[%s4902 + $0x109] sm:$0xff] %vm2281, %v4892
      %4926 = vst.msk [vmem:[%s4902 + $0x111] sm:$0xff] %vm2281, %v4893
      %4927 = vst.msk [vmem:[%s4902 + $0x121] sm:$0xff] %vm2281, %v4894
      %4928 = vst.msk [vmem:[%s4902 + $0x129] sm:$0xff] %vm2281, %v4895
      %4929 = vst.msk [vmem:[%s4902 + $0x139] sm:$0xff] %vm2281, %v4896
      %4930 = vst.msk [vmem:[%s4902 + $0x141] sm:$0xff] %vm2281, %v4897
      %4931 = vst.msk [vmem:[%s4902 + $0x151] sm:$0xff] %vm2281, %v4898
      %4932 = vst.msk [vmem:[%s4902 + $0x159] sm:$0xff] %vm2281, %v4899
      %4933 = vst.msk [vmem:[%s4902 + $0x169] sm:$0xff] %vm2281, %v4900
      %4934 = vst.msk [vmem:[%s4902 + $0x171] sm:$0xff] %vm2281, %v4901
      %p4935 = scmp.eq.s32.totalorder %s23, 15
      // Predicated region
      $region53: #{resblocknet_forward.1} parent=47 // pred_check
        %p4936 = pneg %p4935
      $region54: #{resblocknet_forward.1} parent=47 // pred_check_branch
        %4938 = sbr.rel (%p4936) target = $region56
      $region55: #{resblocknet_forward.1} parent=47 // pred_region
        %v4939 = vld [vmem:[#allocation2] sm:$0xff]
        %v4940 = vld [vmem:[#allocation2 + $0x8] sm:$0xff]
        %v4941 = vld [vmem:[#allocation2 + $0x10] sm:$0x3]
        %v4942 = vld [vmem:[#allocation2 + $0x18] sm:$0xff]
        %v4943 = vld [vmem:[#allocation2 + $0x20] sm:$0xff]
        %v4944 = vld [vmem:[#allocation2 + $0x28] sm:$0x3]
        %v4945 = vld [vmem:[#allocation2 + $0x30] sm:$0xff]
        %v4946 = vld [vmem:[#allocation2 + $0x38] sm:$0xff]
        %v4947 = vld [vmem:[#allocation2 + $0x40] sm:$0x3]
        %v4948 = vld [vmem:[#allocation2 + $0x48] sm:$0xff]
        %v4949 = vld [vmem:[#allocation2 + $0x50] sm:$0xff]
        %v4950 = vld [vmem:[#allocation2 + $0x58] sm:$0x3]
        %v4951 = vld [vmem:[#allocation2 + $0x60] sm:$0xff]
        %v4952 = vld [vmem:[#allocation2 + $0x68] sm:$0xff]
        %v4953 = vld [vmem:[#allocation2 + $0x70] sm:$0x3]
        %v4954 = vld [vmem:[#allocation2 + $0x78] sm:$0xff]
        %v4955 = vld [vmem:[#allocation2 + $0x80] sm:$0xff]
        %v4956 = vld [vmem:[#allocation2 + $0x88] sm:$0x3]
        %v4957 = vld [vmem:[#allocation2 + $0x90] sm:$0xff]
        %v4958 = vld [vmem:[#allocation2 + $0x98] sm:$0xff]
        %v4959 = vld [vmem:[#allocation2 + $0xa0] sm:$0x3]
        %v4960 = vld [vmem:[#allocation2 + $0xa8] sm:$0xff]
        %v4961 = vld [vmem:[#allocation2 + $0xb0] sm:$0xff]
        %v4962 = vld [vmem:[#allocation2 + $0xb8] sm:$0x3]
        %v4963 = vld [vmem:[#allocation2 + $0xc0] sm:$0xff]
        %v4964 = vld [vmem:[#allocation2 + $0xc8] sm:$0xff]
        %v4965 = vld [vmem:[#allocation2 + $0xd0] sm:$0x3]
        %v4966 = vld [vmem:[#allocation2 + $0xd8] sm:$0xff]
        %v4967 = vld [vmem:[#allocation2 + $0xe0] sm:$0xff]
        %v4968 = vld [vmem:[#allocation2 + $0xe8] sm:$0x3]
        %v4969 = vld [vmem:[#allocation2 + $0xf0] sm:$0xff]
        %v4970 = vld [vmem:[#allocation2 + $0xf8] sm:$0xff]
        %v4971 = vld [vmem:[#allocation2 + $0x100] sm:$0x3]
        %v4972 = vld [vmem:[#allocation2 + $0x108] sm:$0xff]
        %v4973 = vld [vmem:[#allocation2 + $0x110] sm:$0xff]
        %v4974 = vld [vmem:[#allocation2 + $0x118] sm:$0x3]
        %v4975 = vld [vmem:[#allocation2 + $0x120] sm:$0xff]
        %v4976 = vld [vmem:[#allocation2 + $0x128] sm:$0xff]
        %v4977 = vld [vmem:[#allocation2 + $0x130] sm:$0x3]
        %v4978 = vld [vmem:[#allocation2 + $0x138] sm:$0xff]
        %v4979 = vld [vmem:[#allocation2 + $0x140] sm:$0xff]
        %v4980 = vld [vmem:[#allocation2 + $0x148] sm:$0x3]
        %v4981 = vld [vmem:[#allocation2 + $0x150] sm:$0xff]
        %v4982 = vld [vmem:[#allocation2 + $0x158] sm:$0xff]
        %v4983 = vld [vmem:[#allocation2 + $0x160] sm:$0x3]
        %v4984 = vld [vmem:[#allocation2 + $0x168] sm:$0xff]
        %v4985 = vld [vmem:[#allocation2 + $0x170] sm:$0xff]
        %v4986 = vld [vmem:[#allocation2 + $0x178] sm:$0x3]
        %v4987 = vld [vmem:[#allocation2 + $0x180] sm:$0xff]
        %v4988 = vld [vmem:[#allocation2 + $0x188] sm:$0xff]
        %v4989 = vld [vmem:[#allocation2 + $0x190] sm:$0x3]
        %v4990 = vld [vmem:[#allocation2 + $0x198] sm:$0xff]
        %v4991 = vld [vmem:[#allocation2 + $0x1a0] sm:$0xff]
        %v4992 = vld [vmem:[#allocation2 + $0x1a8] sm:$0x3]
        %v4993 = vpack.c.bf16 %v4940, %v4939
        %v4994 = vpack.c.bf16 %v4943, %v4942
        %v4995 = vpack.c.bf16 %v4946, %v4945
        %v4996 = vpack.c.bf16 %v4949, %v4948
        %v4997 = vpack.c.bf16 %v4952, %v4951
        %v4998 = vpack.c.bf16 %v4955, %v4954
        %v4999 = vpack.c.bf16 %v4958, %v4957
        %v5000 = vpack.c.bf16 %v4961, %v4960
        %v5001 = vpack.c.bf16 %v4964, %v4963
        %v5002 = vpack.c.bf16 %v4967, %v4966
        %v5003 = vpack.c.bf16 %v4970, %v4969
        %v5004 = vpack.c.bf16 %v4973, %v4972
        %v5005 = vpack.c.bf16 %v4976, %v4975
        %v5006 = vpack.c.bf16 %v4979, %v4978
        %v5007 = vpack.c.bf16 %v4982, %v4981
        %v5008 = vpack.c.bf16 %v4985, %v4984
        %v5009 = vpack.c.bf16 %v4941, %v4941
        %v5010 = vpack.c.bf16 %v4944, %v4944
        %v5011 = vpack.c.bf16 %v4947, %v4947
        %v5012 = vpack.c.bf16 %v4950, %v4950
        %v5013 = vpack.c.bf16 %v4953, %v4953
        %v5014 = vpack.c.bf16 %v4956, %v4956
        %v5015 = vpack.c.bf16 %v4959, %v4959
        %v5016 = vpack.c.bf16 %v4962, %v4962
        %v5017 = vpack.c.bf16 %v4965, %v4965
        %v5018 = vpack.c.bf16 %v4968, %v4968
        %v5019 = vpack.c.bf16 %v4971, %v4971
        %v5020 = vpack.c.bf16 %v4974, %v4974
        %v5021 = vpack.c.bf16 %v4977, %v4977
        %v5022 = vpack.c.bf16 %v4980, %v4980
        %v5023 = vpack.c.bf16 %v4983, %v4983
        %v5024 = vpack.c.bf16 %v4986, %v4986
        %v5026 = vshrl.u32 %v4993, 16
        %v5028 = vshll.u32 %v4993, 16
        %v5030 = vrot.slane %v5028, 1
        %v5031 = vor.u32 %v5026, %v5030
        %v5033 = vshll.u32 %v5009, 16
        %v5035 = vrot.slane %v5033, 1
        %v5036 = vsel %vm1869, %v5031, %v5035
        %v5038 = vshrl.u32 %v4994, 16
        %v5040 = vshll.u32 %v4994, 16
        %v5042 = vrot.slane %v5040, 1
        %v5043 = vor.u32 %v5038, %v5042
        %v5045 = vshll.u32 %v5010, 16
        %v5047 = vrot.slane %v5045, 1
        %v5048 = vsel %vm1869, %v5043, %v5047
        %v5050 = vshrl.u32 %v4995, 16
        %v5052 = vshll.u32 %v4995, 16
        %v5054 = vrot.slane %v5052, 1
        %v5055 = vor.u32 %v5050, %v5054
        %v5057 = vshll.u32 %v5011, 16
        %v5059 = vrot.slane %v5057, 1
        %v5060 = vsel %vm1869, %v5055, %v5059
        %v5062 = vshrl.u32 %v4996, 16
        %v5064 = vshll.u32 %v4996, 16
        %v5066 = vrot.slane %v5064, 1
        %v5067 = vor.u32 %v5062, %v5066
        %v5069 = vshll.u32 %v5012, 16
        %v5071 = vrot.slane %v5069, 1
        %v5072 = vsel %vm1869, %v5067, %v5071
        %v5074 = vshrl.u32 %v4997, 16
        %v5076 = vshll.u32 %v4997, 16
        %v5078 = vrot.slane %v5076, 1
        %v5079 = vor.u32 %v5074, %v5078
        %v5081 = vshll.u32 %v5013, 16
        %v5083 = vrot.slane %v5081, 1
        %v5084 = vsel %vm1869, %v5079, %v5083
        %v5086 = vshrl.u32 %v4998, 16
        %v5088 = vshll.u32 %v4998, 16
        %v5090 = vrot.slane %v5088, 1
        %v5091 = vor.u32 %v5086, %v5090
        %v5093 = vshll.u32 %v5014, 16
        %v5095 = vrot.slane %v5093, 1
        %v5096 = vsel %vm1869, %v5091, %v5095
        %v5098 = vshrl.u32 %v4999, 16
        %v5100 = vshll.u32 %v4999, 16
        %v5102 = vrot.slane %v5100, 1
        %v5103 = vor.u32 %v5098, %v5102
        %v5105 = vshll.u32 %v5015, 16
        %v5107 = vrot.slane %v5105, 1
        %v5108 = vsel %vm1869, %v5103, %v5107
        %v5110 = vshrl.u32 %v5000, 16
        %v5112 = vshll.u32 %v5000, 16
        %v5114 = vrot.slane %v5112, 1
        %v5115 = vor.u32 %v5110, %v5114
        %v5117 = vshll.u32 %v5016, 16
        %v5119 = vrot.slane %v5117, 1
        %v5120 = vsel %vm1869, %v5115, %v5119
        %v5122 = vshrl.u32 %v5001, 16
        %v5124 = vshll.u32 %v5001, 16
        %v5126 = vrot.slane %v5124, 1
        %v5127 = vor.u32 %v5122, %v5126
        %v5129 = vshll.u32 %v5017, 16
        %v5131 = vrot.slane %v5129, 1
        %v5132 = vsel %vm1869, %v5127, %v5131
        %v5134 = vshrl.u32 %v5002, 16
        %v5136 = vshll.u32 %v5002, 16
        %v5138 = vrot.slane %v5136, 1
        %v5139 = vor.u32 %v5134, %v5138
        %v5141 = vshll.u32 %v5018, 16
        %v5143 = vrot.slane %v5141, 1
        %v5144 = vsel %vm1869, %v5139, %v5143
        %v5146 = vshrl.u32 %v5003, 16
        %v5148 = vshll.u32 %v5003, 16
        %v5150 = vrot.slane %v5148, 1
        %v5151 = vor.u32 %v5146, %v5150
        %v5153 = vshll.u32 %v5019, 16
        %v5155 = vrot.slane %v5153, 1
        %v5156 = vsel %vm1869, %v5151, %v5155
        %v5158 = vshrl.u32 %v5004, 16
        %v5160 = vshll.u32 %v5004, 16
        %v5162 = vrot.slane %v5160, 1
        %v5163 = vor.u32 %v5158, %v5162
        %v5165 = vshll.u32 %v5020, 16
        %v5167 = vrot.slane %v5165, 1
        %v5168 = vsel %vm1869, %v5163, %v5167
        %v5170 = vshrl.u32 %v5005, 16
        %v5172 = vshll.u32 %v5005, 16
        %v5174 = vrot.slane %v5172, 1
        %v5175 = vor.u32 %v5170, %v5174
        %v5177 = vshll.u32 %v5021, 16
        %v5179 = vrot.slane %v5177, 1
        %v5180 = vsel %vm1869, %v5175, %v5179
        %v5182 = vshrl.u32 %v5006, 16
        %v5184 = vshll.u32 %v5006, 16
        %v5186 = vrot.slane %v5184, 1
        %v5187 = vor.u32 %v5182, %v5186
        %v5189 = vshll.u32 %v5022, 16
        %v5191 = vrot.slane %v5189, 1
        %v5192 = vsel %vm1869, %v5187, %v5191
        %v5194 = vshrl.u32 %v5007, 16
        %v5196 = vshll.u32 %v5007, 16
        %v5198 = vrot.slane %v5196, 1
        %v5199 = vor.u32 %v5194, %v5198
        %v5201 = vshll.u32 %v5023, 16
        %v5203 = vrot.slane %v5201, 1
        %v5204 = vsel %vm1869, %v5199, %v5203
        %v5206 = vshrl.u32 %v5008, 16
        %v5208 = vshll.u32 %v5008, 16
        %v5210 = vrot.slane %v5208, 1
        %v5211 = vor.u32 %v5206, %v5210
        %v5213 = vshll.u32 %v5024, 16
        %v5215 = vrot.slane %v5213, 1
        %v5216 = vsel %vm1869, %v5211, %v5215
        %v5249 = vrot.slane %v4993, 1
        %v5250 = vrot.slane %v5009, 1
        %v5251 = vsel %vm2094, %v5249, %v5250
        %v5252 = vrot.slane %v4994, 1
        %v5253 = vrot.slane %v5010, 1
        %v5254 = vsel %vm2094, %v5252, %v5253
        %v5255 = vrot.slane %v4995, 1
        %v5256 = vrot.slane %v5011, 1
        %v5257 = vsel %vm2094, %v5255, %v5256
        %v5258 = vrot.slane %v4996, 1
        %v5259 = vrot.slane %v5012, 1
        %v5260 = vsel %vm2094, %v5258, %v5259
        %v5261 = vrot.slane %v4997, 1
        %v5262 = vrot.slane %v5013, 1
        %v5263 = vsel %vm2094, %v5261, %v5262
        %v5264 = vrot.slane %v4998, 1
        %v5265 = vrot.slane %v5014, 1
        %v5266 = vsel %vm2094, %v5264, %v5265
        %v5267 = vrot.slane %v4999, 1
        %v5268 = vrot.slane %v5015, 1
        %v5269 = vsel %vm2094, %v5267, %v5268
        %v5270 = vrot.slane %v5000, 1
        %v5271 = vrot.slane %v5016, 1
        %v5272 = vsel %vm2094, %v5270, %v5271
        %v5273 = vrot.slane %v5001, 1
        %v5274 = vrot.slane %v5017, 1
        %v5275 = vsel %vm2094, %v5273, %v5274
        %v5276 = vrot.slane %v5002, 1
        %v5277 = vrot.slane %v5018, 1
        %v5278 = vsel %vm2094, %v5276, %v5277
        %v5279 = vrot.slane %v5003, 1
        %v5280 = vrot.slane %v5019, 1
        %v5281 = vsel %vm2094, %v5279, %v5280
        %v5282 = vrot.slane %v5004, 1
        %v5283 = vrot.slane %v5020, 1
        %v5284 = vsel %vm2094, %v5282, %v5283
        %v5285 = vrot.slane %v5005, 1
        %v5286 = vrot.slane %v5021, 1
        %v5287 = vsel %vm2094, %v5285, %v5286
        %v5288 = vrot.slane %v5006, 1
        %v5289 = vrot.slane %v5022, 1
        %v5290 = vsel %vm2094, %v5288, %v5289
        %v5291 = vrot.slane %v5007, 1
        %v5292 = vrot.slane %v5023, 1
        %v5293 = vsel %vm2094, %v5291, %v5292
        %v5294 = vrot.slane %v5008, 1
        %v5295 = vrot.slane %v5024, 1
        %v5296 = vsel %vm2094, %v5294, %v5295
        %v5297 = vpack.c.bf16 %v4988, %v4987
        %v5298 = vpack.c.bf16 %v4989, %v4989
        %v5300 = vshrl.u32 %v5297, 16
        %v5302 = vshll.u32 %v5297, 16
        %v5304 = vrot.slane %v5302, 1
        %v5305 = vor.u32 %v5300, %v5304
        %v5307 = vshll.u32 %v5298, 16
        %v5309 = vrot.slane %v5307, 1
        %v5310 = vsel %vm1869, %v5305, %v5309
        %v5313 = vrot.slane %v5297, 1
        %v5314 = vrot.slane %v5298, 1
        %v5315 = vsel %vm2094, %v5313, %v5314
        %v5316 = vpack.c.bf16 %v4991, %v4990
        %v5317 = vpack.c.bf16 %v4992, %v4992
        %v5319 = vshrl.u32 %v5316, 16
        %v5321 = vshll.u32 %v5316, 16
        %v5323 = vrot.slane %v5321, 1
        %v5324 = vor.u32 %v5319, %v5323
        %v5326 = vshll.u32 %v5317, 16
        %v5328 = vrot.slane %v5326, 1
        %v5329 = vsel %vm1869, %v5324, %v5328
        %v5332 = vrot.slane %v5316, 1
        %v5333 = vrot.slane %v5317, 1
        %v5334 = vsel %vm2094, %v5332, %v5333
        %5335 = vrot.lane.b32.xlu0 %v5036, 64
        %v5336 = vpop.permute.xlu0 %5335
        %5337 = vrot.lane.b32.xlu0 %v5048, 64
        %v5338 = vpop.permute.xlu0 %5337
        %5339 = vrot.lane.b32.xlu0 %v5060, 64
        %v5340 = vpop.permute.xlu0 %5339
        %5341 = vrot.lane.b32.xlu0 %v5072, 64
        %v5342 = vpop.permute.xlu0 %5341
        %5343 = vrot.lane.b32.xlu0 %v5084, 64
        %v5344 = vpop.permute.xlu0 %5343
        %5345 = vrot.lane.b32.xlu0 %v5096, 64
        %v5346 = vpop.permute.xlu0 %5345
        %5347 = vrot.lane.b32.xlu0 %v5108, 64
        %v5348 = vpop.permute.xlu0 %5347
        %5349 = vrot.lane.b32.xlu0 %v5120, 64
        %v5350 = vpop.permute.xlu0 %5349
        %5351 = vrot.lane.b32.xlu0 %v5132, 64
        %v5352 = vpop.permute.xlu0 %5351
        %5353 = vrot.lane.b32.xlu0 %v5144, 64
        %v5354 = vpop.permute.xlu0 %5353
        %5355 = vrot.lane.b32.xlu0 %v5156, 64
        %v5356 = vpop.permute.xlu0 %5355
        %5357 = vrot.lane.b32.xlu0 %v5168, 64
        %v5358 = vpop.permute.xlu0 %5357
        %5359 = vrot.lane.b32.xlu0 %v5180, 64
        %v5360 = vpop.permute.xlu0 %5359
        %5361 = vrot.lane.b32.xlu0 %v5192, 64
        %v5362 = vpop.permute.xlu0 %5361
        %5363 = vrot.lane.b32.xlu0 %v5204, 64
        %v5364 = vpop.permute.xlu0 %5363
        %5365 = vrot.lane.b32.xlu0 %v5216, 64
        %v5366 = vpop.permute.xlu0 %5365
        %5367 = vrot.lane.b32.xlu0 %v4994, 64
        %v5368 = vpop.permute.xlu0 %5367
        %5369 = vrot.lane.b32.xlu0 %v4995, 64
        %v5370 = vpop.permute.xlu0 %5369
        %5371 = vrot.lane.b32.xlu0 %v4996, 64
        %v5372 = vpop.permute.xlu0 %5371
        %5373 = vrot.lane.b32.xlu0 %v4997, 64
        %v5374 = vpop.permute.xlu0 %5373
        %5375 = vrot.lane.b32.xlu0 %v4998, 64
        %v5376 = vpop.permute.xlu0 %5375
        %5377 = vrot.lane.b32.xlu0 %v4999, 64
        %v5378 = vpop.permute.xlu0 %5377
        %5379 = vrot.lane.b32.xlu0 %v5000, 64
        %v5380 = vpop.permute.xlu0 %5379
        %5381 = vrot.lane.b32.xlu0 %v5001, 64
        %v5382 = vpop.permute.xlu0 %5381
        %5383 = vrot.lane.b32.xlu0 %v5002, 64
        %v5384 = vpop.permute.xlu0 %5383
        %5385 = vrot.lane.b32.xlu0 %v5003, 64
        %v5386 = vpop.permute.xlu0 %5385
        %5387 = vrot.lane.b32.xlu0 %v5004, 64
        %v5388 = vpop.permute.xlu0 %5387
        %5389 = vrot.lane.b32.xlu0 %v5005, 64
        %v5390 = vpop.permute.xlu0 %5389
        %5391 = vrot.lane.b32.xlu0 %v5006, 64
        %v5392 = vpop.permute.xlu0 %5391
        %5393 = vrot.lane.b32.xlu0 %v5007, 64
        %v5394 = vpop.permute.xlu0 %5393
        %5395 = vrot.lane.b32.xlu0 %v5008, 64
        %v5396 = vpop.permute.xlu0 %5395
        %5397 = vrot.lane.b32.xlu0 %v5297, 64
        %v5398 = vpop.permute.xlu0 %5397
        %5399 = vrot.lane.b32.xlu0 %v5254, 64
        %v5400 = vpop.permute.xlu0 %5399
        %5401 = vrot.lane.b32.xlu0 %v5257, 64
        %v5402 = vpop.permute.xlu0 %5401
        %5403 = vrot.lane.b32.xlu0 %v5260, 64
        %v5404 = vpop.permute.xlu0 %5403
        %5405 = vrot.lane.b32.xlu0 %v5263, 64
        %v5406 = vpop.permute.xlu0 %5405
        %5407 = vrot.lane.b32.xlu0 %v5266, 64
        %v5408 = vpop.permute.xlu0 %5407
        %5409 = vrot.lane.b32.xlu0 %v5269, 64
        %v5410 = vpop.permute.xlu0 %5409
        %5411 = vrot.lane.b32.xlu0 %v5272, 64
        %v5412 = vpop.permute.xlu0 %5411
        %5413 = vrot.lane.b32.xlu0 %v5275, 64
        %v5414 = vpop.permute.xlu0 %5413
        %5415 = vrot.lane.b32.xlu0 %v5278, 64
        %v5416 = vpop.permute.xlu0 %5415
        %5417 = vrot.lane.b32.xlu0 %v5281, 64
        %v5418 = vpop.permute.xlu0 %5417
        %5419 = vrot.lane.b32.xlu0 %v5284, 64
        %v5420 = vpop.permute.xlu0 %5419
        %5421 = vrot.lane.b32.xlu0 %v5287, 64
        %v5422 = vpop.permute.xlu0 %5421
        %5423 = vrot.lane.b32.xlu0 %v5290, 64
        %v5424 = vpop.permute.xlu0 %5423
        %5425 = vrot.lane.b32.xlu0 %v5293, 64
        %v5426 = vpop.permute.xlu0 %5425
        %5427 = vrot.lane.b32.xlu0 %v5296, 64
        %v5428 = vpop.permute.xlu0 %5427
        %5429 = vrot.lane.b32.xlu0 %v5315, 64
        %v5430 = vpop.permute.xlu0 %5429
        %5431 = vrot.lane.b32.xlu0 %v5310, 64
        %v5432 = vpop.permute.xlu0 %5431
        %5433 = vrot.lane.b32.xlu0 %v5329, 64
        %v5434 = vpop.permute.xlu0 %5433
        %v5436 = vsel %vm2281, %v4993, %v5336
        %v5439 = vsel %vm2281, %v4994, %v5338
        %v5442 = vsel %vm2281, %v4995, %v5340
        %v5445 = vsel %vm2281, %v4996, %v5342
        %v5448 = vsel %vm2281, %v4997, %v5344
        %v5451 = vsel %vm2281, %v4998, %v5346
        %v5454 = vsel %vm2281, %v4999, %v5348
        %v5457 = vsel %vm2281, %v5000, %v5350
        %v5460 = vsel %vm2281, %v5001, %v5352
        %v5463 = vsel %vm2281, %v5002, %v5354
        %v5466 = vsel %vm2281, %v5003, %v5356
        %v5469 = vsel %vm2281, %v5004, %v5358
        %v5472 = vsel %vm2281, %v5005, %v5360
        %v5475 = vsel %vm2281, %v5006, %v5362
        %v5478 = vsel %vm2281, %v5007, %v5364
        %v5481 = vsel %vm2281, %v5008, %v5366
        %v5485 = vsel %vm2281, %v5251, %v5368
        %v5489 = vsel %vm2281, %v5254, %v5370
        %v5493 = vsel %vm2281, %v5257, %v5372
        %v5497 = vsel %vm2281, %v5260, %v5374
        %v5501 = vsel %vm2281, %v5263, %v5376
        %v5505 = vsel %vm2281, %v5266, %v5378
        %v5509 = vsel %vm2281, %v5269, %v5380
        %v5513 = vsel %vm2281, %v5272, %v5382
        %v5517 = vsel %vm2281, %v5275, %v5384
        %v5521 = vsel %vm2281, %v5278, %v5386
        %v5525 = vsel %vm2281, %v5281, %v5388
        %v5529 = vsel %vm2281, %v5284, %v5390
        %v5533 = vsel %vm2281, %v5287, %v5392
        %v5537 = vsel %vm2281, %v5290, %v5394
        %v5541 = vsel %vm2281, %v5293, %v5396
        %v5545 = vsel %vm2281, %v5296, %v5398
        %v5549 = vsel %vm2281, %v5048, %v5400
        %v5553 = vsel %vm2281, %v5060, %v5402
        %v5557 = vsel %vm2281, %v5072, %v5404
        %v5561 = vsel %vm2281, %v5084, %v5406
        %v5565 = vsel %vm2281, %v5096, %v5408
        %v5569 = vsel %vm2281, %v5108, %v5410
        %v5573 = vsel %vm2281, %v5120, %v5412
        %v5577 = vsel %vm2281, %v5132, %v5414
        %v5581 = vsel %vm2281, %v5144, %v5416
        %v5585 = vsel %vm2281, %v5156, %v5418
        %v5589 = vsel %vm2281, %v5168, %v5420
        %v5593 = vsel %vm2281, %v5180, %v5422
        %v5597 = vsel %vm2281, %v5192, %v5424
        %v5601 = vsel %vm2281, %v5204, %v5426
        %v5605 = vsel %vm2281, %v5216, %v5428
        %v5609 = vsel %vm2281, %v5310, %v5430
        %v5612 = vsel %vm2281, %v5297, %v5432
        %v5615 = vsel %vm2281, %v5316, %v5434
        %v5617 = vld [vmem:[%s6] sm:$0xf]
        %v5618 = vld [vmem:[%s6 + $0x4] sm:$0xf]
        %v5619 = vld [vmem:[%s6 + $0x8] sm:$0xf]
        %v5620 = vld [vmem:[%s6 + $0xc] sm:$0xf]
        %v5621 = vld [vmem:[%s6 + $0x10] sm:$0xf]
        %v5622 = vld [vmem:[%s6 + $0x14] sm:$0xf]
        %v5623 = vld [vmem:[%s6 + $0x18] sm:$0xf]
        %v5624 = vld [vmem:[%s6 + $0x1c] sm:$0xf]
        %v5625 = vld [vmem:[%s6 + $0x20] sm:$0xf]
        %v5626 = vld [vmem:[%s6 + $0x24] sm:$0xf]
        %v5627 = vld [vmem:[%s6 + $0x28] sm:$0xf]
        %v5628 = vld [vmem:[%s6 + $0x2c] sm:$0xf]
        %v5629 = vld [vmem:[%s6 + $0x30] sm:$0xf]
        %v5630 = vld [vmem:[%s6 + $0x34] sm:$0xf]
        %v5631 = vld [vmem:[%s6 + $0x38] sm:$0xf]
        %v5632 = vld [vmem:[%s6 + $0x3c] sm:$0xf]
        %v5633 = vld [vmem:[%s6 + $0x40] sm:$0xf]
        %v5634 = vld [vmem:[%s6 + $0x44] sm:$0xf]
        %v5635 = vld [vmem:[%s6 + $0x48] sm:$0xf]
        %v5636 = vld [vmem:[%s6 + $0x4c] sm:$0xf]
        %v5637 = vld [vmem:[%s6 + $0x50] sm:$0xf]
        %v5638 = vld [vmem:[%s6 + $0x54] sm:$0xf]
        %v5639 = vld [vmem:[%s6 + $0x58] sm:$0xf]
        %v5640 = vld [vmem:[%s6 + $0x5c] sm:$0xf]
        %v5641 = vld [vmem:[%s6 + $0x60] sm:$0xf]
        %v5642 = vld [vmem:[%s6 + $0x64] sm:$0xf]
        %v5643 = vld [vmem:[%s6 + $0x68] sm:$0xf]
        %v5644 = vld [vmem:[%s6 + $0x6c] sm:$0xf]
        %v5645 = vld [vmem:[%s6 + $0x70] sm:$0xf]
        %v5646 = vld [vmem:[%s6 + $0x74] sm:$0xf]
        %v5647 = vld [vmem:[%s6 + $0x78] sm:$0xf]
        %v5648 = vld [vmem:[%s6 + $0x7c] sm:$0xf]
        %v5649 = vld [vmem:[%s6 + $0x80] sm:$0xf]
        %v5650 = vld [vmem:[%s6 + $0x84] sm:$0xf]
        %v5651 = vld [vmem:[%s6 + $0x88] sm:$0xf]
        %v5652 = vld [vmem:[%s6 + $0x8c] sm:$0xf]
        %v5653 = vld [vmem:[%s6 + $0x90] sm:$0xf]
        %v5654 = vld [vmem:[%s6 + $0x94] sm:$0xf]
        %v5655 = vld [vmem:[%s6 + $0x98] sm:$0xf]
        %v5656 = vld [vmem:[%s6 + $0x9c] sm:$0xf]
        %v5657 = vld [vmem:[%s6 + $0xa0] sm:$0xf]
        %v5658 = vld [vmem:[%s6 + $0xa4] sm:$0xf]
        %v5659 = vld [vmem:[%s6 + $0xa8] sm:$0xf]
        %v5660 = vld [vmem:[%s6 + $0xac] sm:$0xf]
        %v5661 = vld [vmem:[%s6 + $0xb0] sm:$0xf]
        %v5662 = vld [vmem:[%s6 + $0xb4] sm:$0xf]
        %v5663 = vld [vmem:[%s6 + $0xb8] sm:$0xf]
        %v5664 = vld [vmem:[%s6 + $0xbc] sm:$0xf]
        %v5665 = vld [vmem:[%s6 + $0xc0] sm:$0xf]
        %v5666 = vld [vmem:[%s6 + $0xc4] sm:$0xf]
        %v5667 = vld [vmem:[%s6 + $0xc8] sm:$0xf]
        %v5668 = vld [vmem:[%s6 + $0xcc] sm:$0xf]
        %v5669 = vld [vmem:[%s6 + $0xd0] sm:$0xf]
        %v5670 = vld [vmem:[%s6 + $0xd4] sm:$0xf]
        %v5671 = vld [vmem:[%s6 + $0xd8] sm:$0xf]
        %v5672 = vld [vmem:[%s6 + $0xdc] sm:$0xf]
        %v5673 = vld [vmem:[%s6 + $0xe0] sm:$0xf]
        %v5674 = vld [vmem:[%s6 + $0xe4] sm:$0xf]
        %v5675 = vld [vmem:[%s6 + $0xe8] sm:$0xf]
        %v5676 = vld [vmem:[%s6 + $0xec] sm:$0xf]
        %v5677 = vld [vmem:[%s6 + $0xf0] sm:$0xf]
        %v5678 = vld [vmem:[%s6 + $0xf4] sm:$0xf]
        %v5679 = vld [vmem:[%s6 + $0xf8] sm:$0xf]
        %v5680 = vld [vmem:[%s6 + $0xfc] sm:$0xf]
        %v5681 = vld [vmem:[%s6 + $0x100] sm:$0xf]
        %v5682 = vld [vmem:[%s6 + $0x104] sm:$0xf]
        %v5683 = vld [vmem:[%s6 + $0x108] sm:$0xf]
        %v5684 = vld [vmem:[%s6 + $0x10c] sm:$0xf]
        %v5685 = vld [vmem:[%s6 + $0x110] sm:$0xf]
        %v5686 = vld [vmem:[%s6 + $0x114] sm:$0xf]
        %v5687 = vld [vmem:[%s6 + $0x118] sm:$0xf]
        %v5688 = vld [vmem:[%s6 + $0x11c] sm:$0xf]
        %v5761 = vunpack.c.l.b16 %v5617
        %v5762 = vunpack.c.l.b16 %v5618
        %v5763 = vunpack.c.l.b16 %v5619
        %v5764 = vunpack.c.l.b16 %v5620
        %v5765 = vunpack.c.l.b16 %v5621
        %v5766 = vunpack.c.l.b16 %v5622
        %v5767 = vunpack.c.l.b16 %v5623
        %v5768 = vunpack.c.l.b16 %v5624
        %v5769 = vunpack.c.l.b16 %v5625
        %v5770 = vunpack.c.l.b16 %v5626
        %v5771 = vunpack.c.l.b16 %v5627
        %v5772 = vunpack.c.l.b16 %v5628
        %v5773 = vunpack.c.l.b16 %v5629
        %v5774 = vunpack.c.l.b16 %v5630
        %v5775 = vunpack.c.l.b16 %v5631
        %v5776 = vunpack.c.l.b16 %v5632
        %v5777 = vunpack.c.l.b16 %v5633
        %v5778 = vunpack.c.l.b16 %v5634
        %v5779 = vunpack.c.l.b16 %v5635
        %v5780 = vunpack.c.l.b16 %v5636
        %v5781 = vunpack.c.l.b16 %v5637
        %v5782 = vunpack.c.l.b16 %v5638
        %v5783 = vunpack.c.l.b16 %v5639
        %v5784 = vunpack.c.l.b16 %v5640
        %v5785 = vunpack.c.l.b16 %v5641
        %v5786 = vunpack.c.l.b16 %v5642
        %v5787 = vunpack.c.l.b16 %v5643
        %v5788 = vunpack.c.l.b16 %v5644
        %v5789 = vunpack.c.l.b16 %v5645
        %v5790 = vunpack.c.l.b16 %v5646
        %v5791 = vunpack.c.l.b16 %v5647
        %v5792 = vunpack.c.l.b16 %v5648
        %v5793 = vunpack.c.l.b16 %v5649
        %v5794 = vunpack.c.l.b16 %v5650
        %v5795 = vunpack.c.l.b16 %v5651
        %v5796 = vunpack.c.l.b16 %v5652
        %v5797 = vunpack.c.l.b16 %v5653
        %v5798 = vunpack.c.l.b16 %v5654
        %v5799 = vunpack.c.l.b16 %v5655
        %v5800 = vunpack.c.l.b16 %v5656
        %v5801 = vunpack.c.l.b16 %v5657
        %v5802 = vunpack.c.l.b16 %v5658
        %v5803 = vunpack.c.l.b16 %v5659
        %v5804 = vunpack.c.l.b16 %v5660
        %v5805 = vunpack.c.l.b16 %v5661
        %v5806 = vunpack.c.l.b16 %v5662
        %v5807 = vunpack.c.l.b16 %v5663
        %v5808 = vunpack.c.l.b16 %v5664
        %v5809 = vunpack.c.l.b16 %v5665
        %v5810 = vunpack.c.l.b16 %v5666
        %v5811 = vunpack.c.l.b16 %v5667
        %v5812 = vunpack.c.l.b16 %v5668
        %v5813 = vunpack.c.l.b16 %v5669
        %v5814 = vunpack.c.l.b16 %v5670
        %v5815 = vunpack.c.l.b16 %v5671
        %v5816 = vunpack.c.l.b16 %v5672
        %v5817 = vunpack.c.l.b16 %v5673
        %v5818 = vunpack.c.l.b16 %v5674
        %v5819 = vunpack.c.l.b16 %v5675
        %v5820 = vunpack.c.l.b16 %v5676
        %v5821 = vunpack.c.l.b16 %v5677
        %v5822 = vunpack.c.l.b16 %v5678
        %v5823 = vunpack.c.l.b16 %v5679
        %v5824 = vunpack.c.l.b16 %v5680
        %v5825 = vunpack.c.l.b16 %v5681
        %v5826 = vunpack.c.l.b16 %v5682
        %v5827 = vunpack.c.l.b16 %v5683
        %v5828 = vunpack.c.l.b16 %v5684
        %v5829 = vunpack.c.l.b16 %v5685
        %v5830 = vunpack.c.l.b16 %v5686
        %v5831 = vunpack.c.l.b16 %v5687
        %v5832 = vunpack.c.l.b16 %v5688
        %v5833 = vpack.c.b16 %v5762, %v5761
        %v5834 = vpack.c.b16 %v5764, %v5763
        %v5835 = vpack.c.b16 %v5766, %v5765
        %v5836 = vpack.c.b16 %v5768, %v5767
        %v5837 = vpack.c.b16 %v5770, %v5769
        %v5838 = vpack.c.b16 %v5772, %v5771
        %v5839 = vpack.c.b16 %v5774, %v5773
        %v5840 = vpack.c.b16 %v5776, %v5775
        %v5841 = vpack.c.b16 %v5778, %v5777
        %v5842 = vpack.c.b16 %v5780, %v5779
        %v5843 = vpack.c.b16 %v5782, %v5781
        %v5844 = vpack.c.b16 %v5784, %v5783
        %v5845 = vpack.c.b16 %v5786, %v5785
        %v5846 = vpack.c.b16 %v5788, %v5787
        %v5847 = vpack.c.b16 %v5790, %v5789
        %v5848 = vpack.c.b16 %v5792, %v5791
        %v5849 = vpack.c.b16 %v5794, %v5793
        %v5850 = vpack.c.b16 %v5796, %v5795
        %v5851 = vpack.c.b16 %v5798, %v5797
        %v5852 = vpack.c.b16 %v5800, %v5799
        %v5853 = vpack.c.b16 %v5802, %v5801
        %v5854 = vpack.c.b16 %v5804, %v5803
        %v5855 = vpack.c.b16 %v5806, %v5805
        %v5856 = vpack.c.b16 %v5808, %v5807
        %v5857 = vpack.c.b16 %v5810, %v5809
        %v5858 = vpack.c.b16 %v5812, %v5811
        %v5859 = vpack.c.b16 %v5814, %v5813
        %v5860 = vpack.c.b16 %v5816, %v5815
        %v5861 = vpack.c.b16 %v5818, %v5817
        %v5862 = vpack.c.b16 %v5820, %v5819
        %v5863 = vpack.c.b16 %v5822, %v5821
        %v5864 = vpack.c.b16 %v5824, %v5823
        %v5865 = vpack.c.b16 %v5826, %v5825
        %v5866 = vpack.c.b16 %v5828, %v5827
        %v5867 = vpack.c.b16 %v5830, %v5829
        %v5868 = vpack.c.b16 %v5832, %v5831
        %v5905 = vsel %vm2281, %v5257, 0
        %v5907 = vsel %vm2281, %v5260, 0
        %v5909 = vsel %vm2281, %v5263, 0
        %v5911 = vsel %vm2281, %v5266, 0
        %v5913 = vsel %vm2281, %v5269, 0
        %v5915 = vsel %vm2281, %v5272, 0
        %v5917 = vsel %vm2281, %v5275, 0
        %v5919 = vsel %vm2281, %v5278, 0
        %v5921 = vsel %vm2281, %v5281, 0
        %v5923 = vsel %vm2281, %v5284, 0
        %v5925 = vsel %vm2281, %v5287, 0
        %v5927 = vsel %vm2281, %v5290, 0
        %v5929 = vsel %vm2281, %v5293, 0
        %v5931 = vsel %vm2281, %v5296, 0
        %v5934 = vsel %vm2281, %v5315, 0
        %v5937 = vsel %vm2281, %v5334, 0
        %5939 = vmatprep.subr.bf16.mxu0 0
        %5940 = vmatpush1.bf16.msra.mxu0 %v5833
        %5941 = vmatprep.subr.bf16.mxu0 0
        %5942 = vmatpush1.bf16.msra.mxu0 %v5834
        %5943 = vmatprep.subr.bf16.mxu0 0
        %5944 = vmatpush1.bf16.msra.mxu0 %v5835
        %5945 = vmatprep.subr.bf16.mxu0 0
        %5946 = vmatpush1.bf16.msra.mxu0 %v5836
        %5947 = vmatprep.subr.bf16.mxu0 0
        %5948 = vmatpush1.bf16.msra.mxu0 %v5837
        %5949 = vmatprep.subr.bf16.mxu0 0
        %5950 = vmatpush1.bf16.msra.mxu0 %v5838
        %5951 = vmatprep.subr.bf16.mxu0 0
        %5952 = vmatpush1.bf16.msra.mxu0 %v5839
        %5953 = vmatprep.subr.bf16.mxu0 0
        %5954 = vmatpush1.bf16.msra.mxu0 %v5840
        %5955 = vmatprep.subr.bf16.mxu0 0
        %5956 = vmatpush1.bf16.msra.mxu0 %v5841
        %5957 = vmatprep.subr.bf16.mxu0 0
        %5958 = vmatpush1.bf16.msra.mxu0 %v5842
        %5959 = vmatprep.subr.bf16.mxu0 0
        %5960 = vmatpush1.bf16.msra.mxu0 %v5843
        %5961 = vmatprep.subr.bf16.mxu0 0
        %5962 = vmatpush1.bf16.msra.mxu0 %v5844
        %5963 = vmatprep.subr.bf16.mxu0 0
        %5964 = vmatpush1.bf16.msra.mxu0 %v5845
        %5965 = vmatprep.subr.bf16.mxu0 0
        %5966 = vmatpush1.bf16.msra.mxu0 %v5846
        %5967 = vmatprep.subr.bf16.mxu0 0
        %5968 = vmatpush1.bf16.msra.mxu0 %v5847
        %5969 = vmatprep.subr.bf16.mxu0 0
        %5970 = vmatpush1.bf16.msra.mxu0 %v5848
        %5971 = vmatprep.mubr.bf16.mxu0 %v5485
        %5972 = vmatmul.mubr.bf16.gmra.mrb[0].mxu0 %v5436
        %v5973 = vpop.f32.mrb[0].mxu0
        %v5974 = vadd.f32 0.0, %v5973
        %v5975 = vpop.f32.mrb[0].mxu0
        %v5976 = vpop.f32.mrb[0].mxu0
        %v5977 = vadd.f32 0.0, %v5976
        %v5978 = vpop.f32.mrb[0].mxu0
        %5979 = vmatprep.mubr.bf16.mxu0 %v5489
        %5980 = vmatmul.mubr.bf16.gmra.mrb[0].mxu0 %v5439
        %v5981 = vpop.f32.mrb[0].mxu0
        %v5982 = vadd.f32 0.0, %v5981
        %v5983 = vpop.f32.mrb[0].mxu0
        %v5984 = vpop.f32.mrb[0].mxu0
        %v5985 = vadd.f32 0.0, %v5984
        %v5986 = vpop.f32.mrb[0].mxu0
        %5987 = vmatprep.mubr.bf16.mxu0 %v5493
        %5988 = vmatmul.mubr.bf16.gmra.mrb[0].mxu0 %v5442
        %v5989 = vpop.f32.mrb[0].mxu0
        %v5990 = vadd.f32 0.0, %v5989
        %v5991 = vpop.f32.mrb[0].mxu0
        %v5992 = vpop.f32.mrb[0].mxu0
        %v5993 = vadd.f32 0.0, %v5992
        %v5994 = vpop.f32.mrb[0].mxu0
        %5995 = vmatprep.mubr.bf16.mxu0 %v5497
        %5996 = vmatmul.mubr.bf16.gmra.mrb[0].mxu0 %v5445
        %v5997 = vpop.f32.mrb[0].mxu0
        %v5998 = vadd.f32 0.0, %v5997
        %v5999 = vpop.f32.mrb[0].mxu0
        %v6000 = vpop.f32.mrb[0].mxu0
        %v6001 = vadd.f32 0.0, %v6000
        %v6002 = vpop.f32.mrb[0].mxu0
        %6003 = vmatprep.mubr.bf16.mxu0 %v5501
        %6004 = vmatmul.mubr.bf16.gmra.mrb[0].mxu0 %v5448
        %v6005 = vpop.f32.mrb[0].mxu0
        %v6006 = vadd.f32 0.0, %v6005
        %v6007 = vpop.f32.mrb[0].mxu0
        %v6008 = vpop.f32.mrb[0].mxu0
        %v6009 = vadd.f32 0.0, %v6008
        %v6010 = vpop.f32.mrb[0].mxu0
        %6011 = vmatprep.mubr.bf16.mxu0 %v5505
        %6012 = vmatmul.mubr.bf16.gmra.mrb[0].mxu0 %v5451
        %v6013 = vpop.f32.mrb[0].mxu0
        %v6014 = vadd.f32 0.0, %v6013
        %v6015 = vpop.f32.mrb[0].mxu0
        %v6016 = vpop.f32.mrb[0].mxu0
        %v6017 = vadd.f32 0.0, %v6016
        %v6018 = vpop.f32.mrb[0].mxu0
        %6019 = vmatprep.mubr.bf16.mxu0 %v5509
        %6020 = vmatmul.mubr.bf16.gmra.mrb[0].mxu0 %v5454
        %v6021 = vpop.f32.mrb[0].mxu0
        %v6022 = vadd.f32 0.0, %v6021
        %v6023 = vpop.f32.mrb[0].mxu0
        %v6024 = vpop.f32.mrb[0].mxu0
        %v6025 = vadd.f32 0.0, %v6024
        %v6026 = vpop.f32.mrb[0].mxu0
        %6027 = vmatprep.mubr.bf16.mxu0 %v5513
        %6028 = vmatmul.mubr.bf16.gmra.mrb[0].mxu0 %v5457
        %v6029 = vpop.f32.mrb[0].mxu0
        %v6030 = vadd.f32 0.0, %v6029
        %v6031 = vpop.f32.mrb[0].mxu0
        %v6032 = vpop.f32.mrb[0].mxu0
        %v6033 = vadd.f32 0.0, %v6032
        %v6034 = vpop.f32.mrb[0].mxu0
        %6035 = vmatprep.mubr.bf16.mxu0 %v5517
        %6036 = vmatmul.mubr.bf16.gmra.mrb[0].mxu0 %v5460
        %v6037 = vpop.f32.mrb[0].mxu0
        %v6038 = vadd.f32 0.0, %v6037
        %v6039 = vpop.f32.mrb[0].mxu0
        %v6040 = vpop.f32.mrb[0].mxu0
        %v6041 = vadd.f32 0.0, %v6040
        %v6042 = vpop.f32.mrb[0].mxu0
        %6043 = vmatprep.mubr.bf16.mxu0 %v5521
        %6044 = vmatmul.mubr.bf16.gmra.mrb[0].mxu0 %v5463
        %v6045 = vpop.f32.mrb[0].mxu0
        %v6046 = vadd.f32 0.0, %v6045
        %v6047 = vpop.f32.mrb[0].mxu0
        %v6048 = vpop.f32.mrb[0].mxu0
        %v6049 = vadd.f32 0.0, %v6048
        %v6050 = vpop.f32.mrb[0].mxu0
        %6051 = vmatprep.mubr.bf16.mxu0 %v5525
        %6052 = vmatmul.mubr.bf16.gmra.mrb[0].mxu0 %v5466
        %v6053 = vpop.f32.mrb[0].mxu0
        %v6054 = vadd.f32 0.0, %v6053
        %v6055 = vpop.f32.mrb[0].mxu0
        %v6056 = vpop.f32.mrb[0].mxu0
        %v6057 = vadd.f32 0.0, %v6056
        %v6058 = vpop.f32.mrb[0].mxu0
        %6059 = vmatprep.mubr.bf16.mxu0 %v5529
        %6060 = vmatmul.mubr.bf16.gmra.mrb[0].mxu0 %v5469
        %v6061 = vpop.f32.mrb[0].mxu0
        %v6062 = vadd.f32 0.0, %v6061
        %v6063 = vpop.f32.mrb[0].mxu0
        %v6064 = vpop.f32.mrb[0].mxu0
        %v6065 = vadd.f32 0.0, %v6064
        %v6066 = vpop.f32.mrb[0].mxu0
        %6067 = vmatprep.mubr.bf16.mxu0 %v5533
        %6068 = vmatmul.mubr.bf16.gmra.mrb[0].mxu0 %v5472
        %v6069 = vpop.f32.mrb[0].mxu0
        %v6070 = vadd.f32 0.0, %v6069
        %v6071 = vpop.f32.mrb[0].mxu0
        %v6072 = vpop.f32.mrb[0].mxu0
        %v6073 = vadd.f32 0.0, %v6072
        %v6074 = vpop.f32.mrb[0].mxu0
        %6075 = vmatprep.mubr.bf16.mxu0 %v5537
        %6076 = vmatmul.mubr.bf16.gmra.mrb[0].mxu0 %v5475
        %v6077 = vpop.f32.mrb[0].mxu0
        %v6078 = vadd.f32 0.0, %v6077
        %v6079 = vpop.f32.mrb[0].mxu0
        %v6080 = vpop.f32.mrb[0].mxu0
        %v6081 = vadd.f32 0.0, %v6080
        %v6082 = vpop.f32.mrb[0].mxu0
        %6083 = vmatprep.mubr.bf16.mxu0 %v5541
        %6084 = vmatmul.mubr.bf16.gmra.mrb[0].mxu0 %v5478
        %v6085 = vpop.f32.mrb[0].mxu0
        %v6086 = vadd.f32 0.0, %v6085
        %v6087 = vpop.f32.mrb[0].mxu0
        %v6088 = vpop.f32.mrb[0].mxu0
        %v6089 = vadd.f32 0.0, %v6088
        %v6090 = vpop.f32.mrb[0].mxu0
        %6091 = vmatprep.mubr.bf16.mxu0 %v5545
        %6092 = vmatmul.mubr.bf16.gmra.mrb[0].mxu0 %v5481
        %v6093 = vpop.f32.mrb[0].mxu0
        %v6094 = vadd.f32 0.0, %v6093
        %v6095 = vpop.f32.mrb[0].mxu0
        %v6096 = vpop.f32.mrb[0].mxu0
        %v6097 = vadd.f32 0.0, %v6096
        %v6098 = vpop.f32.mrb[0].mxu0
        %6099 = vdwg.mxu0
        %6100 = vmatprep.subr.bf16.mxu0 0
        %6101 = vmatpush1.bf16.msra.mxu0 %v5849
        %6102 = vmatprep.subr.bf16.mxu0 0
        %6103 = vmatpush1.bf16.msra.mxu0 %v5850
        %6104 = vmatprep.subr.bf16.mxu0 0
        %6105 = vmatpush1.bf16.msra.mxu0 %v5851
        %6106 = vmatprep.subr.bf16.mxu0 0
        %6107 = vmatpush1.bf16.msra.mxu0 %v5852
        %6108 = vmatprep.subr.bf16.mxu0 0
        %6109 = vmatpush1.bf16.msra.mxu0 %v5853
        %6110 = vmatprep.subr.bf16.mxu0 0
        %6111 = vmatpush1.bf16.msra.mxu0 %v5854
        %6112 = vmatprep.subr.bf16.mxu0 0
        %6113 = vmatpush1.bf16.msra.mxu0 %v5855
        %6114 = vmatprep.subr.bf16.mxu0 0
        %6115 = vmatpush1.bf16.msra.mxu0 %v5856
        %6116 = vmatprep.subr.bf16.mxu0 0
        %6117 = vmatpush1.bf16.msra.mxu0 %v5857
        %6118 = vmatprep.subr.bf16.mxu0 0
        %6119 = vmatpush1.bf16.msra.mxu0 %v5858
        %6120 = vmatprep.subr.bf16.mxu0 0
        %6121 = vmatpush1.bf16.msra.mxu0 %v5859
        %6122 = vmatprep.subr.bf16.mxu0 0
        %6123 = vmatpush1.bf16.msra.mxu0 %v5860
        %6124 = vmatprep.subr.bf16.mxu0 0
        %6125 = vmatpush1.bf16.msra.mxu0 %v5861
        %6126 = vmatprep.subr.bf16.mxu0 0
        %6127 = vmatpush1.bf16.msra.mxu0 %v5862
        %6128 = vmatprep.subr.bf16.mxu0 0
        %6129 = vmatpush1.bf16.msra.mxu0 %v5863
        %6130 = vmatprep.subr.bf16.mxu0 0
        %6131 = vmatpush1.bf16.msra.mxu0 %v5864
        %6132 = vmatprep.mubr.bf16.mxu0 %v5442
        %6133 = vmatmul.mubr.bf16.gmra.mrb[0].mxu0 %v5549
        %v6134 = vpop.f32.mrb[0].mxu0
        %v6135 = vadd.f32 %v5974, %v6134
        %v6136 = vpop.f32.mrb[0].mxu0
        %v6137 = vpop.f32.mrb[0].mxu0
        %v6138 = vadd.f32 %v5977, %v6137
        %v6139 = vpop.f32.mrb[0].mxu0
        %6140 = vmatprep.mubr.bf16.mxu0 %v5445
        %6141 = vmatmul.mubr.bf16.gmra.mrb[0].mxu0 %v5553
        %v6142 = vpop.f32.mrb[0].mxu0
        %v6143 = vadd.f32 %v5982, %v6142
        %v6144 = vpop.f32.mrb[0].mxu0
        %v6145 = vpop.f32.mrb[0].mxu0
        %v6146 = vadd.f32 %v5985, %v6145
        %v6147 = vpop.f32.mrb[0].mxu0
        %6148 = vmatprep.mubr.bf16.mxu0 %v5448
        %6149 = vmatmul.mubr.bf16.gmra.mrb[0].mxu0 %v5557
        %v6150 = vpop.f32.mrb[0].mxu0
        %v6151 = vadd.f32 %v5990, %v6150
        %v6152 = vpop.f32.mrb[0].mxu0
        %v6153 = vpop.f32.mrb[0].mxu0
        %v6154 = vadd.f32 %v5993, %v6153
        %v6155 = vpop.f32.mrb[0].mxu0
        %6156 = vmatprep.mubr.bf16.mxu0 %v5451
        %6157 = vmatmul.mubr.bf16.gmra.mrb[0].mxu0 %v5561
        %v6158 = vpop.f32.mrb[0].mxu0
        %v6159 = vadd.f32 %v5998, %v6158
        %v6160 = vpop.f32.mrb[0].mxu0
        %v6161 = vpop.f32.mrb[0].mxu0
        %v6162 = vadd.f32 %v6001, %v6161
        %v6163 = vpop.f32.mrb[0].mxu0
        %6164 = vmatprep.mubr.bf16.mxu0 %v5454
        %6165 = vmatmul.mubr.bf16.gmra.mrb[0].mxu0 %v5565
        %v6166 = vpop.f32.mrb[0].mxu0
        %v6167 = vadd.f32 %v6006, %v6166
        %v6168 = vpop.f32.mrb[0].mxu0
        %v6169 = vpop.f32.mrb[0].mxu0
        %v6170 = vadd.f32 %v6009, %v6169
        %v6171 = vpop.f32.mrb[0].mxu0
        %6172 = vmatprep.mubr.bf16.mxu0 %v5457
        %6173 = vmatmul.mubr.bf16.gmra.mrb[0].mxu0 %v5569
        %v6174 = vpop.f32.mrb[0].mxu0
        %v6175 = vadd.f32 %v6014, %v6174
        %v6176 = vpop.f32.mrb[0].mxu0
        %v6177 = vpop.f32.mrb[0].mxu0
        %v6178 = vadd.f32 %v6017, %v6177
        %v6179 = vpop.f32.mrb[0].mxu0
        %6180 = vmatprep.mubr.bf16.mxu0 %v5460
        %6181 = vmatmul.mubr.bf16.gmra.mrb[0].mxu0 %v5573
        %v6182 = vpop.f32.mrb[0].mxu0
        %v6183 = vadd.f32 %v6022, %v6182
        %v6184 = vpop.f32.mrb[0].mxu0
        %v6185 = vpop.f32.mrb[0].mxu0
        %v6186 = vadd.f32 %v6025, %v6185
        %v6187 = vpop.f32.mrb[0].mxu0
        %6188 = vmatprep.mubr.bf16.mxu0 %v5463
        %6189 = vmatmul.mubr.bf16.gmra.mrb[0].mxu0 %v5577
        %v6190 = vpop.f32.mrb[0].mxu0
        %v6191 = vadd.f32 %v6030, %v6190
        %v6192 = vpop.f32.mrb[0].mxu0
        %v6193 = vpop.f32.mrb[0].mxu0
        %v6194 = vadd.f32 %v6033, %v6193
        %v6195 = vpop.f32.mrb[0].mxu0
        %6196 = vmatprep.mubr.bf16.mxu0 %v5466
        %6197 = vmatmul.mubr.bf16.gmra.mrb[0].mxu0 %v5581
        %v6198 = vpop.f32.mrb[0].mxu0
        %v6199 = vadd.f32 %v6038, %v6198
        %v6200 = vpop.f32.mrb[0].mxu0
        %v6201 = vpop.f32.mrb[0].mxu0
        %v6202 = vadd.f32 %v6041, %v6201
        %v6203 = vpop.f32.mrb[0].mxu0
        %6204 = vmatprep.mubr.bf16.mxu0 %v5469
        %6205 = vmatmul.mubr.bf16.gmra.mrb[0].mxu0 %v5585
        %v6206 = vpop.f32.mrb[0].mxu0
        %v6207 = vadd.f32 %v6046, %v6206
        %v6208 = vpop.f32.mrb[0].mxu0
        %v6209 = vpop.f32.mrb[0].mxu0
        %v6210 = vadd.f32 %v6049, %v6209
        %v6211 = vpop.f32.mrb[0].mxu0
        %6212 = vmatprep.mubr.bf16.mxu0 %v5472
        %6213 = vmatmul.mubr.bf16.gmra.mrb[0].mxu0 %v5589
        %v6214 = vpop.f32.mrb[0].mxu0
        %v6215 = vadd.f32 %v6054, %v6214
        %v6216 = vpop.f32.mrb[0].mxu0
        %v6217 = vpop.f32.mrb[0].mxu0
        %v6218 = vadd.f32 %v6057, %v6217
        %v6219 = vpop.f32.mrb[0].mxu0
        %6220 = vmatprep.mubr.bf16.mxu0 %v5475
        %6221 = vmatmul.mubr.bf16.gmra.mrb[0].mxu0 %v5593
        %v6222 = vpop.f32.mrb[0].mxu0
        %v6223 = vadd.f32 %v6062, %v6222
        %v6224 = vpop.f32.mrb[0].mxu0
        %v6225 = vpop.f32.mrb[0].mxu0
        %v6226 = vadd.f32 %v6065, %v6225
        %v6227 = vpop.f32.mrb[0].mxu0
        %6228 = vmatprep.mubr.bf16.mxu0 %v5478
        %6229 = vmatmul.mubr.bf16.gmra.mrb[0].mxu0 %v5597
        %v6230 = vpop.f32.mrb[0].mxu0
        %v6231 = vadd.f32 %v6070, %v6230
        %v6232 = vpop.f32.mrb[0].mxu0
        %v6233 = vpop.f32.mrb[0].mxu0
        %v6234 = vadd.f32 %v6073, %v6233
        %v6235 = vpop.f32.mrb[0].mxu0
        %6236 = vmatprep.mubr.bf16.mxu0 %v5481
        %6237 = vmatmul.mubr.bf16.gmra.mrb[0].mxu0 %v5601
        %v6238 = vpop.f32.mrb[0].mxu0
        %v6239 = vadd.f32 %v6078, %v6238
        %v6240 = vpop.f32.mrb[0].mxu0
        %v6241 = vpop.f32.mrb[0].mxu0
        %v6242 = vadd.f32 %v6081, %v6241
        %v6243 = vpop.f32.mrb[0].mxu0
        %6244 = vmatprep.mubr.bf16.mxu0 %v5612
        %6245 = vmatmul.mubr.bf16.gmra.mrb[0].mxu0 %v5605
        %v6246 = vpop.f32.mrb[0].mxu0
        %v6247 = vadd.f32 %v6086, %v6246
        %v6248 = vpop.f32.mrb[0].mxu0
        %v6249 = vpop.f32.mrb[0].mxu0
        %v6250 = vadd.f32 %v6089, %v6249
        %v6251 = vpop.f32.mrb[0].mxu0
        %6252 = vmatprep.mubr.bf16.mxu0 %v5615
        %6253 = vmatmul.mubr.bf16.gmra.mrb[0].mxu0 %v5609
        %v6254 = vpop.f32.mrb[0].mxu0
        %v6255 = vadd.f32 %v6094, %v6254
        %v6256 = vpop.f32.mrb[0].mxu0
        %v6257 = vpop.f32.mrb[0].mxu0
        %v6258 = vadd.f32 %v6097, %v6257
        %v6259 = vpop.f32.mrb[0].mxu0
        %6260 = vdwg.mxu0
        %6261 = vmatprep.subr.bf16.mxu0 0
        %6262 = vmatpush1.bf16.msra.mxu0 %v5865
        %6263 = vmatprep.subr.bf16.mxu0 0
        %6264 = vmatpush1.bf16.msra.mxu0 %v5866
        %6265 = vmatprep.subr.bf16.mxu0 0
        %6266 = vmatpush1.bf16.msra.mxu0 %v5867
        %6267 = vmatprep.subr.bf16.mxu0 0
        %6268 = vmatpush1.bf16.msra.mxu0 %v5868
        %6269 = vmatprep.subr.bf16.mxu0 0
        %6270 = vmatpush1.bf16.msra.mxu0 0
        %6271 = vmatprep.subr.bf16.mxu0 0
        %6272 = vmatpush1.bf16.msra.mxu0 0
        %6273 = vmatprep.subr.bf16.mxu0 0
        %6274 = vmatpush1.bf16.msra.mxu0 0
        %6275 = vmatprep.subr.bf16.mxu0 0
        %6276 = vmatpush1.bf16.msra.mxu0 0
        %6277 = vmatprep.subr.bf16.mxu0 0
        %6278 = vmatpush1.bf16.msra.mxu0 0
        %6279 = vmatprep.subr.bf16.mxu0 0
        %6280 = vmatpush1.bf16.msra.mxu0 0
        %6281 = vmatprep.subr.bf16.mxu0 0
        %6282 = vmatpush1.bf16.msra.mxu0 0
        %6283 = vmatprep.subr.bf16.mxu0 0
        %6284 = vmatpush1.bf16.msra.mxu0 0
        %6285 = vmatprep.subr.bf16.mxu0 0
        %6286 = vmatpush1.bf16.msra.mxu0 0
        %6287 = vmatprep.subr.bf16.mxu0 0
        %6288 = vmatpush1.bf16.msra.mxu0 0
        %6289 = vmatprep.subr.bf16.mxu0 0
        %6290 = vmatpush1.bf16.msra.mxu0 0
        %6291 = vmatprep.subr.bf16.mxu0 0
        %6292 = vmatpush1.bf16.msra.mxu0 0
        %6293 = vmatprep.mubr.bf16.mxu0 0
        %6294 = vmatmul.mubr.bf16.gmra.mrb[0].mxu0 %v5905
        %v6295 = vpop.f32.mrb[0].mxu0
        %v6296 = vadd.f32 %v6135, %v6295
        %v6297 = vpop.f32.mrb[0].mxu0
        %v6298 = vpop.f32.mrb[0].mxu0
        %v6299 = vadd.f32 %v6138, %v6298
        %v6300 = vpop.f32.mrb[0].mxu0
        %6301 = vmatprep.mubr.bf16.mxu0 0
        %6302 = vmatmul.mubr.bf16.gmra.mrb[0].mxu0 %v5907
        %v6303 = vpop.f32.mrb[0].mxu0
        %v6304 = vadd.f32 %v6143, %v6303
        %v6305 = vpop.f32.mrb[0].mxu0
        %v6306 = vpop.f32.mrb[0].mxu0
        %v6307 = vadd.f32 %v6146, %v6306
        %v6308 = vpop.f32.mrb[0].mxu0
        %6309 = vmatprep.mubr.bf16.mxu0 0
        %6310 = vmatmul.mubr.bf16.gmra.mrb[0].mxu0 %v5909
        %v6311 = vpop.f32.mrb[0].mxu0
        %v6312 = vadd.f32 %v6151, %v6311
        %v6313 = vpop.f32.mrb[0].mxu0
        %v6314 = vpop.f32.mrb[0].mxu0
        %v6315 = vadd.f32 %v6154, %v6314
        %v6316 = vpop.f32.mrb[0].mxu0
        %6317 = vmatprep.mubr.bf16.mxu0 0
        %6318 = vmatmul.mubr.bf16.gmra.mrb[0].mxu0 %v5911
        %v6319 = vpop.f32.mrb[0].mxu0
        %v6320 = vadd.f32 %v6159, %v6319
        %v6321 = vpop.f32.mrb[0].mxu0
        %v6322 = vpop.f32.mrb[0].mxu0
        %v6323 = vadd.f32 %v6162, %v6322
        %v6324 = vpop.f32.mrb[0].mxu0
        %6325 = vmatprep.mubr.bf16.mxu0 0
        %6326 = vmatmul.mubr.bf16.gmra.mrb[0].mxu0 %v5913
        %v6327 = vpop.f32.mrb[0].mxu0
        %v6328 = vadd.f32 %v6167, %v6327
        %v6329 = vpop.f32.mrb[0].mxu0
        %v6330 = vpop.f32.mrb[0].mxu0
        %v6331 = vadd.f32 %v6170, %v6330
        %v6332 = vpop.f32.mrb[0].mxu0
        %6333 = vmatprep.mubr.bf16.mxu0 0
        %6334 = vmatmul.mubr.bf16.gmra.mrb[0].mxu0 %v5915
        %v6335 = vpop.f32.mrb[0].mxu0
        %v6336 = vadd.f32 %v6175, %v6335
        %v6337 = vpop.f32.mrb[0].mxu0
        %v6338 = vpop.f32.mrb[0].mxu0
        %v6339 = vadd.f32 %v6178, %v6338
        %v6340 = vpop.f32.mrb[0].mxu0
        %6341 = vmatprep.mubr.bf16.mxu0 0
        %6342 = vmatmul.mubr.bf16.gmra.mrb[0].mxu0 %v5917
        %v6343 = vpop.f32.mrb[0].mxu0
        %v6344 = vadd.f32 %v6183, %v6343
        %v6345 = vpop.f32.mrb[0].mxu0
        %v6346 = vpop.f32.mrb[0].mxu0
        %v6347 = vadd.f32 %v6186, %v6346
        %v6348 = vpop.f32.mrb[0].mxu0
        %6349 = vmatprep.mubr.bf16.mxu0 0
        %6350 = vmatmul.mubr.bf16.gmra.mrb[0].mxu0 %v5919
        %v6351 = vpop.f32.mrb[0].mxu0
        %v6352 = vadd.f32 %v6191, %v6351
        %v6353 = vpop.f32.mrb[0].mxu0
        %v6354 = vpop.f32.mrb[0].mxu0
        %v6355 = vadd.f32 %v6194, %v6354
        %v6356 = vpop.f32.mrb[0].mxu0
        %6357 = vmatprep.mubr.bf16.mxu0 0
        %6358 = vmatmul.mubr.bf16.gmra.mrb[0].mxu0 %v5921
        %v6359 = vpop.f32.mrb[0].mxu0
        %v6360 = vadd.f32 %v6199, %v6359
        %v6361 = vpop.f32.mrb[0].mxu0
        %v6362 = vpop.f32.mrb[0].mxu0
        %v6363 = vadd.f32 %v6202, %v6362
        %v6364 = vpop.f32.mrb[0].mxu0
        %6365 = vmatprep.mubr.bf16.mxu0 0
        %6366 = vmatmul.mubr.bf16.gmra.mrb[0].mxu0 %v5923
        %v6367 = vpop.f32.mrb[0].mxu0
        %v6368 = vadd.f32 %v6207, %v6367
        %v6369 = vpop.f32.mrb[0].mxu0
        %v6370 = vpop.f32.mrb[0].mxu0
        %v6371 = vadd.f32 %v6210, %v6370
        %v6372 = vpop.f32.mrb[0].mxu0
        %6373 = vmatprep.mubr.bf16.mxu0 0
        %6374 = vmatmul.mubr.bf16.gmra.mrb[0].mxu0 %v5925
        %v6375 = vpop.f32.mrb[0].mxu0
        %v6376 = vadd.f32 %v6215, %v6375
        %v6377 = vpop.f32.mrb[0].mxu0
        %v6378 = vpop.f32.mrb[0].mxu0
        %v6379 = vadd.f32 %v6218, %v6378
        %v6380 = vpop.f32.mrb[0].mxu0
        %6381 = vmatprep.mubr.bf16.mxu0 0
        %6382 = vmatmul.mubr.bf16.gmra.mrb[0].mxu0 %v5927
        %v6383 = vpop.f32.mrb[0].mxu0
        %v6384 = vadd.f32 %v6223, %v6383
        %v6385 = vpop.f32.mrb[0].mxu0
        %v6386 = vpop.f32.mrb[0].mxu0
        %v6387 = vadd.f32 %v6226, %v6386
        %v6388 = vpop.f32.mrb[0].mxu0
        %6389 = vmatprep.mubr.bf16.mxu0 0
        %6390 = vmatmul.mubr.bf16.gmra.mrb[0].mxu0 %v5929
        %v6391 = vpop.f32.mrb[0].mxu0
        %v6392 = vadd.f32 %v6231, %v6391
        %v6393 = vpop.f32.mrb[0].mxu0
        %v6394 = vpop.f32.mrb[0].mxu0
        %v6395 = vadd.f32 %v6234, %v6394
        %v6396 = vpop.f32.mrb[0].mxu0
        %6397 = vmatprep.mubr.bf16.mxu0 0
        %6398 = vmatmul.mubr.bf16.gmra.mrb[0].mxu0 %v5931
        %v6399 = vpop.f32.mrb[0].mxu0
        %v6400 = vadd.f32 %v6239, %v6399
        %v6401 = vpop.f32.mrb[0].mxu0
        %v6402 = vpop.f32.mrb[0].mxu0
        %v6403 = vadd.f32 %v6242, %v6402
        %v6404 = vpop.f32.mrb[0].mxu0
        %6405 = vmatprep.mubr.bf16.mxu0 0
        %6406 = vmatmul.mubr.bf16.gmra.mrb[0].mxu0 %v5934
        %v6407 = vpop.f32.mrb[0].mxu0
        %v6408 = vadd.f32 %v6247, %v6407
        %v6409 = vpop.f32.mrb[0].mxu0
        %v6410 = vpop.f32.mrb[0].mxu0
        %v6411 = vadd.f32 %v6250, %v6410
        %v6412 = vpop.f32.mrb[0].mxu0
        %6413 = vmatprep.mubr.bf16.mxu0 0
        %6414 = vmatmul.mubr.bf16.gmra.mrb[0].mxu0 %v5937
        %v6415 = vpop.f32.mrb[0].mxu0
        %v6416 = vadd.f32 %v6255, %v6415
        %v6417 = vpop.f32.mrb[0].mxu0
        %v6418 = vpop.f32.mrb[0].mxu0
        %v6419 = vadd.f32 %v6258, %v6418
        %v6420 = vpop.f32.mrb[0].mxu0
        %6421 = vdwg.mxu0
        %vm6422 = vcmask 23552
        %6423 = vst.msk [vmem:[%s290] sm:$0xff] %vm6422, %v6296
        %6424 = vst.msk [vmem:[%s290 + $0x8] sm:$0xff] %vm6422, %v6299
        %6425 = vst.msk [vmem:[%s290 + $0x10] sm:$0xff] %vm6422, %v6304
        %6426 = vst.msk [vmem:[%s290 + $0x18] sm:$0xff] %vm6422, %v6307
        %6427 = vst.msk [vmem:[%s290 + $0x20] sm:$0xff] %vm6422, %v6312
        %6428 = vst.msk [vmem:[%s290 + $0x28] sm:$0xff] %vm6422, %v6315
        %6429 = vst.msk [vmem:[%s290 + $0x30] sm:$0xff] %vm6422, %v6320
        %6430 = vst.msk [vmem:[%s290 + $0x38] sm:$0xff] %vm6422, %v6323
        %6431 = vst.msk [vmem:[%s290 + $0x40] sm:$0xff] %vm6422, %v6328
        %6432 = vst.msk [vmem:[%s290 + $0x48] sm:$0xff] %vm6422, %v6331
        %6433 = vst.msk [vmem:[%s290 + $0x50] sm:$0xff] %vm6422, %v6336
        %6434 = vst.msk [vmem:[%s290 + $0x58] sm:$0xff] %vm6422, %v6339
        %6435 = vst.msk [vmem:[%s290 + $0x60] sm:$0xff] %vm6422, %v6344
        %6436 = vst.msk [vmem:[%s290 + $0x68] sm:$0xff] %vm6422, %v6347
        %6437 = vst.msk [vmem:[%s290 + $0x70] sm:$0xff] %vm6422, %v6352
        %6438 = vst.msk [vmem:[%s290 + $0x78] sm:$0xff] %vm6422, %v6355
        %6439 = vst.msk [vmem:[%s290 + $0x80] sm:$0xff] %vm6422, %v6360
        %6440 = vst.msk [vmem:[%s290 + $0x88] sm:$0xff] %vm6422, %v6363
        %6441 = vst.msk [vmem:[%s290 + $0x90] sm:$0xff] %vm6422, %v6368
        %6442 = vst.msk [vmem:[%s290 + $0x98] sm:$0xff] %vm6422, %v6371
        %6443 = vst.msk [vmem:[%s290 + $0xa0] sm:$0xff] %vm6422, %v6376
        %6444 = vst.msk [vmem:[%s290 + $0xa8] sm:$0xff] %vm6422, %v6379
        %6445 = vst.msk [vmem:[%s290 + $0xb0] sm:$0xff] %vm6422, %v6384
        %6446 = vst.msk [vmem:[%s290 + $0xb8] sm:$0xff] %vm6422, %v6387
        %6447 = vst.msk [vmem:[%s290 + $0xc0] sm:$0xff] %vm6422, %v6392
        %6448 = vst.msk [vmem:[%s290 + $0xc8] sm:$0xff] %vm6422, %v6395
        %6449 = vst.msk [vmem:[%s290 + $0xd0] sm:$0xff] %vm6422, %v6400
        %6450 = vst.msk [vmem:[%s290 + $0xd8] sm:$0xff] %vm6422, %v6403
        %6451 = vst.msk [vmem:[%s290 + $0xe0] sm:$0xff] %vm6422, %v6408
        %6452 = vst.msk [vmem:[%s290 + $0xe8] sm:$0xff] %vm6422, %v6411
        %6453 = vst.msk [vmem:[%s290 + $0xf0] sm:$0xff] %vm6422, %v6416
        %6454 = vst.msk [vmem:[%s290 + $0xf8] sm:$0xff] %vm6422, %v6419
      $region56: #{resblocknet_forward.1} parent=47 // pred_fallthru
        _
      %p6455 = scmp.lt.s32.totalorder %s22, 1
      %s6456 = scalar_select %p6455, %s22, 1
      %s6457 = smul.addr %s6456, 32
      %s6458 = smul.addr %s6457, 8
      %s6459 = scalar_lea.vmem %s7, %s6458
      // Predicated region
      $region57: #{resblocknet_forward.1} parent=47 // pred_check
        %p6460 = pneg %p200
      $region58: #{resblocknet_forward.1} parent=47 // pred_check_branch
        %6462 = sbr.rel (%p6460) target = $region60
      $region59: #{resblocknet_forward.1} parent=47 // pred_region
        _
      $region60: #{resblocknet_forward.1} parent=47 // pred_fallthru
        _
    $region48: #{resblocknet_forward.1} parent=5 // pred_fallthru
      _
    %p6463 = scmp.le.s32.totalorder 2, %s13
    // Predicated region
    $region61: #{resblocknet_forward.1} parent=5 // pred_check
      %p6464 = pneg %p6463
    $region62: #{resblocknet_forward.1} parent=5 // pred_check_branch
      %6466 = sbr.rel (%p6464) target = $region64
    $region63: #{resblocknet_forward.1} parent=5 // pred_region
      %s6467 = ssub.s32 %s13, 2
      // Predicated region
      $region65: #{resblocknet_forward.1} parent=63 // pred_check
        %p6468 = pneg %p206
      $region66: #{resblocknet_forward.1} parent=63 // pred_check_branch
        %6470 = sbr.rel (%p6468) target = $region68
      $region67: #{resblocknet_forward.1} parent=63 // pred_region
        %p6471 = scmp.lt.s32.totalorder %s24, 1
        %s6472 = scalar_select %p6471, %s24, 1
        %s6473 = smul.addr %s6472, 32
        %s6474 = smul.addr %s6473, 8
        %s6475 = scalar_lea.vmem %s7, %s6474
      $region68: #{resblocknet_forward.1} parent=63 // pred_fallthru
        _
    $region64: #{resblocknet_forward.1} parent=5 // pred_fallthru
      _
  $region6: #{resblocknet_forward.1} parent=0 // loop_footer
    %s17 = sadd.s32 1, %s13
  $region7: #{resblocknet_forward.1} parent=0 // loop_footer_branch
    %12 = sbr.rel target = $region3
  $region8: #{resblocknet_forward.1} parent=0 // loop_exit
    _

</llo_original>
